<compile_context>
chip_gen: v7x
topology: tpu7x:2x2x1
jax: 0.10.0
libtpu: 0.0.40
codegen_flags: <defaults>
</compile_context>

<pallas_src>
import jax
import jax.numpy as jnp
from jax import lax
from jax.experimental import pallas as pl
from jax.experimental.pallas import tpu as pltpu

_LANE = 128
_SUBLANE = 8


def _round_up(x, m):
    return (x + m - 1) // m * m


def _gtc_kernel(sidx_col_ref, oidx_col_ref, sidx_row_ref, oidx_row_ref,
                obj_ref, pred_ref,
                w1s_ref, w1p_ref, w1o_ref, b1_ref,
                w2s_ref, w2p_ref, w2o_ref, b2s_ref, b2p_ref, b2o_ref,
                w3_ref, b3_ref, w4_ref, b4_ref,
                new_obj_ref, new_pred_ref,
                pooled_ref, counts_ref):
    f32 = jnp.float32
    cdt = obj_ref.dtype                      # matmul-operand dtype (bf16 or f32)
    t = pl.program_id(0)
    n_t = pl.num_programs(0)
    t_tile = pred_ref.shape[0]
    o_pad = obj_ref.shape[0]

    @pl.when(t == 0)
    def _init():
        pooled_ref[...] = jnp.zeros_like(pooled_ref)
        counts_ref[...] = jnp.zeros_like(counts_ref)

    s_col = sidx_col_ref[...]                # (T_TILE, 1) int32, -1 for padded triples
    o_col = oidx_col_ref[...]

    # Gather subject/object rows for this triple tile via one-hot matmul (MXU).
    col = lax.broadcasted_iota(jnp.int32, (t_tile, o_pad), 1)
    oh_s = (col == s_col).astype(f32).astype(cdt)     # (T_TILE, O_pad)
    oh_o = (col == o_col).astype(f32).astype(cdt)

    obj = obj_ref[...]                       # (O_pad, Din_pad) cdt
    pred = pred_ref[...]                     # (T_TILE, Din_pad) cdt
    cur_s = jnp.dot(oh_s, obj, preferred_element_type=f32).astype(cdt)
    cur_o = jnp.dot(oh_o, obj, preferred_element_type=f32).astype(cdt)

    # net1 layer 1:  concat([s, p, o], 1) @ W1  ==  s@W1s + p@W1p + o@W1o
    h1 = (jnp.dot(cur_s, w1s_ref[...], preferred_element_type=f32)
          + jnp.dot(pred, w1p_ref[...], preferred_element_type=f32)
          + jnp.dot(cur_o, w1o_ref[...], preferred_element_type=f32)
          + b1_ref[...])
    h1 = jnp.maximum(h1, 0.0).astype(cdt)    # ReLU in f32, one cast for next matmuls

    # net1 layer 2 split into three lane-aligned heads (no column slicing).
    new_s = jnp.maximum(
        jnp.dot(h1, w2s_ref[...], preferred_element_type=f32) + b2s_ref[...], 0.0)
    new_p = jnp.maximum(
        jnp.dot(h1, w2p_ref[...], preferred_element_type=f32) + b2p_ref[...], 0.0)
    new_o = jnp.maximum(
        jnp.dot(h1, w2o_ref[...], preferred_element_type=f32) + b2o_ref[...], 0.0)

    new_pred_ref[...] = new_p.astype(new_pred_ref.dtype)     # lane-dense store

    # Scatter-add pooling: contract over the triple axis -> (O_pad, H_pad).
    dn = (((0,), (0,)), ((), ()))
    pooled_ref[...] += (
        lax.dot_general(oh_s, new_s.astype(cdt), dn, preferred_element_type=f32)
        + lax.dot_general(oh_o, new_o.astype(cdt), dn, preferred_element_type=f32))

    # Per-object counts via VPU compare + XLU lane reduce (keeps the MXU free).
    s_row = sidx_row_ref[...]                # (1, T_TILE) int32
    o_row = oidx_row_ref[...]
    row = lax.broadcasted_iota(jnp.int32, (o_pad, t_tile), 0)
    cnt = (row == s_row).astype(f32) + (row == o_row).astype(f32)
    counts_ref[...] += jnp.sum(cnt, axis=1, keepdims=True)   # (O_pad, 1)

    # Finalize on the last T step: average pool, then net2 (Linear+ReLU twice).
    @pl.when(t == n_t - 1)
    def _finalize():
        inv = pl.reciprocal(jnp.maximum(counts_ref[...], 1.0), approx=False)
        pooled = (pooled_ref[...] * inv).astype(cdt)          # (O_pad, H_pad)
        h3 = jnp.maximum(
            jnp.dot(pooled, w3_ref[...], preferred_element_type=f32) + b3_ref[...],
            0.0)
        out = jnp.maximum(
            jnp.dot(h3.astype(cdt), w4_ref[...], preferred_element_type=f32)
            + b4_ref[...], 0.0)
        new_obj_ref[...] = out.astype(new_obj_ref.dtype)


def graph_triple_conv(obj_vecs, pred_vecs, edges, params, hidden_dim, output_dim,
                      *, t_tile=128, compute_dtype=jnp.bfloat16):
    """Fused GraphTripleConv forward.

    t_tile sizing: 256-512 rows is a good default on v5e/v6e (128 MiB VMEM);
    halve it on v7x (64 MiB physical VMEM). 128 is plenty for the toy sizes.
    """
    O, Din = obj_vecs.shape
    T = pred_vecs.shape[0]
    H, Dout = hidden_dim, output_dim
    w1s, w1p, w1o, b1, w2, b2, w3, b3, w4, b4 = params

    f32 = jnp.float32
    cdt = jnp.dtype(compute_dtype)

    din_p = _round_up(Din, _LANE)
    h_p = _round_up(H, _LANE)
    dout_p = _round_up(Dout, _LANE)
    o_p = _round_up(O, _SUBLANE)
    t_p = _round_up(max(T, 1), t_tile)
    n_t = t_p // t_tile

    def pad2(x, rows, cols, dtype):
        y = jnp.zeros((rows, cols), dtype)
        return y.at[:x.shape[0], :x.shape[1]].set(x.astype(dtype))

    obj_p = pad2(obj_vecs, o_p, din_p, cdt)
    pred_p = pad2(pred_vecs, t_p, din_p, cdt)

    # Split net1's fused second layer into lane-aligned (s, p, o) heads.
    w2s, w2p, w2o = w2[:, :H], w2[:, H:H + Dout], w2[:, H + Dout:]
    b2s, b2p, b2o = b2[:, :H], b2[:, H:H + Dout], b2[:, H + Dout:]

    wp = [pad2(w1s, din_p, h_p, cdt), pad2(w1p, din_p, h_p, cdt),
          pad2(w1o, din_p, h_p, cdt), pad2(b1, 1, h_p, f32),
          pad2(w2s, h_p, h_p, cdt), pad2(w2p, h_p, dout_p, cdt),
          pad2(w2o, h_p, h_p, cdt), pad2(b2s, 1, h_p, f32),
          pad2(b2p, 1, dout_p, f32), pad2(b2o, 1, h_p, f32),
          pad2(w3, h_p, h_p, cdt), pad2(b3, 1, h_p, f32),
          pad2(w4, h_p, dout_p, cdt), pad2(b4, 1, dout_p, f32)]

    # Edge indices in both layouts; padded triples get index -1 so they never
    # gather real rows nor contribute to the scatter-add / counts.
    s_idx = edges[:, 0].astype(jnp.int32)
    o_idx = edges[:, 1].astype(jnp.int32)
    pad_idx = jnp.full((t_p - T,), -1, jnp.int32)
    s_full = jnp.concatenate([s_idx, pad_idx])
    o_full = jnp.concatenate([o_idx, pad_idx])
    s_col, o_col = s_full.reshape(t_p, 1), o_full.reshape(t_p, 1)
    s_row, o_row = s_full.reshape(1, t_p), o_full.reshape(1, t_p)

    const = lambda shape: pl.BlockSpec(shape, lambda t: (0, 0))
    in_specs = [
        pl.BlockSpec((t_tile, 1), lambda t: (t, 0)),       # s_idx column layout
        pl.BlockSpec((t_tile, 1), lambda t: (t, 0)),       # o_idx column layout
        pl.BlockSpec((1, t_tile), lambda t: (0, t)),       # s_idx row layout
        pl.BlockSpec((1, t_tile), lambda t: (0, t)),       # o_idx row layout
        const((o_p, din_p)),                               # obj (resident)
        pl.BlockSpec((t_tile, din_p), lambda t: (t, 0)),   # pred tile
    ] + [const(w.shape) for w in wp]

    out_specs = (
        pl.BlockSpec((o_p, dout_p), lambda t: (0, 0)),     # new_obj (last-step write)
        pl.BlockSpec((t_tile, dout_p), lambda t: (t, 0)),  # new_pred (lane-dense)
    )
    out_shape = (
        jax.ShapeDtypeStruct((o_p, dout_p), obj_vecs.dtype),
        jax.ShapeDtypeStruct((t_p, dout_p), pred_vecs.dtype),
    )

    # Advisory cost estimate + explicit VMEM budget (sized for 64 MiB-class v7x).
    csz = cdt.itemsize
    flops = (4 * t_p * o_p * din_p                       # one-hot gather matmuls
             + 6 * t_p * din_p * h_p                     # net1 layer 1
             + 2 * t_p * h_p * (2 * h_p + dout_p)        # net1 layer 2
             + 4 * t_p * o_p * h_p                       # scatter-add pooling
             + 2 * o_p * h_p * (h_p + dout_p))           # net2
    weight_bytes = sum(int(w.size) * w.dtype.itemsize for w in wp)
    bytes_accessed = (int(obj_p.size) * csz + int(pred_p.size) * csz + weight_bytes
                      + 8 * t_p + 4 * (o_p * dout_p + t_p * dout_p))
    cost = pl.CostEstimate(flops=int(flops), transcendentals=int(o_p),
                           bytes_accessed=int(bytes_accessed))

    tile_bytes = t_tile * (din_p * csz + dout_p * 4 + 8)
    resident_bytes = o_p * (din_p * csz + dout_p * 4 + h_p * 4 + 4)
    interm_bytes = (t_tile * o_p * (2 * csz + 8)
                    + t_tile * (2 * din_p + 4 * h_p + dout_p) * 4)
    vmem_needed = 2 * (weight_bytes + tile_bytes) + resident_bytes + interm_bytes
    vmem_limit = int(min(max(2 * vmem_needed, 32 * 1024 * 1024), 64 * 1024 * 1024))

    kernel = pl.pallas_call(
        _gtc_kernel,
        grid=(n_t,),
        in_specs=in_specs,
        out_specs=out_specs,
        out_shape=out_shape,
        scratch_shapes=[pltpu.VMEM((o_p, h_p), jnp.float32),   # pooled accumulator
                        pltpu.VMEM((o_p, 1), jnp.float32)],    # per-object counts
        compiler_params=pltpu.CompilerParams(
            # The pooled accumulator is carried across T tiles -> "arbitrary".
            dimension_semantics=("arbitrary",),
            vmem_limit_bytes=vmem_limit),
        cost_estimate=cost,
    )

    new_obj_p, new_pred_p = kernel(s_col, o_col, s_row, o_row, obj_p, pred_p, *wp)
    return new_obj_p[:O, :Dout], new_pred_p[:T, :Dout]


def init_params(key, Din, H, Dout):
    """Deterministic synthetic init: kaiming_normal weights, uniform biases."""
    ks = jax.random.split(key, 8)

    def kaiming(k, fan_in, shape):
        return jax.random.normal(k, shape, jnp.float32) * jnp.sqrt(2.0 / fan_in)

    def bias(k, fan_in, n):
        bound = 1.0 / jnp.sqrt(fan_in)
        return jax.random.uniform(k, (1, n), jnp.float32, -bound, bound)

    w1 = kaiming(ks[0], 3 * Din, (3 * Din, H))          # Linear(3*Din, H)
    b1 = bias(ks[1], 3 * Din, H)
    w2 = kaiming(ks[2], H, (H, 2 * H + Dout))           # Linear(H, 2H+Dout)
    b2 = bias(ks[3], H, 2 * H + Dout)
    w3 = kaiming(ks[4], H, (H, H))                      # net2 Linear(H, H)
    b3 = bias(ks[5], H, H)
    w4 = kaiming(ks[6], H, (H, Dout))                   # net2 Linear(H, Dout)
    b4 = bias(ks[7], H, Dout)
    w1s, w1p, w1o = w1[:Din], w1[Din:2 * Din], w1[2 * Din:]
    return (w1s, w1p, w1o, b1, w2, b2, w3, b3, w4, b4)


def reference(obj_vecs, pred_vecs, edges, params, H, Dout):
    """Pure-JAX reference mirroring the PyTorch forward exactly (f32)."""
    w1s, w1p, w1o, b1, w2, b2, w3, b3, w4, b4 = params
    s_idx = edges[:, 0]
    o_idx = edges[:, 1]
    cur_s = obj_vecs[s_idx]
    cur_o = obj_vecs[o_idx]
    w1 = jnp.concatenate([w1s, w1p, w1o], axis=0)
    t_in = jnp.concatenate([cur_s, pred_vecs, cur_o], axis=1)
    h1 = jax.nn.relu(t_in @ w1 + b1)
    t2 = jax.nn.relu(h1 @ w2 + b2)
    new_s, new_p, new_o = t2[:, :H], t2[:, H:H + Dout], t2[:, H + Dout:]
    O = obj_vecs.shape[0]
    pooled = jnp.zeros((O, H), jnp.float32).at[s_idx].add(new_s).at[o_idx].add(new_o)
    counts = jnp.zeros((O,), jnp.float32).at[s_idx].add(1.0).at[o_idx].add(1.0)
    counts = jnp.maximum(counts, 1.0)
    pooled = pooled / counts[:, None]
    new_obj = jax.nn.relu(jax.nn.relu(pooled @ w3 + b3) @ w4 + b4)
    return new_obj, new_p


if __name__ == "__main__":
    O, T = 24, 300               # objects, triples (T spans several 128-row tiles)
    Din, H, Dout = 32, 64, 32    # input_dim, hidden_dim, output_dim (padded to 128 lanes)

    key = jax.random.PRNGKey(0)
    k_obj, k_pred, k_edge, k_par = jax.random.split(key, 4)

    obj_vecs = jax.random.normal(k_obj, (O, Din), jnp.float32)
    pred_vecs = jax.random.normal(k_pred, (T, Din), jnp.float32)
    edges = jax.random.randint(k_edge, (T, 2), 0, O, jnp.int32)
    params = init_params(k_par, Din, H, Dout)

    ref_obj, ref_pred = reference(obj_vecs, pred_vecs, edges, params, H, Dout)

    # Strict structural check: f32 operands must match the reference tightly.
    obj_f32, pred_f32 = graph_triple_conv(obj_vecs, pred_vecs, edges, params, H, Dout,
                                          compute_dtype=jnp.float32)
    jax.block_until_ready((obj_f32, pred_f32))
    assert obj_f32.shape == (O, Dout) and pred_f32.shape == (T, Dout)
    assert jnp.allclose(obj_f32, ref_obj, atol=1e-4, rtol=1e-4)
    assert jnp.allclose(pred_f32, ref_pred, atol=1e-4, rtol=1e-4)

    # Fast path: bf16 matmul operands with f32 accumulation -> bf16-level tolerance
    # (the f32 run above is the exactness check; this validates the perf path).
    obj_bf, pred_bf = graph_triple_conv(obj_vecs, pred_vecs, edges, params, H, Dout,
                                        compute_dtype=jnp.bfloat16)
    jax.block_until_ready((obj_bf, pred_bf))
    assert jnp.allclose(obj_bf, ref_obj, atol=1e-1, rtol=1e-1)
    assert jnp.allclose(pred_bf, ref_pred, atol=1e-1, rtol=1e-1)

    print("KERNEL_OK")
</pallas_src>

<mosaic_0001>
module attributes {stable_mosaic.version = 11 : i64} {
  func.func @_gtc_kernel(%arg0: i32, %arg1: memref<128x1xi32, #tpu.memory_space<vmem>>, %arg2: memref<128x1xi32, #tpu.memory_space<vmem>>, %arg3: memref<1x128xi32, #tpu.memory_space<vmem>>, %arg4: memref<1x128xi32, #tpu.memory_space<vmem>>, %arg5: memref<24x128xf32, #tpu.memory_space<vmem>>, %arg6: memref<128x128xf32, #tpu.memory_space<vmem>>, %arg7: memref<128x128xf32, #tpu.memory_space<vmem>>, %arg8: memref<128x128xf32, #tpu.memory_space<vmem>>, %arg9: memref<128x128xf32, #tpu.memory_space<vmem>>, %arg10: memref<1x128xf32, #tpu.memory_space<vmem>>, %arg11: memref<128x128xf32, #tpu.memory_space<vmem>>, %arg12: memref<128x128xf32, #tpu.memory_space<vmem>>, %arg13: memref<128x128xf32, #tpu.memory_space<vmem>>, %arg14: memref<1x128xf32, #tpu.memory_space<vmem>>, %arg15: memref<1x128xf32, #tpu.memory_space<vmem>>, %arg16: memref<1x128xf32, #tpu.memory_space<vmem>>, %arg17: memref<128x128xf32, #tpu.memory_space<vmem>>, %arg18: memref<1x128xf32, #tpu.memory_space<vmem>>, %arg19: memref<128x128xf32, #tpu.memory_space<vmem>>, %arg20: memref<1x128xf32, #tpu.memory_space<vmem>>, %arg21: memref<24x128xf32, #tpu.memory_space<vmem>>, %arg22: memref<128x128xf32, #tpu.memory_space<vmem>>, %arg23: memref<24x128xf32, #tpu.memory_space<vmem>>, %arg24: memref<24x1xf32, #tpu.memory_space<vmem>>) attributes {dimension_semantics = [#tpu.dimension_semantics<arbitrary>], iteration_bounds = array<i64: 3>, scalar_prefetch = 0 : i64, scratch_operands = 2 : i64, tpu.core_type = #tpu.core_type<tc>, window_params = [{transform_indices = @transform_0, window_bounds = array<i64: 128, 1>}, {transform_indices = @transform_1, window_bounds = array<i64: 128, 1>}, {transform_indices = @transform_2, window_bounds = array<i64: 1, 128>}, {transform_indices = @transform_3, window_bounds = array<i64: 1, 128>}, {pipeline_mode = #tpu.pipeline_mode<synchronous>, transform_indices = @transform_4, window_bounds = array<i64: 24, 128>}, {transform_indices = @transform_5, window_bounds = array<i64: 128, 128>}, {pipeline_mode = #tpu.pipeline_mode<synchronous>, transform_indices = @transform_6, window_bounds = array<i64: 128, 128>}, {pipeline_mode = #tpu.pipeline_mode<synchronous>, transform_indices = @transform_7, window_bounds = array<i64: 128, 128>}, {pipeline_mode = #tpu.pipeline_mode<synchronous>, transform_indices = @transform_8, window_bounds = array<i64: 128, 128>}, {pipeline_mode = #tpu.pipeline_mode<synchronous>, transform_indices = @transform_9, window_bounds = array<i64: 1, 128>}, {pipeline_mode = #tpu.pipeline_mode<synchronous>, transform_indices = @transform_10, window_bounds = array<i64: 128, 128>}, {pipeline_mode = #tpu.pipeline_mode<synchronous>, transform_indices = @transform_11, window_bounds = array<i64: 128, 128>}, {pipeline_mode = #tpu.pipeline_mode<synchronous>, transform_indices = @transform_12, window_bounds = array<i64: 128, 128>}, {pipeline_mode = #tpu.pipeline_mode<synchronous>, transform_indices = @transform_13, window_bounds = array<i64: 1, 128>}, {pipeline_mode = #tpu.pipeline_mode<synchronous>, transform_indices = @transform_14, window_bounds = array<i64: 1, 128>}, {pipeline_mode = #tpu.pipeline_mode<synchronous>, transform_indices = @transform_15, window_bounds = array<i64: 1, 128>}, {pipeline_mode = #tpu.pipeline_mode<synchronous>, transform_indices = @transform_16, window_bounds = array<i64: 128, 128>}, {pipeline_mode = #tpu.pipeline_mode<synchronous>, transform_indices = @transform_17, window_bounds = array<i64: 1, 128>}, {pipeline_mode = #tpu.pipeline_mode<synchronous>, transform_indices = @transform_18, window_bounds = array<i64: 128, 128>}, {pipeline_mode = #tpu.pipeline_mode<synchronous>, transform_indices = @transform_19, window_bounds = array<i64: 1, 128>}, {pipeline_mode = #tpu.pipeline_mode<synchronous>, transform_indices = @transform_20, window_bounds = array<i64: 24, 128>}, {transform_indices = @transform_21, window_bounds = array<i64: 128, 128>}]} {
    %c0_i32 = arith.constant 0 : i32
    %0 = arith.cmpi eq, %arg0, %c0_i32 : i32
    %1 = arith.extui %0 : i1 to i32
    %c0_i32_0 = arith.constant 0 : i32
    %2 = arith.cmpi ne, %1, %c0_i32_0 : i32
    scf.if %2 {
      %cst_57 = arith.constant 0.000000e+00 : f32
      %79 = vector.broadcast %cst_57 : f32 to vector<24x128xf32>
      %c0_58 = arith.constant 0 : index
      %c0_59 = arith.constant 0 : index
      %80 = vector.load %arg23[%c0_58, %c0_59] : memref<24x128xf32, #tpu.memory_space<vmem>>, vector<24x128xf32>
      tpu.vector_store %arg23[%c0_58, %c0_59], %79 {strides = array<i32>} : memref<24x128xf32, #tpu.memory_space<vmem>>, vector<24x128xf32>,
      %cst_60 = arith.constant 0.000000e+00 : f32
      %81 = vector.broadcast %cst_60 : f32 to vector<24x1xf32>
      %c0_61 = arith.constant 0 : index
      %c0_62 = arith.constant 0 : index
      %82 = vector.load %arg24[%c0_61, %c0_62] : memref<24x1xf32, #tpu.memory_space<vmem>>, vector<24x1xf32>
      tpu.vector_store %arg24[%c0_61, %c0_62], %81 {strides = array<i32>} : memref<24x1xf32, #tpu.memory_space<vmem>>, vector<24x1xf32>,
    } else {
    }
    %c0 = arith.constant 0 : index
    %c0_1 = arith.constant 0 : index
    %3 = vector.load %arg1[%c0, %c0_1] : memref<128x1xi32, #tpu.memory_space<vmem>>, vector<128x1xi32>
    %c0_2 = arith.constant 0 : index
    %c0_3 = arith.constant 0 : index
    %4 = vector.load %arg2[%c0_2, %c0_3] : memref<128x1xi32, #tpu.memory_space<vmem>>, vector<128x1xi32>
    %5 = tpu.iota {dimensions = array<i32: 1>} : vector<128x24xi32>
    %6 = vector.broadcast %3 : vector<128x1xi32> to vector<128x24xi32>
    %7 = arith.cmpi eq, %5, %6 : vector<128x24xi32>
    %8 = arith.extui %7 : vector<128x24xi1> to vector<128x24xi32>
    %9 = arith.sitofp %8 : vector<128x24xi32> to vector<128x24xf32>
    %10 = vector.broadcast %4 : vector<128x1xi32> to vector<128x24xi32>
    %11 = arith.cmpi eq, %5, %10 : vector<128x24xi32>
    %12 = arith.extui %11 : vector<128x24xi1> to vector<128x24xi32>
    %13 = arith.sitofp %12 : vector<128x24xi32> to vector<128x24xf32>
    %c0_4 = arith.constant 0 : index
    %c0_5 = arith.constant 0 : index
    %14 = vector.load %arg5[%c0_4, %c0_5] : memref<24x128xf32, #tpu.memory_space<vmem>>, vector<24x128xf32>
    %c0_6 = arith.constant 0 : index
    %c0_7 = arith.constant 0 : index
    %15 = vector.load %arg6[%c0_6, %c0_7] : memref<128x128xf32, #tpu.memory_space<vmem>>, vector<128x128xf32>
    %cst = arith.constant dense<0.000000e+00> : vector<128x128xf32>
    %16 = tpu.matmul %9, %14, %cst {dimension_numbers = #tpu.dot_dimension_numbers<[1], [0], [0], [1], [0, 0, 1, 1], [], []>} : vector<128x24xf32>, vector<24x128xf32>, vector<128x128xf32> -> vector<128x128xf32>
    %cst_8 = arith.constant dense<0.000000e+00> : vector<128x128xf32>
    %17 = tpu.matmul %13, %14, %cst_8 {dimension_numbers = #tpu.dot_dimension_numbers<[1], [0], [0], [1], [0, 0, 1, 1], [], []>} : vector<128x24xf32>, vector<24x128xf32>, vector<128x128xf32> -> vector<128x128xf32>
    %c0_9 = arith.constant 0 : index
    %c0_10 = arith.constant 0 : index
    %18 = vector.load %arg7[%c0_9, %c0_10] : memref<128x128xf32, #tpu.memory_space<vmem>>, vector<128x128xf32>
    %cst_11 = arith.constant dense<0.000000e+00> : vector<128x128xf32>
    %19 = tpu.matmul %16, %18, %cst_11 {dimension_numbers = #tpu.dot_dimension_numbers<[1], [0], [0], [1], [0, 0, 1, 1], [], []>} : vector<128x128xf32>, vector<128x128xf32>, vector<128x128xf32> -> vector<128x128xf32>
    %c0_12 = arith.constant 0 : index
    %c0_13 = arith.constant 0 : index
    %20 = vector.load %arg8[%c0_12, %c0_13] : memref<128x128xf32, #tpu.memory_space<vmem>>, vector<128x128xf32>
    %cst_14 = arith.constant dense<0.000000e+00> : vector<128x128xf32>
    %21 = tpu.matmul %15, %20, %cst_14 {dimension_numbers = #tpu.dot_dimension_numbers<[1], [0], [0], [1], [0, 0, 1, 1], [], []>} : vector<128x128xf32>, vector<128x128xf32>, vector<128x128xf32> -> vector<128x128xf32>
    %22 = arith.addf %19, %21 : vector<128x128xf32>
    %c0_15 = arith.constant 0 : index
    %c0_16 = arith.constant 0 : index
    %23 = vector.load %arg9[%c0_15, %c0_16] : memref<128x128xf32, #tpu.memory_space<vmem>>, vector<128x128xf32>
    %cst_17 = arith.constant dense<0.000000e+00> : vector<128x128xf32>
    %24 = tpu.matmul %17, %23, %cst_17 {dimension_numbers = #tpu.dot_dimension_numbers<[1], [0], [0], [1], [0, 0, 1, 1], [], []>} : vector<128x128xf32>, vector<128x128xf32>, vector<128x128xf32> -> vector<128x128xf32>
    %25 = arith.addf %22, %24 : vector<128x128xf32>
    %c0_18 = arith.constant 0 : index
    %c0_19 = arith.constant 0 : index
    %26 = vector.load %arg10[%c0_18, %c0_19] : memref<1x128xf32, #tpu.memory_space<vmem>>, vector<1x128xf32>
    %27 = vector.broadcast %26 : vector<1x128xf32> to vector<128x128xf32>
    %28 = arith.addf %25, %27 : vector<128x128xf32>
    %cst_20 = arith.constant 0.000000e+00 : f32
    %29 = vector.broadcast %cst_20 : f32 to vector<128x128xf32>
    %30 = arith.maximumf %28, %29 : vector<128x128xf32>
    %c0_21 = arith.constant 0 : index
    %c0_22 = arith.constant 0 : index
    %31 = vector.load %arg11[%c0_21, %c0_22] : memref<128x128xf32, #tpu.memory_space<vmem>>, vector<128x128xf32>
    %cst_23 = arith.constant dense<0.000000e+00> : vector<128x128xf32>
    %32 = tpu.matmul %30, %31, %cst_23 {dimension_numbers = #tpu.dot_dimension_numbers<[1], [0], [0], [1], [0, 0, 1, 1], [], []>} : vector<128x128xf32>, vector<128x128xf32>, vector<128x128xf32> -> vector<128x128xf32>
    %c0_24 = arith.constant 0 : index
    %c0_25 = arith.constant 0 : index
    %33 = vector.load %arg14[%c0_24, %c0_25] : memref<1x128xf32, #tpu.memory_space<vmem>>, vector<1x128xf32>
    %34 = vector.broadcast %33 : vector<1x128xf32> to vector<128x128xf32>
    %35 = arith.addf %32, %34 : vector<128x128xf32>
    %cst_26 = arith.constant 0.000000e+00 : f32
    %36 = vector.broadcast %cst_26 : f32 to vector<128x128xf32>
    %37 = arith.maximumf %35, %36 : vector<128x128xf32>
    %c0_27 = arith.constant 0 : index
    %c0_28 = arith.constant 0 : index
    %38 = vector.load %arg12[%c0_27, %c0_28] : memref<128x128xf32, #tpu.memory_space<vmem>>, vector<128x128xf32>
    %cst_29 = arith.constant dense<0.000000e+00> : vector<128x128xf32>
    %39 = tpu.matmul %30, %38, %cst_29 {dimension_numbers = #tpu.dot_dimension_numbers<[1], [0], [0], [1], [0, 0, 1, 1], [], []>} : vector<128x128xf32>, vector<128x128xf32>, vector<128x128xf32> -> vector<128x128xf32>
    %c0_30 = arith.constant 0 : index
    %c0_31 = arith.constant 0 : index
    %40 = vector.load %arg15[%c0_30, %c0_31] : memref<1x128xf32, #tpu.memory_space<vmem>>, vector<1x128xf32>
    %41 = vector.broadcast %40 : vector<1x128xf32> to vector<128x128xf32>
    %42 = arith.addf %39, %41 : vector<128x128xf32>
    %cst_32 = arith.constant 0.000000e+00 : f32
    %43 = vector.broadcast %cst_32 : f32 to vector<128x128xf32>
    %44 = arith.maximumf %42, %43 : vector<128x128xf32>
    %c0_33 = arith.constant 0 : index
    %c0_34 = arith.constant 0 : index
    %45 = vector.load %arg13[%c0_33, %c0_34] : memref<128x128xf32, #tpu.memory_space<vmem>>, vector<128x128xf32>
    %cst_35 = arith.constant dense<0.000000e+00> : vector<128x128xf32>
    %46 = tpu.matmul %30, %45, %cst_35 {dimension_numbers = #tpu.dot_dimension_numbers<[1], [0], [0], [1], [0, 0, 1, 1], [], []>} : vector<128x128xf32>, vector<128x128xf32>, vector<128x128xf32> -> vector<128x128xf32>
    %c0_36 = arith.constant 0 : index
    %c0_37 = arith.constant 0 : index
    %47 = vector.load %arg16[%c0_36, %c0_37] : memref<1x128xf32, #tpu.memory_space<vmem>>, vector<1x128xf32>
    %48 = vector.broadcast %47 : vector<1x128xf32> to vector<128x128xf32>
    %49 = arith.addf %46, %48 : vector<128x128xf32>
    %cst_38 = arith.constant 0.000000e+00 : f32
    %50 = vector.broadcast %cst_38 : f32 to vector<128x128xf32>
    %51 = arith.maximumf %49, %50 : vector<128x128xf32>
    %c0_39 = arith.constant 0 : index
    %c0_40 = arith.constant 0 : index
    %52 = vector.load %arg22[%c0_39, %c0_40] : memref<128x128xf32, #tpu.memory_space<vmem>>, vector<128x128xf32>
    tpu.vector_store %arg22[%c0_39, %c0_40], %44 {strides = array<i32>} : memref<128x128xf32, #tpu.memory_space<vmem>>, vector<128x128xf32>,
    %c0_41 = arith.constant 0 : index
    %c0_42 = arith.constant 0 : index
    %53 = vector.load %arg23[%c0_41, %c0_42] : memref<24x128xf32, #tpu.memory_space<vmem>>, vector<24x128xf32>
    %cst_43 = arith.constant dense<0.000000e+00> : vector<24x128xf32>
    %54 = tpu.matmul %9, %37, %cst_43 {dimension_numbers = #tpu.dot_dimension_numbers<[0], [0], [1], [1], [0, 1, 1, 1], [], []>} : vector<128x24xf32>, vector<128x128xf32>, vector<24x128xf32> -> vector<24x128xf32>
    %cst_44 = arith.constant dense<0.000000e+00> : vector<24x128xf32>
    %55 = tpu.matmul %13, %51, %cst_44 {dimension_numbers = #tpu.dot_dimension_numbers<[0], [0], [1], [1], [0, 1, 1, 1], [], []>} : vector<128x24xf32>, vector<128x128xf32>, vector<24x128xf32> -> vector<24x128xf32>
    %56 = arith.addf %54, %55 : vector<24x128xf32>
    %57 = arith.addf %53, %56 : vector<24x128xf32>
    %c0_45 = arith.constant 0 : index
    %c0_46 = arith.constant 0 : index
    %58 = vector.load %arg23[%c0_45, %c0_46] : memref<24x128xf32, #tpu.memory_space<vmem>>, vector<24x128xf32>
    tpu.vector_store %arg23[%c0_45, %c0_46], %57 {strides = array<i32>} : memref<24x128xf32, #tpu.memory_space<vmem>>, vector<24x128xf32>,
    %c0_47 = arith.constant 0 : index
    %c0_48 = arith.constant 0 : index
    %59 = vector.load %arg3[%c0_47, %c0_48] : memref<1x128xi32, #tpu.memory_space<vmem>>, vector<1x128xi32>
    %c0_49 = arith.constant 0 : index
    %c0_50 = arith.constant 0 : index
    %60 = vector.load %arg4[%c0_49, %c0_50] : memref<1x128xi32, #tpu.memory_space<vmem>>, vector<1x128xi32>
    %61 = tpu.iota {dimensions = array<i32: 0>} : vector<24x128xi32>
    %62 = vector.broadcast %59 : vector<1x128xi32> to vector<24x128xi32>
    %63 = arith.cmpi eq, %61, %62 : vector<24x128xi32>
    %64 = arith.extui %63 : vector<24x128xi1> to vector<24x128xi32>
    %65 = arith.sitofp %64 : vector<24x128xi32> to vector<24x128xf32>
    %66 = vector.broadcast %60 : vector<1x128xi32> to vector<24x128xi32>
    %67 = arith.cmpi eq, %61, %66 : vector<24x128xi32>
    %68 = arith.extui %67 : vector<24x128xi1> to vector<24x128xi32>
    %69 = arith.sitofp %68 : vector<24x128xi32> to vector<24x128xf32>
    %70 = arith.addf %65, %69 : vector<24x128xf32>
    %c0_51 = arith.constant 0 : index
    %c0_52 = arith.constant 0 : index
    %71 = vector.load %arg24[%c0_51, %c0_52] : memref<24x1xf32, #tpu.memory_space<vmem>>, vector<24x1xf32>
    %cst_53 = arith.constant dense<0.000000e+00> : vector<24xf32>
    %72 = vector.multi_reduction <add>, %70, %cst_53 [1] : vector<24x128xf32> to vector<24xf32>
    %73 = vector.shape_cast %72 : vector<24xf32> to vector<24x1xf32>
    %74 = arith.addf %71, %73 : vector<24x1xf32>
    %c0_54 = arith.constant 0 : index
    %c0_55 = arith.constant 0 : index
    %75 = vector.load %arg24[%c0_54, %c0_55] : memref<24x1xf32, #tpu.memory_space<vmem>>, vector<24x1xf32>
    tpu.vector_store %arg24[%c0_54, %c0_55], %74 {strides = array<i32>} : memref<24x1xf32, #tpu.memory_space<vmem>>, vector<24x1xf32>,
    %c2_i32 = arith.constant 2 : i32
    %76 = arith.cmpi eq, %arg0, %c2_i32 : i32
    %77 = arith.extui %76 : i1 to i32
    %c0_i32_56 = arith.constant 0 : i32
    %78 = arith.cmpi ne, %77, %c0_i32_56 : i32
    scf.if %78 {
      %c0_57 = arith.constant 0 : index
      %c0_58 = arith.constant 0 : index
      %79 = vector.load %arg24[%c0_57, %c0_58] : memref<24x1xf32, #tpu.memory_space<vmem>>, vector<24x1xf32>
      %cst_59 = arith.constant 1.000000e+00 : f32
      %80 = vector.broadcast %cst_59 : f32 to vector<24x1xf32>
      %81 = arith.maximumf %79, %80 : vector<24x1xf32>
      %82 = tpu.reciprocal %81 : vector<24x1xf32> -> vector<24x1xf32>
      %c0_60 = arith.constant 0 : index
      %c0_61 = arith.constant 0 : index
      %83 = vector.load %arg23[%c0_60, %c0_61] : memref<24x128xf32, #tpu.memory_space<vmem>>, vector<24x128xf32>
      %84 = vector.broadcast %82 : vector<24x1xf32> to vector<24x128xf32>
      %85 = arith.mulf %83, %84 : vector<24x128xf32>
      %c0_62 = arith.constant 0 : index
      %c0_63 = arith.constant 0 : index
      %86 = vector.load %arg17[%c0_62, %c0_63] : memref<128x128xf32, #tpu.memory_space<vmem>>, vector<128x128xf32>
      %cst_64 = arith.constant dense<0.000000e+00> : vector<24x128xf32>
      %87 = tpu.matmul %85, %86, %cst_64 {dimension_numbers = #tpu.dot_dimension_numbers<[1], [0], [0], [1], [0, 0, 1, 1], [], []>} : vector<24x128xf32>, vector<128x128xf32>, vector<24x128xf32> -> vector<24x128xf32>
      %c0_65 = arith.constant 0 : index
      %c0_66 = arith.constant 0 : index
      %88 = vector.load %arg18[%c0_65, %c0_66] : memref<1x128xf32, #tpu.memory_space<vmem>>, vector<1x128xf32>
      %89 = vector.broadcast %88 : vector<1x128xf32> to vector<24x128xf32>
      %90 = arith.addf %87, %89 : vector<24x128xf32>
      %cst_67 = arith.constant 0.000000e+00 : f32
      %91 = vector.broadcast %cst_67 : f32 to vector<24x128xf32>
      %92 = arith.maximumf %90, %91 : vector<24x128xf32>
      %c0_68 = arith.constant 0 : index
      %c0_69 = arith.constant 0 : index
      %93 = vector.load %arg19[%c0_68, %c0_69] : memref<128x128xf32, #tpu.memory_space<vmem>>, vector<128x128xf32>
      %cst_70 = arith.constant dense<0.000000e+00> : vector<24x128xf32>
      %94 = tpu.matmul %92, %93, %cst_70 {dimension_numbers = #tpu.dot_dimension_numbers<[1], [0], [0], [1], [0, 0, 1, 1], [], []>} : vector<24x128xf32>, vector<128x128xf32>, vector<24x128xf32> -> vector<24x128xf32>
      %c0_71 = arith.constant 0 : index
      %c0_72 = arith.constant 0 : index
      %95 = vector.load %arg20[%c0_71, %c0_72] : memref<1x128xf32, #tpu.memory_space<vmem>>, vector<1x128xf32>
      %96 = vector.broadcast %95 : vector<1x128xf32> to vector<24x128xf32>
      %97 = arith.addf %94, %96 : vector<24x128xf32>
      %cst_73 = arith.constant 0.000000e+00 : f32
      %98 = vector.broadcast %cst_73 : f32 to vector<24x128xf32>
      %99 = arith.maximumf %97, %98 : vector<24x128xf32>
      %c0_74 = arith.constant 0 : index
      %c0_75 = arith.constant 0 : index
      %100 = vector.load %arg21[%c0_74, %c0_75] : memref<24x128xf32, #tpu.memory_space<vmem>>, vector<24x128xf32>
      tpu.vector_store %arg21[%c0_74, %c0_75], %99 {strides = array<i32>} : memref<24x128xf32, #tpu.memory_space<vmem>>, vector<24x128xf32>,
    } else {
    }
    return
  }
  func.func @transform_0(%arg0: i32) -> (i32, i32) {
    %c0_i32 = arith.constant 0 : i32
    %c0_i32_0 = arith.constant 0 : i32
    return %arg0, %c0_i32 : i32, i32
  }
  func.func @transform_1(%arg0: i32) -> (i32, i32) {
    %c0_i32 = arith.constant 0 : i32
    %c0_i32_0 = arith.constant 0 : i32
    return %arg0, %c0_i32 : i32, i32
  }
  func.func @transform_2(%arg0: i32) -> (i32, i32) {
    %c0_i32 = arith.constant 0 : i32
    %c0_i32_0 = arith.constant 0 : i32
    return %c0_i32, %arg0 : i32, i32
  }
  func.func @transform_3(%arg0: i32) -> (i32, i32) {
    %c0_i32 = arith.constant 0 : i32
    %c0_i32_0 = arith.constant 0 : i32
    return %c0_i32, %arg0 : i32, i32
  }
  func.func @transform_4(%arg0: i32) -> (i32, i32) {
    %c0_i32 = arith.constant 0 : i32
    %c0_i32_0 = arith.constant 0 : i32
    %c0_i32_1 = arith.constant 0 : i32
    return %c0_i32, %c0_i32_0 : i32, i32
  }
  func.func @transform_5(%arg0: i32) -> (i32, i32) {
    %c0_i32 = arith.constant 0 : i32
    %c0_i32_0 = arith.constant 0 : i32
    return %arg0, %c0_i32 : i32, i32
  }
  func.func @transform_6(%arg0: i32) -> (i32, i32) {
    %c0_i32 = arith.constant 0 : i32
    %c0_i32_0 = arith.constant 0 : i32
    %c0_i32_1 = arith.constant 0 : i32
    return %c0_i32, %c0_i32_0 : i32, i32
  }
  func.func @transform_7(%arg0: i32) -> (i32, i32) {
    %c0_i32 = arith.constant 0 : i32
    %c0_i32_0 = arith.constant 0 : i32
    %c0_i32_1 = arith.constant 0 : i32
    return %c0_i32, %c0_i32_0 : i32, i32
  }
  func.func @transform_8(%arg0: i32) -> (i32, i32) {
    %c0_i32 = arith.constant 0 : i32
    %c0_i32_0 = arith.constant 0 : i32
    %c0_i32_1 = arith.constant 0 : i32
    return %c0_i32, %c0_i32_0 : i32, i32
  }
  func.func @transform_9(%arg0: i32) -> (i32, i32) {
    %c0_i32 = arith.constant 0 : i32
    %c0_i32_0 = arith.constant 0 : i32
    %c0_i32_1 = arith.constant 0 : i32
    return %c0_i32, %c0_i32_0 : i32, i32
  }
  func.func @transform_10(%arg0: i32) -> (i32, i32) {
    %c0_i32 = arith.constant 0 : i32
    %c0_i32_0 = arith.constant 0 : i32
    %c0_i32_1 = arith.constant 0 : i32
    return %c0_i32, %c0_i32_0 : i32, i32
  }
  func.func @transform_11(%arg0: i32) -> (i32, i32) {
    %c0_i32 = arith.constant 0 : i32
    %c0_i32_0 = arith.constant 0 : i32
    %c0_i32_1 = arith.constant 0 : i32
    return %c0_i32, %c0_i32_0 : i32, i32
  }
  func.func @transform_12(%arg0: i32) -> (i32, i32) {
    %c0_i32 = arith.constant 0 : i32
    %c0_i32_0 = arith.constant 0 : i32
    %c0_i32_1 = arith.constant 0 : i32
    return %c0_i32, %c0_i32_0 : i32, i32
  }
  func.func @transform_13(%arg0: i32) -> (i32, i32) {
    %c0_i32 = arith.constant 0 : i32
    %c0_i32_0 = arith.constant 0 : i32
    %c0_i32_1 = arith.constant 0 : i32
    return %c0_i32, %c0_i32_0 : i32, i32
  }
  func.func @transform_14(%arg0: i32) -> (i32, i32) {
    %c0_i32 = arith.constant 0 : i32
    %c0_i32_0 = arith.constant 0 : i32
    %c0_i32_1 = arith.constant 0 : i32
    return %c0_i32, %c0_i32_0 : i32, i32
  }
  func.func @transform_15(%arg0: i32) -> (i32, i32) {
    %c0_i32 = arith.constant 0 : i32
    %c0_i32_0 = arith.constant 0 : i32
    %c0_i32_1 = arith.constant 0 : i32
    return %c0_i32, %c0_i32_0 : i32, i32
  }
  func.func @transform_16(%arg0: i32) -> (i32, i32) {
    %c0_i32 = arith.constant 0 : i32
    %c0_i32_0 = arith.constant 0 : i32
    %c0_i32_1 = arith.constant 0 : i32
    return %c0_i32, %c0_i32_0 : i32, i32
  }
  func.func @transform_17(%arg0: i32) -> (i32, i32) {
    %c0_i32 = arith.constant 0 : i32
    %c0_i32_0 = arith.constant 0 : i32
    %c0_i32_1 = arith.constant 0 : i32
    return %c0_i32, %c0_i32_0 : i32, i32
  }
  func.func @transform_18(%arg0: i32) -> (i32, i32) {
    %c0_i32 = arith.constant 0 : i32
    %c0_i32_0 = arith.constant 0 : i32
    %c0_i32_1 = arith.constant 0 : i32
    return %c0_i32, %c0_i32_0 : i32, i32
  }
  func.func @transform_19(%arg0: i32) -> (i32, i32) {
    %c0_i32 = arith.constant 0 : i32
    %c0_i32_0 = arith.constant 0 : i32
    %c0_i32_1 = arith.constant 0 : i32
    return %c0_i32, %c0_i32_0 : i32, i32
  }
  func.func @transform_20(%arg0: i32) -> (i32, i32) {
    %c0_i32 = arith.constant 0 : i32
    %c0_i32_0 = arith.constant 0 : i32
    %c0_i32_1 = arith.constant 0 : i32
    return %c0_i32, %c0_i32_0 : i32, i32
  }
  func.func @transform_21(%arg0: i32) -> (i32, i32) {
    %c0_i32 = arith.constant 0 : i32
    %c0_i32_0 = arith.constant 0 : i32
    return %arg0, %c0_i32 : i32, i32
  }
}

</mosaic_0001>

<llo_original>
// kernel: tpu_custom_call.1
$region0: #{tpu_custom_call.1}
  #allocation0 [shape = 'u32[]', space=smem, size = 0x4, offset = 0x4, fixed_abs, tag = 'smem constant byte address 0x4 - core index']
  #allocation1 [shape = 'u32[144,128]{1,0:T(1,128)}', space=vmem, size = 0x12000, scoped, tag = 'internal scratch']
  #allocation2 [shape = 'f32[24,128]{1,0:T(8,128)}', space=vmem, size = 0x3000, scoped, tag = 'scratch operand']
  #allocation3 [shape = 'f32[24,1]{1,0:T(8,128)}', space=vmem, size = 0x3000, scoped, tag = 'scratch operand']
  %s0 = inlined_call_operand.vmem [shape: s32[384,1], index: 0, kind: input, shape index: {}]
  %s1 = inlined_call_operand.vmem [shape: s32[384,1], index: 1, kind: input, shape index: {}]
  %s2 = inlined_call_operand.vmem [shape: s32[1,384], index: 2, kind: input, shape index: {}]
  %s3 = inlined_call_operand.vmem [shape: s32[1,384], index: 3, kind: input, shape index: {}]
  %s4 = inlined_call_operand.hbm [shape: f32[24,128], index: 4, kind: input, shape index: {}]
  %s5 = inlined_call_operand.vmem [shape: f32[384,128], index: 5, kind: input, shape index: {}]
  %s6 = inlined_call_operand.vmem [shape: f32[128,128], index: 6, kind: input, shape index: {}]
  %s7 = inlined_call_operand.vmem [shape: f32[128,128], index: 7, kind: input, shape index: {}]
  %s8 = inlined_call_operand.vmem [shape: f32[128,128], index: 8, kind: input, shape index: {}]
  %s9 = inlined_call_operand.vmem [shape: f32[1,128], index: 9, kind: input, shape index: {}]
  %s10 = inlined_call_operand.hbm [shape: f32[128,128], index: 10, kind: input, shape index: {}]
  %s11 = inlined_call_operand.hbm [shape: f32[128,128], index: 11, kind: input, shape index: {}]
  %s12 = inlined_call_operand.hbm [shape: f32[128,128], index: 12, kind: input, shape index: {}]
  %s13 = inlined_call_operand.vmem [shape: f32[1,128], index: 13, kind: input, shape index: {}]
  %s14 = inlined_call_operand.vmem [shape: f32[1,128], index: 14, kind: input, shape index: {}]
  %s15 = inlined_call_operand.vmem [shape: f32[1,128], index: 15, kind: input, shape index: {}]
  %s16 = inlined_call_operand.hbm [shape: f32[128,128], index: 16, kind: input, shape index: {}]
  %s17 = inlined_call_operand.vmem [shape: f32[1,128], index: 17, kind: input, shape index: {}]
  %s18 = inlined_call_operand.hbm [shape: f32[128,128], index: 18, kind: input, shape index: {}]
  %s19 = inlined_call_operand.vmem [shape: f32[1,128], index: 19, kind: input, shape index: {}]
  %s20 = inlined_call_operand.hbm [shape: f32[24,128], index: 20, kind: output, shape index: {0}]
  %s21 = inlined_call_operand.hbm [shape: f32[384,128], index: 21, kind: output, shape index: {1}]
  %22 = xla_tuple %s20, %s21
  %s23 = sld [smem:[#allocation0]]
  $region153: #{tpu_custom_call.1} parent=0
    _
  %s25 = ssub.s32 1, %s23
  %s26 = scalar_select 0, %s25, %s23
  $region1: #{tpu_custom_call.1} parent=0
    #allocation4 [shape = 'u8[12288]{0}', space=vmem, size = 0x3000, scoped, tag = 'input window, operand 4, single buffered']
    #allocation5 [shape = 's32[2]{0}', space=sflag, size = 0x8, scoped, tag = 'scoped memory for tpu_custom_call.1']
    #allocation6 [shape = 's32[2]{0}', space=sflag, size = 0x8, scoped, tag = 'scoped memory for tpu_custom_call.1']
    #allocation7 [shape = 'u8[65536]{0}', space=vmem, size = 0x10000, scoped, tag = 'input window, operand 10, single buffered']
    #allocation8 [shape = 's32[1]{0}', space=sflag, size = 0x4, scoped, tag = 'scoped memory for tpu_custom_call.1']
    #allocation9 [shape = 'u8[65536]{0}', space=vmem, size = 0x10000, scoped, tag = 'input window, operand 11, single buffered']
    #allocation10 [shape = 'u8[65536]{0}', space=vmem, size = 0x10000, scoped, tag = 'input window, operand 12, single buffered']
    #allocation11 [shape = 's32[1]{0}', space=sflag, size = 0x4, scoped, tag = 'scoped memory for tpu_custom_call.1']
    #allocation12 [shape = 'u8[65536]{0}', space=vmem, size = 0x10000, scoped, tag = 'input window, operand 16, single buffered']
    #allocation13 [shape = 'u8[65536]{0}', space=vmem, size = 0x10000, scoped, tag = 'input window, operand 18, single buffered']
    #allocation14 [shape = 's32[1]{0}', space=sflag, size = 0x4, scoped, tag = 'scoped memory for tpu_custom_call.1']
    #allocation15 [shape = 'u8[12288]{0}', space=vmem, size = 0x3000, scoped, tag = 'output window, operand 0, single buffered']
    #allocation16 [shape = 'u8[131072]{0}', space=vmem, size = 0x20000, scoped, tag = 'output window, operand 1']
    #allocation17 [shape = 's32[2]{0}', space=sflag, size = 0x8, scoped, tag = 'scoped memory for tpu_custom_call.1']
    %27 = vsyncpa [#allocation5], 0
    %28 = vsyncpa [#allocation8], 0
    %29 = vsyncpa [#allocation11], 0
    %30 = vsyncpa [#allocation14], 0
    %31 = vsyncpa [#allocation6], 0
    %32 = vsyncpa [#allocation17], 0
    %s33 = scalar_lea.sflag [#allocation17], 1
    %34 = vsyncpa %s33, 0
    loop: start=0, step=1, limit=5
    $region2: #{tpu_custom_call.1} parent=1 // loop_pre_header
      _
    $region3: #{tpu_custom_call.1} parent=1 // loop_header
      %s36 = sphi 0, %s40
      %p37 = scmp.ge.s32.totalorder %s36, 5
      %s46 = sphi 0, %s48
      %s49 = sphi 0, %s46
      %s50 = sphi 0, %s49
      %s66 = sphi 0, %s50
      %s72 = sphi 0, %s74
      %s75 = sphi 0, %s72
      %s76 = sphi 0, %s75
      %s92 = sphi 0, %s76
      %s98 = sphi 0, %s100
      %s101 = sphi 0, %s98
      %s102 = sphi 0, %s101
      %s118 = sphi 0, %s102
      %s124 = sphi 0, %s126
      %s127 = sphi 0, %s124
      %s128 = sphi 0, %s127
      %s144 = sphi 0, %s128
      %s148 = sphi 0, %s148
      %s150 = sphi 0, %s148
      %s151 = sphi 0, %s150
      %s165 = sphi 0, %s151
      %s171 = sphi 0, %s173
      %s174 = sphi 0, %s171
      %s175 = sphi 0, %s174
      %s191 = sphi 0, %s175
      %s195 = sphi 0, %s195
      %s197 = sphi 0, %s195
      %s198 = sphi 0, %s197
      %s212 = sphi 0, %s198
      %s216 = sphi 0, %s216
      %s218 = sphi 0, %s216
      %s219 = sphi 0, %s218
      %s233 = sphi 0, %s219
      %s237 = sphi 0, %s237
      %s239 = sphi 0, %s237
      %s240 = sphi 0, %s239
      %s254 = sphi 0, %s240
      %s258 = sphi 0, %s258
      %s260 = sphi 0, %s258
      %s261 = sphi 0, %s260
      %s275 = sphi 0, %s261
      %s279 = sphi 0, %s279
      %s281 = sphi 0, %s279
      %s282 = sphi 0, %s281
      %s296 = sphi 0, %s282
      %s300 = sphi 0, %s300
      %s302 = sphi 0, %s300
      %s303 = sphi 0, %s302
      %s317 = sphi 0, %s303
      %s321 = sphi 0, %s321
      %s323 = sphi 0, %s321
      %s324 = sphi 0, %s323
      %s338 = sphi 0, %s324
      %s342 = sphi 0, %s342
      %s344 = sphi 0, %s342
      %s345 = sphi 0, %s344
      %s359 = sphi 0, %s345
      %s363 = sphi 0, %s363
      %s365 = sphi 0, %s363
      %s366 = sphi 0, %s365
      %s380 = sphi 0, %s366
      %s384 = sphi 0, %s384
      %s386 = sphi 0, %s384
      %s387 = sphi 0, %s386
      %s401 = sphi 0, %s387
      %s405 = sphi 0, %s405
      %s407 = sphi 0, %s405
      %s408 = sphi 0, %s407
      %s422 = sphi 0, %s408
      %s426 = sphi 0, %s426
      %s428 = sphi 0, %s426
      %s429 = sphi 0, %s428
      %s443 = sphi 0, %s429
      %s447 = sphi 0, %s447
      %s449 = sphi 0, %s447
      %s450 = sphi 0, %s449
      %s464 = sphi 0, %s450
      %s468 = sphi 0, %s468
      %s470 = sphi 0, %s468
      %s471 = sphi 0, %s470
      %s485 = sphi 0, %s471
      %s489 = sphi 0, %s489
      %s491 = sphi 0, %s489
      %s492 = sphi 0, %s491
      %s506 = sphi 0, %s492
      %s512 = sphi 0, %s514
      %s515 = sphi 0, %s512
      %s516 = sphi 0, %s515
      %s532 = sphi 0, %s516
    $region4: #{tpu_custom_call.1} parent=1 // loop_header_branch
      %39 = sbr.rel (%p37) target = $region8
    $region5: #{tpu_custom_call.1} parent=1 // loop_body
      %s41 = ssub.s32 %s36, 1
      %s42 = ssub.s32 %s36, 2
      %s43 = sadd.s32 %s36, 1
      %s44 = ssub.s32 %s36, %s43
      %p45 = scmp.eq.s32.totalorder %s44, 0
      %s47 = sadd.s32 %s46, 1
      %s48 = scalar_select %p45, %s46, %s47
      %p51 = pneg %p45
      %p52 = scmp.eq.s32.totalorder %s36, 2
      %p53 = por %p51, %p52
      %p54 = scmp.ne.s32.totalorder %s46, %s49
      %p55 = scmp.eq.s32.totalorder %s36, 0
      %p56 = por %p54, %p55
      %p57 = scmp.ne.s32.totalorder %s46, %s49
      %p58 = scmp.eq.s32.totalorder %s41, 2
      %p59 = por %p57, %p58
      %p60 = scmp.ne.s32.totalorder %s49, %s50
      %p61 = scmp.eq.s32.totalorder %s41, 0
      %p62 = por %p60, %p61
      %p63 = scmp.ne.s32.totalorder %s49, %s50
      %p64 = scmp.eq.s32.totalorder %s42, 2
      %p65 = por %p63, %p64
      %p67 = scmp.ne.s32.totalorder %s50, %s66
      %p68 = scmp.eq.s32.totalorder %s42, 0
      %p69 = por %p67, %p68
      %s70 = ssub.s32 %s36, %s43
      %p71 = scmp.eq.s32.totalorder %s70, 0
      %s73 = sadd.s32 %s72, 1
      %s74 = scalar_select %p71, %s72, %s73
      %p77 = pneg %p71
      %p78 = scmp.eq.s32.totalorder %s36, 2
      %p79 = por %p77, %p78
      %p80 = scmp.ne.s32.totalorder %s72, %s75
      %p81 = scmp.eq.s32.totalorder %s36, 0
      %p82 = por %p80, %p81
      %p83 = scmp.ne.s32.totalorder %s72, %s75
      %p84 = scmp.eq.s32.totalorder %s41, 2
      %p85 = por %p83, %p84
      %p86 = scmp.ne.s32.totalorder %s75, %s76
      %p87 = scmp.eq.s32.totalorder %s41, 0
      %p88 = por %p86, %p87
      %p89 = scmp.ne.s32.totalorder %s75, %s76
      %p90 = scmp.eq.s32.totalorder %s42, 2
      %p91 = por %p89, %p90
      %p93 = scmp.ne.s32.totalorder %s76, %s92
      %p94 = scmp.eq.s32.totalorder %s42, 0
      %p95 = por %p93, %p94
      %s96 = ssub.s32 %s36, %s43
      %p97 = scmp.eq.s32.totalorder %s96, 0
      %s99 = sadd.s32 %s98, 1
      %s100 = scalar_select %p97, %s98, %s99
      %p103 = pneg %p97
      %p104 = scmp.eq.s32.totalorder %s36, 2
      %p105 = por %p103, %p104
      %p106 = scmp.ne.s32.totalorder %s98, %s101
      %p107 = scmp.eq.s32.totalorder %s36, 0
      %p108 = por %p106, %p107
      %p109 = scmp.ne.s32.totalorder %s98, %s101
      %p110 = scmp.eq.s32.totalorder %s41, 2
      %p111 = por %p109, %p110
      %p112 = scmp.ne.s32.totalorder %s101, %s102
      %p113 = scmp.eq.s32.totalorder %s41, 0
      %p114 = por %p112, %p113
      %p115 = scmp.ne.s32.totalorder %s101, %s102
      %p116 = scmp.eq.s32.totalorder %s42, 2
      %p117 = por %p115, %p116
      %p119 = scmp.ne.s32.totalorder %s102, %s118
      %p120 = scmp.eq.s32.totalorder %s42, 0
      %p121 = por %p119, %p120
      %s122 = ssub.s32 %s36, %s43
      %p123 = scmp.eq.s32.totalorder %s122, 0
      %s125 = sadd.s32 %s124, 1
      %s126 = scalar_select %p123, %s124, %s125
      %p129 = pneg %p123
      %p130 = scmp.eq.s32.totalorder %s36, 2
      %p131 = por %p129, %p130
      %p132 = scmp.ne.s32.totalorder %s124, %s127
      %p133 = scmp.eq.s32.totalorder %s36, 0
      %p134 = por %p132, %p133
      %p135 = scmp.ne.s32.totalorder %s124, %s127
      %p136 = scmp.eq.s32.totalorder %s41, 2
      %p137 = por %p135, %p136
      %p138 = scmp.ne.s32.totalorder %s127, %s128
      %p139 = scmp.eq.s32.totalorder %s41, 0
      %p140 = por %p138, %p139
      %p141 = scmp.ne.s32.totalorder %s127, %s128
      %p142 = scmp.eq.s32.totalorder %s42, 2
      %p143 = por %p141, %p142
      %p145 = scmp.ne.s32.totalorder %s128, %s144
      %p146 = scmp.eq.s32.totalorder %s42, 0
      %p147 = por %p145, %p146
      %s149 = sadd.s32 %s148, 1
      %p152 = scmp.eq.s32.totalorder %s36, 2
      %p153 = scmp.ne.s32.totalorder %s148, %s150
      %p154 = scmp.eq.s32.totalorder %s36, 0
      %p155 = por %p153, %p154
      %p156 = scmp.ne.s32.totalorder %s148, %s150
      %p157 = scmp.eq.s32.totalorder %s41, 2
      %p158 = por %p156, %p157
      %p159 = scmp.ne.s32.totalorder %s150, %s151
      %p160 = scmp.eq.s32.totalorder %s41, 0
      %p161 = por %p159, %p160
      %p162 = scmp.ne.s32.totalorder %s150, %s151
      %p163 = scmp.eq.s32.totalorder %s42, 2
      %p164 = por %p162, %p163
      %p166 = scmp.ne.s32.totalorder %s151, %s165
      %p167 = scmp.eq.s32.totalorder %s42, 0
      %p168 = por %p166, %p167
      %s169 = ssub.s32 %s36, %s43
      %p170 = scmp.eq.s32.totalorder %s169, 0
      %s172 = sadd.s32 %s171, 1
      %s173 = scalar_select %p170, %s171, %s172
      %p176 = pneg %p170
      %p177 = scmp.eq.s32.totalorder %s36, 2
      %p178 = por %p176, %p177
      %p179 = scmp.ne.s32.totalorder %s171, %s174
      %p180 = scmp.eq.s32.totalorder %s36, 0
      %p181 = por %p179, %p180
      %p182 = scmp.ne.s32.totalorder %s171, %s174
      %p183 = scmp.eq.s32.totalorder %s41, 2
      %p184 = por %p182, %p183
      %p185 = scmp.ne.s32.totalorder %s174, %s175
      %p186 = scmp.eq.s32.totalorder %s41, 0
      %p187 = por %p185, %p186
      %p188 = scmp.ne.s32.totalorder %s174, %s175
      %p189 = scmp.eq.s32.totalorder %s42, 2
      %p190 = por %p188, %p189
      %p192 = scmp.ne.s32.totalorder %s175, %s191
      %p193 = scmp.eq.s32.totalorder %s42, 0
      %p194 = por %p192, %p193
      %s196 = sadd.s32 %s195, 1
      %p199 = scmp.eq.s32.totalorder %s36, 2
      %p200 = scmp.ne.s32.totalorder %s195, %s197
      %p201 = scmp.eq.s32.totalorder %s36, 0
      %p202 = por %p200, %p201
      %p203 = scmp.ne.s32.totalorder %s195, %s197
      %p204 = scmp.eq.s32.totalorder %s41, 2
      %p205 = por %p203, %p204
      %p206 = scmp.ne.s32.totalorder %s197, %s198
      %p207 = scmp.eq.s32.totalorder %s41, 0
      %p208 = por %p206, %p207
      %p209 = scmp.ne.s32.totalorder %s197, %s198
      %p210 = scmp.eq.s32.totalorder %s42, 2
      %p211 = por %p209, %p210
      %p213 = scmp.ne.s32.totalorder %s198, %s212
      %p214 = scmp.eq.s32.totalorder %s42, 0
      %p215 = por %p213, %p214
      %s217 = sadd.s32 %s216, 1
      %p220 = scmp.eq.s32.totalorder %s36, 2
      %p221 = scmp.ne.s32.totalorder %s216, %s218
      %p222 = scmp.eq.s32.totalorder %s36, 0
      %p223 = por %p221, %p222
      %p224 = scmp.ne.s32.totalorder %s216, %s218
      %p225 = scmp.eq.s32.totalorder %s41, 2
      %p226 = por %p224, %p225
      %p227 = scmp.ne.s32.totalorder %s218, %s219
      %p228 = scmp.eq.s32.totalorder %s41, 0
      %p229 = por %p227, %p228
      %p230 = scmp.ne.s32.totalorder %s218, %s219
      %p231 = scmp.eq.s32.totalorder %s42, 2
      %p232 = por %p230, %p231
      %p234 = scmp.ne.s32.totalorder %s219, %s233
      %p235 = scmp.eq.s32.totalorder %s42, 0
      %p236 = por %p234, %p235
      %s238 = sadd.s32 %s237, 1
      %p241 = scmp.eq.s32.totalorder %s36, 2
      %p242 = scmp.ne.s32.totalorder %s237, %s239
      %p243 = scmp.eq.s32.totalorder %s36, 0
      %p244 = por %p242, %p243
      %p245 = scmp.ne.s32.totalorder %s237, %s239
      %p246 = scmp.eq.s32.totalorder %s41, 2
      %p247 = por %p245, %p246
      %p248 = scmp.ne.s32.totalorder %s239, %s240
      %p249 = scmp.eq.s32.totalorder %s41, 0
      %p250 = por %p248, %p249
      %p251 = scmp.ne.s32.totalorder %s239, %s240
      %p252 = scmp.eq.s32.totalorder %s42, 2
      %p253 = por %p251, %p252
      %p255 = scmp.ne.s32.totalorder %s240, %s254
      %p256 = scmp.eq.s32.totalorder %s42, 0
      %p257 = por %p255, %p256
      %s259 = sadd.s32 %s258, 1
      %p262 = scmp.eq.s32.totalorder %s36, 2
      %p263 = scmp.ne.s32.totalorder %s258, %s260
      %p264 = scmp.eq.s32.totalorder %s36, 0
      %p265 = por %p263, %p264
      %p266 = scmp.ne.s32.totalorder %s258, %s260
      %p267 = scmp.eq.s32.totalorder %s41, 2
      %p268 = por %p266, %p267
      %p269 = scmp.ne.s32.totalorder %s260, %s261
      %p270 = scmp.eq.s32.totalorder %s41, 0
      %p271 = por %p269, %p270
      %p272 = scmp.ne.s32.totalorder %s260, %s261
      %p273 = scmp.eq.s32.totalorder %s42, 2
      %p274 = por %p272, %p273
      %p276 = scmp.ne.s32.totalorder %s261, %s275
      %p277 = scmp.eq.s32.totalorder %s42, 0
      %p278 = por %p276, %p277
      %s280 = sadd.s32 %s279, 1
      %p283 = scmp.eq.s32.totalorder %s36, 2
      %p284 = scmp.ne.s32.totalorder %s279, %s281
      %p285 = scmp.eq.s32.totalorder %s36, 0
      %p286 = por %p284, %p285
      %p287 = scmp.ne.s32.totalorder %s279, %s281
      %p288 = scmp.eq.s32.totalorder %s41, 2
      %p289 = por %p287, %p288
      %p290 = scmp.ne.s32.totalorder %s281, %s282
      %p291 = scmp.eq.s32.totalorder %s41, 0
      %p292 = por %p290, %p291
      %p293 = scmp.ne.s32.totalorder %s281, %s282
      %p294 = scmp.eq.s32.totalorder %s42, 2
      %p295 = por %p293, %p294
      %p297 = scmp.ne.s32.totalorder %s282, %s296
      %p298 = scmp.eq.s32.totalorder %s42, 0
      %p299 = por %p297, %p298
      %s301 = sadd.s32 %s300, 1
      %p304 = scmp.eq.s32.totalorder %s36, 2
      %p305 = scmp.ne.s32.totalorder %s300, %s302
      %p306 = scmp.eq.s32.totalorder %s36, 0
      %p307 = por %p305, %p306
      %p308 = scmp.ne.s32.totalorder %s300, %s302
      %p309 = scmp.eq.s32.totalorder %s41, 2
      %p310 = por %p308, %p309
      %p311 = scmp.ne.s32.totalorder %s302, %s303
      %p312 = scmp.eq.s32.totalorder %s41, 0
      %p313 = por %p311, %p312
      %p314 = scmp.ne.s32.totalorder %s302, %s303
      %p315 = scmp.eq.s32.totalorder %s42, 2
      %p316 = por %p314, %p315
      %p318 = scmp.ne.s32.totalorder %s303, %s317
      %p319 = scmp.eq.s32.totalorder %s42, 0
      %p320 = por %p318, %p319
      %s322 = sadd.s32 %s321, 1
      %p325 = scmp.eq.s32.totalorder %s36, 2
      %p326 = scmp.ne.s32.totalorder %s321, %s323
      %p327 = scmp.eq.s32.totalorder %s36, 0
      %p328 = por %p326, %p327
      %p329 = scmp.ne.s32.totalorder %s321, %s323
      %p330 = scmp.eq.s32.totalorder %s41, 2
      %p331 = por %p329, %p330
      %p332 = scmp.ne.s32.totalorder %s323, %s324
      %p333 = scmp.eq.s32.totalorder %s41, 0
      %p334 = por %p332, %p333
      %p335 = scmp.ne.s32.totalorder %s323, %s324
      %p336 = scmp.eq.s32.totalorder %s42, 2
      %p337 = por %p335, %p336
      %p339 = scmp.ne.s32.totalorder %s324, %s338
      %p340 = scmp.eq.s32.totalorder %s42, 0
      %p341 = por %p339, %p340
      %s343 = sadd.s32 %s342, 1
      %p346 = scmp.eq.s32.totalorder %s36, 2
      %p347 = scmp.ne.s32.totalorder %s342, %s344
      %p348 = scmp.eq.s32.totalorder %s36, 0
      %p349 = por %p347, %p348
      %p350 = scmp.ne.s32.totalorder %s342, %s344
      %p351 = scmp.eq.s32.totalorder %s41, 2
      %p352 = por %p350, %p351
      %p353 = scmp.ne.s32.totalorder %s344, %s345
      %p354 = scmp.eq.s32.totalorder %s41, 0
      %p355 = por %p353, %p354
      %p356 = scmp.ne.s32.totalorder %s344, %s345
      %p357 = scmp.eq.s32.totalorder %s42, 2
      %p358 = por %p356, %p357
      %p360 = scmp.ne.s32.totalorder %s345, %s359
      %p361 = scmp.eq.s32.totalorder %s42, 0
      %p362 = por %p360, %p361
      %s364 = sadd.s32 %s363, 1
      %p367 = scmp.eq.s32.totalorder %s36, 2
      %p368 = scmp.ne.s32.totalorder %s363, %s365
      %p369 = scmp.eq.s32.totalorder %s36, 0
      %p370 = por %p368, %p369
      %p371 = scmp.ne.s32.totalorder %s363, %s365
      %p372 = scmp.eq.s32.totalorder %s41, 2
      %p373 = por %p371, %p372
      %p374 = scmp.ne.s32.totalorder %s365, %s366
      %p375 = scmp.eq.s32.totalorder %s41, 0
      %p376 = por %p374, %p375
      %p377 = scmp.ne.s32.totalorder %s365, %s366
      %p378 = scmp.eq.s32.totalorder %s42, 2
      %p379 = por %p377, %p378
      %p381 = scmp.ne.s32.totalorder %s366, %s380
      %p382 = scmp.eq.s32.totalorder %s42, 0
      %p383 = por %p381, %p382
      %s385 = sadd.s32 %s384, 1
      %p388 = scmp.eq.s32.totalorder %s36, 2
      %p389 = scmp.ne.s32.totalorder %s384, %s386
      %p390 = scmp.eq.s32.totalorder %s36, 0
      %p391 = por %p389, %p390
      %p392 = scmp.ne.s32.totalorder %s384, %s386
      %p393 = scmp.eq.s32.totalorder %s41, 2
      %p394 = por %p392, %p393
      %p395 = scmp.ne.s32.totalorder %s386, %s387
      %p396 = scmp.eq.s32.totalorder %s41, 0
      %p397 = por %p395, %p396
      %p398 = scmp.ne.s32.totalorder %s386, %s387
      %p399 = scmp.eq.s32.totalorder %s42, 2
      %p400 = por %p398, %p399
      %p402 = scmp.ne.s32.totalorder %s387, %s401
      %p403 = scmp.eq.s32.totalorder %s42, 0
      %p404 = por %p402, %p403
      %s406 = sadd.s32 %s405, 1
      %p409 = scmp.eq.s32.totalorder %s36, 2
      %p410 = scmp.ne.s32.totalorder %s405, %s407
      %p411 = scmp.eq.s32.totalorder %s36, 0
      %p412 = por %p410, %p411
      %p413 = scmp.ne.s32.totalorder %s405, %s407
      %p414 = scmp.eq.s32.totalorder %s41, 2
      %p415 = por %p413, %p414
      %p416 = scmp.ne.s32.totalorder %s407, %s408
      %p417 = scmp.eq.s32.totalorder %s41, 0
      %p418 = por %p416, %p417
      %p419 = scmp.ne.s32.totalorder %s407, %s408
      %p420 = scmp.eq.s32.totalorder %s42, 2
      %p421 = por %p419, %p420
      %p423 = scmp.ne.s32.totalorder %s408, %s422
      %p424 = scmp.eq.s32.totalorder %s42, 0
      %p425 = por %p423, %p424
      %s427 = sadd.s32 %s426, 1
      %p430 = scmp.eq.s32.totalorder %s36, 2
      %p431 = scmp.ne.s32.totalorder %s426, %s428
      %p432 = scmp.eq.s32.totalorder %s36, 0
      %p433 = por %p431, %p432
      %p434 = scmp.ne.s32.totalorder %s426, %s428
      %p435 = scmp.eq.s32.totalorder %s41, 2
      %p436 = por %p434, %p435
      %p437 = scmp.ne.s32.totalorder %s428, %s429
      %p438 = scmp.eq.s32.totalorder %s41, 0
      %p439 = por %p437, %p438
      %p440 = scmp.ne.s32.totalorder %s428, %s429
      %p441 = scmp.eq.s32.totalorder %s42, 2
      %p442 = por %p440, %p441
      %p444 = scmp.ne.s32.totalorder %s429, %s443
      %p445 = scmp.eq.s32.totalorder %s42, 0
      %p446 = por %p444, %p445
      %s448 = sadd.s32 %s447, 1
      %p451 = scmp.eq.s32.totalorder %s36, 2
      %p452 = scmp.ne.s32.totalorder %s447, %s449
      %p453 = scmp.eq.s32.totalorder %s36, 0
      %p454 = por %p452, %p453
      %p455 = scmp.ne.s32.totalorder %s447, %s449
      %p456 = scmp.eq.s32.totalorder %s41, 2
      %p457 = por %p455, %p456
      %p458 = scmp.ne.s32.totalorder %s449, %s450
      %p459 = scmp.eq.s32.totalorder %s41, 0
      %p460 = por %p458, %p459
      %p461 = scmp.ne.s32.totalorder %s449, %s450
      %p462 = scmp.eq.s32.totalorder %s42, 2
      %p463 = por %p461, %p462
      %p465 = scmp.ne.s32.totalorder %s450, %s464
      %p466 = scmp.eq.s32.totalorder %s42, 0
      %p467 = por %p465, %p466
      %s469 = sadd.s32 %s468, 1
      %p472 = scmp.eq.s32.totalorder %s36, 2
      %p473 = scmp.ne.s32.totalorder %s468, %s470
      %p474 = scmp.eq.s32.totalorder %s36, 0
      %p475 = por %p473, %p474
      %p476 = scmp.ne.s32.totalorder %s468, %s470
      %p477 = scmp.eq.s32.totalorder %s41, 2
      %p478 = por %p476, %p477
      %p479 = scmp.ne.s32.totalorder %s470, %s471
      %p480 = scmp.eq.s32.totalorder %s41, 0
      %p481 = por %p479, %p480
      %p482 = scmp.ne.s32.totalorder %s470, %s471
      %p483 = scmp.eq.s32.totalorder %s42, 2
      %p484 = por %p482, %p483
      %p486 = scmp.ne.s32.totalorder %s471, %s485
      %p487 = scmp.eq.s32.totalorder %s42, 0
      %p488 = por %p486, %p487
      %s490 = sadd.s32 %s489, 1
      %p493 = scmp.eq.s32.totalorder %s36, 2
      %p494 = scmp.ne.s32.totalorder %s489, %s491
      %p495 = scmp.eq.s32.totalorder %s36, 0
      %p496 = por %p494, %p495
      %p497 = scmp.ne.s32.totalorder %s489, %s491
      %p498 = scmp.eq.s32.totalorder %s41, 2
      %p499 = por %p497, %p498
      %p500 = scmp.ne.s32.totalorder %s491, %s492
      %p501 = scmp.eq.s32.totalorder %s41, 0
      %p502 = por %p500, %p501
      %p503 = scmp.ne.s32.totalorder %s491, %s492
      %p504 = scmp.eq.s32.totalorder %s42, 2
      %p505 = por %p503, %p504
      %p507 = scmp.ne.s32.totalorder %s492, %s506
      %p508 = scmp.eq.s32.totalorder %s42, 0
      %p509 = por %p507, %p508
      %s510 = ssub.s32 %s36, %s43
      %p511 = scmp.eq.s32.totalorder %s510, 0
      %s513 = sadd.s32 %s512, 1
      %s514 = scalar_select %p511, %s512, %s513
      %p517 = pneg %p511
      %p518 = scmp.eq.s32.totalorder %s36, 2
      %p519 = por %p517, %p518
      %p520 = scmp.ne.s32.totalorder %s512, %s515
      %p521 = scmp.eq.s32.totalorder %s36, 0
      %p522 = por %p520, %p521
      %p523 = scmp.ne.s32.totalorder %s512, %s515
      %p524 = scmp.eq.s32.totalorder %s41, 2
      %p525 = por %p523, %p524
      %p526 = scmp.ne.s32.totalorder %s515, %s516
      %p527 = scmp.eq.s32.totalorder %s41, 0
      %p528 = por %p526, %p527
      %p529 = scmp.ne.s32.totalorder %s515, %s516
      %p530 = scmp.eq.s32.totalorder %s42, 2
      %p531 = por %p529, %p530
      %p533 = scmp.ne.s32.totalorder %s516, %s532
      %p534 = scmp.eq.s32.totalorder %s42, 0
      %p535 = por %p533, %p534
      %p536 = scmp.le.s32.totalorder 1, %s36
      %p537 = scmp.lt.s32.totalorder %s36, 4
      %p538 = pnand %p536, %p537
      %p539 = pneg %p538
      // Predicated region
      $region9: #{tpu_custom_call.1} parent=5 // pred_check
        _
      $region10: #{tpu_custom_call.1} parent=5 // pred_check_branch
        %541 = sbr.rel (%p538) target = $region12
      $region11: #{tpu_custom_call.1} parent=5 // pred_region
        %s542 = ssub.s32 %s36, 1
        // Predicated region
        $region13: #{tpu_custom_call.1} parent=11 // pred_check
          %p543 = pneg %p161
        $region14: #{tpu_custom_call.1} parent=11 // pred_check_branch
          %545 = sbr.rel (%p543) target = $region16
        $region15: #{tpu_custom_call.1} parent=11 // pred_region
          %s547 = ssub.s32 384, 384
          %548 = vsyncadd [#allocation5], %s547
          %s549 = sshll.u32 [#allocation4], 4
          %s550 = int_to_ptr.vmem [resolvable:$true] %s549
          %555 = dma.hbm_to_vmem [thread:$0]  %s4, 384, %s550, [#allocation5], 128, 128, 8
        $region16: #{tpu_custom_call.1} parent=11 // pred_fallthru
          _
        // Predicated region
        $region17: #{tpu_custom_call.1} parent=11 // pred_check
          %p556 = pneg %p208
        $region18: #{tpu_custom_call.1} parent=11 // pred_check_branch
          %558 = sbr.rel (%p556) target = $region20
        $region19: #{tpu_custom_call.1} parent=11 // pred_region
          _
        $region20: #{tpu_custom_call.1} parent=11 // pred_fallthru
          _
        // Predicated region
        $region21: #{tpu_custom_call.1} parent=11 // pred_check
          %p559 = pneg %p229
        $region22: #{tpu_custom_call.1} parent=11 // pred_check_branch
          %561 = sbr.rel (%p559) target = $region24
        $region23: #{tpu_custom_call.1} parent=11 // pred_region
          _
        $region24: #{tpu_custom_call.1} parent=11 // pred_fallthru
          _
        // Predicated region
        $region25: #{tpu_custom_call.1} parent=11 // pred_check
          %p562 = pneg %p250
        $region26: #{tpu_custom_call.1} parent=11 // pred_check_branch
          %564 = sbr.rel (%p562) target = $region28
        $region27: #{tpu_custom_call.1} parent=11 // pred_region
          _
        $region28: #{tpu_custom_call.1} parent=11 // pred_fallthru
          _
        // Predicated region
        $region29: #{tpu_custom_call.1} parent=11 // pred_check
          %p565 = pneg %p271
        $region30: #{tpu_custom_call.1} parent=11 // pred_check_branch
          %567 = sbr.rel (%p565) target = $region32
        $region31: #{tpu_custom_call.1} parent=11 // pred_region
          _
        $region32: #{tpu_custom_call.1} parent=11 // pred_fallthru
          _
        // Predicated region
        $region33: #{tpu_custom_call.1} parent=11 // pred_check
          %p568 = pneg %p292
        $region34: #{tpu_custom_call.1} parent=11 // pred_check_branch
          %570 = sbr.rel (%p568) target = $region36
        $region35: #{tpu_custom_call.1} parent=11 // pred_region
          %s572 = ssub.s32 2048, 2048
          %573 = vsyncadd [#allocation8], %s572
          %s574 = sshll.u32 [#allocation7], 4
          %s575 = int_to_ptr.vmem [resolvable:$true] %s574
          %580 = dma.hbm_to_vmem [thread:$0]  %s10, 2048, %s575, [#allocation8], 128, 128, 8
        $region36: #{tpu_custom_call.1} parent=11 // pred_fallthru
          _
        // Predicated region
        $region37: #{tpu_custom_call.1} parent=11 // pred_check
          %p581 = pneg %p313
        $region38: #{tpu_custom_call.1} parent=11 // pred_check_branch
          %583 = sbr.rel (%p581) target = $region40
        $region39: #{tpu_custom_call.1} parent=11 // pred_region
          %s585 = ssub.s32 2048, 2048
          %586 = vsyncadd [#allocation8], %s585
          %s587 = sshll.u32 [#allocation9], 4
          %s588 = int_to_ptr.vmem [resolvable:$true] %s587
          %593 = dma.hbm_to_vmem [thread:$0]  %s11, 2048, %s588, [#allocation8], 128, 128, 8
        $region40: #{tpu_custom_call.1} parent=11 // pred_fallthru
          _
        // Predicated region
        $region41: #{tpu_custom_call.1} parent=11 // pred_check
          %p594 = pneg %p334
        $region42: #{tpu_custom_call.1} parent=11 // pred_check_branch
          %596 = sbr.rel (%p594) target = $region44
        $region43: #{tpu_custom_call.1} parent=11 // pred_region
          %s598 = ssub.s32 2048, 2048
          %599 = vsyncadd [#allocation11], %s598
          %s600 = sshll.u32 [#allocation10], 4
          %s601 = int_to_ptr.vmem [resolvable:$true] %s600
          %606 = dma.hbm_to_vmem [thread:$0]  %s12, 2048, %s601, [#allocation11], 128, 128, 8
        $region44: #{tpu_custom_call.1} parent=11 // pred_fallthru
          _
        // Predicated region
        $region45: #{tpu_custom_call.1} parent=11 // pred_check
          %p607 = pneg %p355
        $region46: #{tpu_custom_call.1} parent=11 // pred_check_branch
          %609 = sbr.rel (%p607) target = $region48
        $region47: #{tpu_custom_call.1} parent=11 // pred_region
          _
        $region48: #{tpu_custom_call.1} parent=11 // pred_fallthru
          _
        // Predicated region
        $region49: #{tpu_custom_call.1} parent=11 // pred_check
          %p610 = pneg %p376
        $region50: #{tpu_custom_call.1} parent=11 // pred_check_branch
          %612 = sbr.rel (%p610) target = $region52
        $region51: #{tpu_custom_call.1} parent=11 // pred_region
          _
        $region52: #{tpu_custom_call.1} parent=11 // pred_fallthru
          _
        // Predicated region
        $region53: #{tpu_custom_call.1} parent=11 // pred_check
          %p613 = pneg %p397
        $region54: #{tpu_custom_call.1} parent=11 // pred_check_branch
          %615 = sbr.rel (%p613) target = $region56
        $region55: #{tpu_custom_call.1} parent=11 // pred_region
          _
        $region56: #{tpu_custom_call.1} parent=11 // pred_fallthru
          _
        // Predicated region
        $region57: #{tpu_custom_call.1} parent=11 // pred_check
          %p616 = pneg %p418
        $region58: #{tpu_custom_call.1} parent=11 // pred_check_branch
          %618 = sbr.rel (%p616) target = $region60
        $region59: #{tpu_custom_call.1} parent=11 // pred_region
          %s620 = ssub.s32 2048, 2048
          %621 = vsyncadd [#allocation11], %s620
          %s622 = sshll.u32 [#allocation12], 4
          %s623 = int_to_ptr.vmem [resolvable:$true] %s622
          %628 = dma.hbm_to_vmem [thread:$0]  %s16, 2048, %s623, [#allocation11], 128, 128, 8
        $region60: #{tpu_custom_call.1} parent=11 // pred_fallthru
          _
        // Predicated region
        $region61: #{tpu_custom_call.1} parent=11 // pred_check
          %p629 = pneg %p439
        $region62: #{tpu_custom_call.1} parent=11 // pred_check_branch
          %631 = sbr.rel (%p629) target = $region64
        $region63: #{tpu_custom_call.1} parent=11 // pred_region
          _
        $region64: #{tpu_custom_call.1} parent=11 // pred_fallthru
          _
        // Predicated region
        $region65: #{tpu_custom_call.1} parent=11 // pred_check
          %p632 = pneg %p460
        $region66: #{tpu_custom_call.1} parent=11 // pred_check_branch
          %634 = sbr.rel (%p632) target = $region68
        $region67: #{tpu_custom_call.1} parent=11 // pred_region
          %s636 = ssub.s32 2048, 2048
          %637 = vsyncadd [#allocation14], %s636
          %s638 = sshll.u32 [#allocation13], 4
          %s639 = int_to_ptr.vmem [resolvable:$true] %s638
          %644 = dma.hbm_to_vmem [thread:$0]  %s18, 2048, %s639, [#allocation14], 128, 128, 8
        $region68: #{tpu_custom_call.1} parent=11 // pred_fallthru
          _
        // Predicated region
        $region69: #{tpu_custom_call.1} parent=11 // pred_check
          %p645 = pneg %p481
        $region70: #{tpu_custom_call.1} parent=11 // pred_check_branch
          %647 = sbr.rel (%p645) target = $region72
        $region71: #{tpu_custom_call.1} parent=11 // pred_region
          _
        $region72: #{tpu_custom_call.1} parent=11 // pred_fallthru
          _
      $region12: #{tpu_custom_call.1} parent=5 // pred_fallthru
        _
      %p648 = scmp.lt.s32.totalorder %s36, 3
      // Predicated region
      $region73: #{tpu_custom_call.1} parent=5 // pred_check
        %p649 = pneg %p648
      $region74: #{tpu_custom_call.1} parent=5 // pred_check_branch
        %651 = sbr.rel (%p649) target = $region76
      $region75: #{tpu_custom_call.1} parent=5 // pred_region
        // Predicated region
        $region77: #{tpu_custom_call.1} parent=75 // pred_check
          %p652 = pneg %p56
        $region78: #{tpu_custom_call.1} parent=75 // pred_check_branch
          %654 = sbr.rel (%p652) target = $region80
        $region79: #{tpu_custom_call.1} parent=75 // pred_region
          %s655 = smul.u32 16, %s36
          %p656 = scmp.lt.s32.totalorder %s655, 47
          %s657 = scalar_select %p656, %s655, 47
          %s658 = smul.addr %s657, 8
          %s659 = scalar_lea.vmem %s0, %s658
          %s660 = smul.u32 16, %s36
        $region80: #{tpu_custom_call.1} parent=75 // pred_fallthru
          _
        // Predicated region
        $region81: #{tpu_custom_call.1} parent=75 // pred_check
          %p661 = pneg %p82
        $region82: #{tpu_custom_call.1} parent=75 // pred_check_branch
          %663 = sbr.rel (%p661) target = $region84
        $region83: #{tpu_custom_call.1} parent=75 // pred_region
          %s664 = smul.u32 16, %s36
          %p665 = scmp.lt.s32.totalorder %s664, 47
          %s666 = scalar_select %p665, %s664, 47
          %s667 = smul.addr %s666, 8
          %s668 = scalar_lea.vmem %s1, %s667
          %s669 = smul.u32 16, %s36
        $region84: #{tpu_custom_call.1} parent=75 // pred_fallthru
          _
        // Predicated region
        $region85: #{tpu_custom_call.1} parent=75 // pred_check
          %p670 = pneg %p108
        $region86: #{tpu_custom_call.1} parent=75 // pred_check_branch
          %672 = sbr.rel (%p670) target = $region88
        $region87: #{tpu_custom_call.1} parent=75 // pred_region
          %p673 = scmp.lt.s32.totalorder %s36, 2
          %s674 = scalar_select %p673, %s36, 2
          %s675 = scalar_lea.vmem %s2, %s674
        $region88: #{tpu_custom_call.1} parent=75 // pred_fallthru
          _
        // Predicated region
        $region89: #{tpu_custom_call.1} parent=75 // pred_check
          %p676 = pneg %p134
        $region90: #{tpu_custom_call.1} parent=75 // pred_check_branch
          %678 = sbr.rel (%p676) target = $region92
        $region91: #{tpu_custom_call.1} parent=75 // pred_region
          %p679 = scmp.lt.s32.totalorder %s36, 2
          %s680 = scalar_select %p679, %s36, 2
          %s681 = scalar_lea.vmem %s3, %s680
        $region92: #{tpu_custom_call.1} parent=75 // pred_fallthru
          _
        // Predicated region
        $region93: #{tpu_custom_call.1} parent=75 // pred_check
          %p682 = pneg %p181
        $region94: #{tpu_custom_call.1} parent=75 // pred_check_branch
          %684 = sbr.rel (%p682) target = $region96
        $region95: #{tpu_custom_call.1} parent=75 // pred_region
          %s685 = smul.u32 16, %s36
          %p686 = scmp.lt.s32.totalorder %s685, 47
          %s687 = scalar_select %p686, %s685, 47
          %s688 = smul.addr %s687, 8
          %s689 = scalar_lea.vmem %s5, %s688
          %s690 = smul.u32 16, %s36
        $region96: #{tpu_custom_call.1} parent=75 // pred_fallthru
          _
      $region76: #{tpu_custom_call.1} parent=5 // pred_fallthru
        _
      %p691 = scmp.le.s32.totalorder 1, %s36
      %p692 = scmp.lt.s32.totalorder %s36, 4
      %p693 = pnand %p691, %p692
      %p694 = pneg %p693
      // Predicated region
      $region97: #{tpu_custom_call.1} parent=5 // pred_check
        _
      $region98: #{tpu_custom_call.1} parent=5 // pred_check_branch
        %696 = sbr.rel (%p693) target = $region100
      $region99: #{tpu_custom_call.1} parent=5 // pred_region
        %s697 = ssub.s32 %s36, 1
        // Predicated region
        $region101: #{tpu_custom_call.1} parent=99 // pred_check
          %p698 = pneg %p161
        $region102: #{tpu_custom_call.1} parent=99 // pred_check_branch
          %700 = sbr.rel (%p698) target = $region104
        $region103: #{tpu_custom_call.1} parent=99 // pred_region
          %701 = dma.done [#allocation5], 384
        $region104: #{tpu_custom_call.1} parent=99 // pred_fallthru
          _
        // Predicated region
        $region105: #{tpu_custom_call.1} parent=99 // pred_check
          %p702 = pneg %p292
        $region106: #{tpu_custom_call.1} parent=99 // pred_check_branch
          %704 = sbr.rel (%p702) target = $region108
        $region107: #{tpu_custom_call.1} parent=99 // pred_region
          %705 = dma.done [#allocation8], 2048
        $region108: #{tpu_custom_call.1} parent=99 // pred_fallthru
          _
        // Predicated region
        $region109: #{tpu_custom_call.1} parent=99 // pred_check
          %p706 = pneg %p313
        $region110: #{tpu_custom_call.1} parent=99 // pred_check_branch
          %708 = sbr.rel (%p706) target = $region112
        $region111: #{tpu_custom_call.1} parent=99 // pred_region
          %709 = dma.done [#allocation8], 2048
        $region112: #{tpu_custom_call.1} parent=99 // pred_fallthru
          _
        // Predicated region
        $region113: #{tpu_custom_call.1} parent=99 // pred_check
          %p710 = pneg %p334
        $region114: #{tpu_custom_call.1} parent=99 // pred_check_branch
          %712 = sbr.rel (%p710) target = $region116
        $region115: #{tpu_custom_call.1} parent=99 // pred_region
          %713 = dma.done [#allocation11], 2048
        $region116: #{tpu_custom_call.1} parent=99 // pred_fallthru
          _
        // Predicated region
        $region117: #{tpu_custom_call.1} parent=99 // pred_check
          %p714 = pneg %p418
        $region118: #{tpu_custom_call.1} parent=99 // pred_check_branch
          %716 = sbr.rel (%p714) target = $region120
        $region119: #{tpu_custom_call.1} parent=99 // pred_region
          %717 = dma.done [#allocation11], 2048
        $region120: #{tpu_custom_call.1} parent=99 // pred_fallthru
          _
        // Predicated region
        $region121: #{tpu_custom_call.1} parent=99 // pred_check
          %p718 = pneg %p460
        $region122: #{tpu_custom_call.1} parent=99 // pred_check_branch
          %720 = sbr.rel (%p718) target = $region124
        $region123: #{tpu_custom_call.1} parent=99 // pred_region
          %721 = dma.done [#allocation14], 2048
        $region124: #{tpu_custom_call.1} parent=99 // pred_fallthru
          _
        %s722 = smul.u32 16, %s41
        %p723 = scmp.lt.s32.totalorder %s722, 47
        %s724 = scalar_select %p723, %s722, 47
        %s725 = smul.addr %s724, 8
        %s726 = scalar_lea.vmem %s0, %s725
        %p727 = pneg %p62
        %p728 = pneg %p59
        %s729 = smul.u32 16, %s41
        %p730 = scmp.lt.s32.totalorder %s729, 47
        %s731 = scalar_select %p730, %s729, 47
        %s732 = smul.addr %s731, 8
        %s733 = scalar_lea.vmem %s1, %s732
        %p734 = pneg %p88
        %p735 = pneg %p85
        %p736 = scmp.lt.s32.totalorder %s41, 2
        %s737 = scalar_select %p736, %s41, 2
        %s738 = scalar_lea.vmem %s2, %s737
        %p739 = pneg %p114
        %p740 = pneg %p111
        %p741 = scmp.lt.s32.totalorder %s41, 2
        %s742 = scalar_select %p741, %s41, 2
        %s743 = scalar_lea.vmem %s3, %s742
        %p744 = pneg %p140
        %p745 = pneg %p137
        %p746 = pneg %p161
        %p747 = pneg %p158
        %s748 = smul.u32 16, %s41
        %p749 = scmp.lt.s32.totalorder %s748, 47
        %s750 = scalar_select %p749, %s748, 47
        %s751 = smul.addr %s750, 8
        %s752 = scalar_lea.vmem %s5, %s751
        %p753 = pneg %p187
        %p754 = pneg %p184
        %p755 = pneg %p208
        %p756 = pneg %p205
        %p757 = pneg %p229
        %p758 = pneg %p226
        %p759 = pneg %p250
        %p760 = pneg %p247
        %p761 = pneg %p271
        %p762 = pneg %p268
        %p763 = pneg %p292
        %p764 = pneg %p289
        %p765 = pneg %p313
        %p766 = pneg %p310
        %p767 = pneg %p334
        %p768 = pneg %p331
        %p769 = pneg %p355
        %p770 = pneg %p352
        %p771 = pneg %p376
        %p772 = pneg %p373
        %p773 = pneg %p397
        %p774 = pneg %p394
        %p775 = pneg %p418
        %p776 = pneg %p415
        %p777 = pneg %p439
        %p778 = pneg %p436
        %p779 = pneg %p460
        %p780 = pneg %p457
        %p781 = pneg %p481
        %p782 = pneg %p478
        %p783 = pneg %p502
        %p784 = pneg %p499
        %p785 = pneg %p528
        %p786 = pneg %p525
        %s787 = sand.u32 %s515, 1
        %s788 = scalar_lea.sflag [#allocation17], %s787
        %s789 = sand.u32 %s515, 1
        %s790 = smul.addr %s789, 128
        %s791 = scalar_lea.vmem [#allocation16], %s790
        %s792 = smul.u32 16, %s41
        %p793 = scmp.lt.s32.totalorder %s792, 47
        %s794 = scalar_select %p793, %s792, 47
        %s795 = smul.addr %s794, 8
        %s796 = scalar_lea.vmem %s0, %s795
        %s797 = smul.u32 16, %s41
        %s798 = smul.u32 16, %s41
        %p799 = scmp.lt.s32.totalorder %s798, 47
        %s800 = scalar_select %p799, %s798, 47
        %s801 = smul.addr %s800, 8
        %s802 = scalar_lea.vmem %s1, %s801
        %s803 = smul.u32 16, %s41
        %p804 = scmp.lt.s32.totalorder %s41, 2
        %s805 = scalar_select %p804, %s41, 2
        %s806 = scalar_lea.vmem %s2, %s805
        %p807 = scmp.lt.s32.totalorder %s41, 2
        %s808 = scalar_select %p807, %s41, 2
        %s809 = scalar_lea.vmem %s3, %s808
        %s810 = smul.u32 16, %s41
        %p811 = scmp.lt.s32.totalorder %s810, 47
        %s812 = scalar_select %p811, %s810, 47
        %s813 = smul.addr %s812, 8
        %s814 = scalar_lea.vmem %s5, %s813
        %s815 = smul.u32 16, %s41
        %s816 = smul.u32 16, %s41
        %p817 = scmp.eq.s32.totalorder %s41, 0
        // Predicated region
        $region125: #{tpu_custom_call.1} parent=99 // pred_check
          %p818 = pneg %p817
        $region126: #{tpu_custom_call.1} parent=99 // pred_check_branch
          %820 = sbr.rel (%p818) target = $region128
        $region127: #{tpu_custom_call.1} parent=99 // pred_region
          %821 = vst [vmem:[#allocation2] sm:$0xff] 0.0
          %822 = vst [vmem:[#allocation2 + $0x8] sm:$0xff] 0.0
          %823 = vst [vmem:[#allocation2 + $0x10] sm:$0xff] 0.0
          %vm824 = vcmask 7168
          %825 = vst.msk [vmem:[#allocation3] sm:$0xff] %vm824, 0.0
          %826 = vst.msk [vmem:[#allocation3 + $0x8] sm:$0xff] %vm824, 0.0
          %827 = vst.msk [vmem:[#allocation3 + $0x10] sm:$0xff] %vm824, 0.0
        $region128: #{tpu_custom_call.1} parent=99 // pred_fallthru
          _
        %v828 = vld [vmem:[%s796] sm:$0xff]
        %v829 = vld [vmem:[%s796 + $0x8] sm:$0xff]
        %v830 = vld [vmem:[%s796 + $0x10] sm:$0xff]
        %v831 = vld [vmem:[%s796 + $0x18] sm:$0xff]
        %v832 = vld [vmem:[%s796 + $0x20] sm:$0xff]
        %v833 = vld [vmem:[%s796 + $0x28] sm:$0xff]
        %v834 = vld [vmem:[%s796 + $0x30] sm:$0xff]
        %v835 = vld [vmem:[%s796 + $0x38] sm:$0xff]
        %v836 = vld [vmem:[%s796 + $0x40] sm:$0xff]
        %v837 = vld [vmem:[%s796 + $0x48] sm:$0xff]
        %v838 = vld [vmem:[%s796 + $0x50] sm:$0xff]
        %v839 = vld [vmem:[%s796 + $0x58] sm:$0xff]
        %v840 = vld [vmem:[%s796 + $0x60] sm:$0xff]
        %v841 = vld [vmem:[%s796 + $0x68] sm:$0xff]
        %v842 = vld [vmem:[%s796 + $0x70] sm:$0xff]
        %v843 = vld [vmem:[%s796 + $0x78] sm:$0xff]
        %v844 = vld [vmem:[%s802] sm:$0xff]
        %v845 = vld [vmem:[%s802 + $0x8] sm:$0xff]
        %v846 = vld [vmem:[%s802 + $0x10] sm:$0xff]
        %v847 = vld [vmem:[%s802 + $0x18] sm:$0xff]
        %v848 = vld [vmem:[%s802 + $0x20] sm:$0xff]
        %v849 = vld [vmem:[%s802 + $0x28] sm:$0xff]
        %v850 = vld [vmem:[%s802 + $0x30] sm:$0xff]
        %v851 = vld [vmem:[%s802 + $0x38] sm:$0xff]
        %v852 = vld [vmem:[%s802 + $0x40] sm:$0xff]
        %v853 = vld [vmem:[%s802 + $0x48] sm:$0xff]
        %v854 = vld [vmem:[%s802 + $0x50] sm:$0xff]
        %v855 = vld [vmem:[%s802 + $0x58] sm:$0xff]
        %v856 = vld [vmem:[%s802 + $0x60] sm:$0xff]
        %v857 = vld [vmem:[%s802 + $0x68] sm:$0xff]
        %v858 = vld [vmem:[%s802 + $0x70] sm:$0xff]
        %v859 = vld [vmem:[%s802 + $0x78] sm:$0xff]
        %v860 = vlaneseq
        %v861 = vand.u32 %v860, 127
        %862 = vset.pattern.permute.xlu0 0
        %863 = vperm.xlu0 %862, %v828
        %v864 = vpop.permute.xlu0 %863
        %865 = vset.pattern.permute.xlu0 0
        %866 = vperm.xlu0 %865, %v829
        %v867 = vpop.permute.xlu0 %866
        %868 = vset.pattern.permute.xlu0 0
        %869 = vperm.xlu0 %868, %v830
        %v870 = vpop.permute.xlu0 %869
        %871 = vset.pattern.permute.xlu0 0
        %872 = vperm.xlu0 %871, %v831
        %v873 = vpop.permute.xlu0 %872
        %874 = vset.pattern.permute.xlu0 0
        %875 = vperm.xlu0 %874, %v832
        %v876 = vpop.permute.xlu0 %875
        %877 = vset.pattern.permute.xlu0 0
        %878 = vperm.xlu0 %877, %v833
        %v879 = vpop.permute.xlu0 %878
        %880 = vset.pattern.permute.xlu0 0
        %881 = vperm.xlu0 %880, %v834
        %v882 = vpop.permute.xlu0 %881
        %883 = vset.pattern.permute.xlu0 0
        %884 = vperm.xlu0 %883, %v835
        %v885 = vpop.permute.xlu0 %884
        %886 = vset.pattern.permute.xlu0 0
        %887 = vperm.xlu0 %886, %v836
        %v888 = vpop.permute.xlu0 %887
        %889 = vset.pattern.permute.xlu0 0
        %890 = vperm.xlu0 %889, %v837
        %v891 = vpop.permute.xlu0 %890
        %892 = vset.pattern.permute.xlu0 0
        %893 = vperm.xlu0 %892, %v838
        %v894 = vpop.permute.xlu0 %893
        %895 = vset.pattern.permute.xlu0 0
        %896 = vperm.xlu0 %895, %v839
        %v897 = vpop.permute.xlu0 %896
        %898 = vset.pattern.permute.xlu0 0
        %899 = vperm.xlu0 %898, %v840
        %v900 = vpop.permute.xlu0 %899
        %901 = vset.pattern.permute.xlu0 0
        %902 = vperm.xlu0 %901, %v841
        %v903 = vpop.permute.xlu0 %902
        %904 = vset.pattern.permute.xlu0 0
        %905 = vperm.xlu0 %904, %v842
        %v906 = vpop.permute.xlu0 %905
        %907 = vset.pattern.permute.xlu0 0
        %908 = vperm.xlu0 %907, %v843
        %v909 = vpop.permute.xlu0 %908
        %vm910 = vcmp.eq.s32.totalorder %v861, %v864
        %vm911 = vcmp.eq.s32.totalorder %v861, %v867
        %vm912 = vcmp.eq.s32.totalorder %v861, %v870
        %vm913 = vcmp.eq.s32.totalorder %v861, %v873
        %vm914 = vcmp.eq.s32.totalorder %v861, %v876
        %vm915 = vcmp.eq.s32.totalorder %v861, %v879
        %vm916 = vcmp.eq.s32.totalorder %v861, %v882
        %vm917 = vcmp.eq.s32.totalorder %v861, %v885
        %vm918 = vcmp.eq.s32.totalorder %v861, %v888
        %vm919 = vcmp.eq.s32.totalorder %v861, %v891
        %vm920 = vcmp.eq.s32.totalorder %v861, %v894
        %vm921 = vcmp.eq.s32.totalorder %v861, %v897
        %vm922 = vcmp.eq.s32.totalorder %v861, %v900
        %vm923 = vcmp.eq.s32.totalorder %v861, %v903
        %vm924 = vcmp.eq.s32.totalorder %v861, %v906
        %vm925 = vcmp.eq.s32.totalorder %v861, %v909
        %v926 = vsel %vm910, 1, 0
        %v927 = vsel %vm911, 1, 0
        %v928 = vsel %vm912, 1, 0
        %v929 = vsel %vm913, 1, 0
        %v930 = vsel %vm914, 1, 0
        %v931 = vsel %vm915, 1, 0
        %v932 = vsel %vm916, 1, 0
        %v933 = vsel %vm917, 1, 0
        %v934 = vsel %vm918, 1, 0
        %v935 = vsel %vm919, 1, 0
        %v936 = vsel %vm920, 1, 0
        %v937 = vsel %vm921, 1, 0
        %v938 = vsel %vm922, 1, 0
        %v939 = vsel %vm923, 1, 0
        %v940 = vsel %vm924, 1, 0
        %v941 = vsel %vm925, 1, 0
        %v942 = vcvt.s32.f32 %v926
        %v943 = vcvt.s32.f32 %v927
        %v944 = vcvt.s32.f32 %v928
        %v945 = vcvt.s32.f32 %v929
        %v946 = vcvt.s32.f32 %v930
        %v947 = vcvt.s32.f32 %v931
        %v948 = vcvt.s32.f32 %v932
        %v949 = vcvt.s32.f32 %v933
        %v950 = vcvt.s32.f32 %v934
        %v951 = vcvt.s32.f32 %v935
        %v952 = vcvt.s32.f32 %v936
        %v953 = vcvt.s32.f32 %v937
        %v954 = vcvt.s32.f32 %v938
        %v955 = vcvt.s32.f32 %v939
        %v956 = vcvt.s32.f32 %v940
        %v957 = vcvt.s32.f32 %v941
        %958 = vset.pattern.permute.xlu0 0
        %959 = vperm.xlu0 %958, %v844
        %v960 = vpop.permute.xlu0 %959
        %961 = vset.pattern.permute.xlu0 0
        %962 = vperm.xlu0 %961, %v845
        %v963 = vpop.permute.xlu0 %962
        %964 = vset.pattern.permute.xlu0 0
        %965 = vperm.xlu0 %964, %v846
        %v966 = vpop.permute.xlu0 %965
        %967 = vset.pattern.permute.xlu0 0
        %968 = vperm.xlu0 %967, %v847
        %v969 = vpop.permute.xlu0 %968
        %970 = vset.pattern.permute.xlu0 0
        %971 = vperm.xlu0 %970, %v848
        %v972 = vpop.permute.xlu0 %971
        %973 = vset.pattern.permute.xlu0 0
        %974 = vperm.xlu0 %973, %v849
        %v975 = vpop.permute.xlu0 %974
        %976 = vset.pattern.permute.xlu0 0
        %977 = vperm.xlu0 %976, %v850
        %v978 = vpop.permute.xlu0 %977
        %979 = vset.pattern.permute.xlu0 0
        %980 = vperm.xlu0 %979, %v851
        %v981 = vpop.permute.xlu0 %980
        %982 = vset.pattern.permute.xlu0 0
        %983 = vperm.xlu0 %982, %v852
        %v984 = vpop.permute.xlu0 %983
        %985 = vset.pattern.permute.xlu0 0
        %986 = vperm.xlu0 %985, %v853
        %v987 = vpop.permute.xlu0 %986
        %988 = vset.pattern.permute.xlu0 0
        %989 = vperm.xlu0 %988, %v854
        %v990 = vpop.permute.xlu0 %989
        %991 = vset.pattern.permute.xlu0 0
        %992 = vperm.xlu0 %991, %v855
        %v993 = vpop.permute.xlu0 %992
        %994 = vset.pattern.permute.xlu0 0
        %995 = vperm.xlu0 %994, %v856
        %v996 = vpop.permute.xlu0 %995
        %997 = vset.pattern.permute.xlu0 0
        %998 = vperm.xlu0 %997, %v857
        %v999 = vpop.permute.xlu0 %998
        %1000 = vset.pattern.permute.xlu0 0
        %1001 = vperm.xlu0 %1000, %v858
        %v1002 = vpop.permute.xlu0 %1001
        %1003 = vset.pattern.permute.xlu0 0
        %1004 = vperm.xlu0 %1003, %v859
        %v1005 = vpop.permute.xlu0 %1004
        %vm1006 = vcmp.eq.s32.totalorder %v861, %v960
        %vm1007 = vcmp.eq.s32.totalorder %v861, %v963
        %vm1008 = vcmp.eq.s32.totalorder %v861, %v966
        %vm1009 = vcmp.eq.s32.totalorder %v861, %v969
        %vm1010 = vcmp.eq.s32.totalorder %v861, %v972
        %vm1011 = vcmp.eq.s32.totalorder %v861, %v975
        %vm1012 = vcmp.eq.s32.totalorder %v861, %v978
        %vm1013 = vcmp.eq.s32.totalorder %v861, %v981
        %vm1014 = vcmp.eq.s32.totalorder %v861, %v984
        %vm1015 = vcmp.eq.s32.totalorder %v861, %v987
        %vm1016 = vcmp.eq.s32.totalorder %v861, %v990
        %vm1017 = vcmp.eq.s32.totalorder %v861, %v993
        %vm1018 = vcmp.eq.s32.totalorder %v861, %v996
        %vm1019 = vcmp.eq.s32.totalorder %v861, %v999
        %vm1020 = vcmp.eq.s32.totalorder %v861, %v1002
        %vm1021 = vcmp.eq.s32.totalorder %v861, %v1005
        %v1022 = vsel %vm1006, 1, 0
        %v1023 = vsel %vm1007, 1, 0
        %v1024 = vsel %vm1008, 1, 0
        %v1025 = vsel %vm1009, 1, 0
        %v1026 = vsel %vm1010, 1, 0
        %v1027 = vsel %vm1011, 1, 0
        %v1028 = vsel %vm1012, 1, 0
        %v1029 = vsel %vm1013, 1, 0
        %v1030 = vsel %vm1014, 1, 0
        %v1031 = vsel %vm1015, 1, 0
        %v1032 = vsel %vm1016, 1, 0
        %v1033 = vsel %vm1017, 1, 0
        %v1034 = vsel %vm1018, 1, 0
        %v1035 = vsel %vm1019, 1, 0
        %v1036 = vsel %vm1020, 1, 0
        %v1037 = vsel %vm1021, 1, 0
        %v1038 = vcvt.s32.f32 %v1022
        %v1039 = vcvt.s32.f32 %v1023
        %v1040 = vcvt.s32.f32 %v1024
        %v1041 = vcvt.s32.f32 %v1025
        %v1042 = vcvt.s32.f32 %v1026
        %v1043 = vcvt.s32.f32 %v1027
        %v1044 = vcvt.s32.f32 %v1028
        %v1045 = vcvt.s32.f32 %v1029
        %v1046 = vcvt.s32.f32 %v1030
        %v1047 = vcvt.s32.f32 %v1031
        %v1048 = vcvt.s32.f32 %v1032
        %v1049 = vcvt.s32.f32 %v1033
        %v1050 = vcvt.s32.f32 %v1034
        %v1051 = vcvt.s32.f32 %v1035
        %v1052 = vcvt.s32.f32 %v1036
        %v1053 = vcvt.s32.f32 %v1037
        %v1054 = vld [vmem:[#allocation4] sm:$0xff]
        %v1055 = vld [vmem:[#allocation4 + $0x8] sm:$0xff]
        %v1056 = vld [vmem:[#allocation4 + $0x10] sm:$0xff]
        %v1057 = vld [vmem:[%s814] sm:$0xff]
        %v1058 = vld [vmem:[%s814 + $0x8] sm:$0xff]
        %v1059 = vld [vmem:[%s814 + $0x10] sm:$0xff]
        %v1060 = vld [vmem:[%s814 + $0x18] sm:$0xff]
        %v1061 = vld [vmem:[%s814 + $0x20] sm:$0xff]
        %v1062 = vld [vmem:[%s814 + $0x28] sm:$0xff]
        %v1063 = vld [vmem:[%s814 + $0x30] sm:$0xff]
        %v1064 = vld [vmem:[%s814 + $0x38] sm:$0xff]
        %v1065 = vld [vmem:[%s814 + $0x40] sm:$0xff]
        %v1066 = vld [vmem:[%s814 + $0x48] sm:$0xff]
        %v1067 = vld [vmem:[%s814 + $0x50] sm:$0xff]
        %v1068 = vld [vmem:[%s814 + $0x58] sm:$0xff]
        %v1069 = vld [vmem:[%s814 + $0x60] sm:$0xff]
        %v1070 = vld [vmem:[%s814 + $0x68] sm:$0xff]
        %v1071 = vld [vmem:[%s814 + $0x70] sm:$0xff]
        %v1072 = vld [vmem:[%s814 + $0x78] sm:$0xff]
        %vm1073 = vcmask 195584
        %v1075 = vsel %vm1073, %v942, 0
        %v1078 = vsel %vm1073, %v943, 0
        %v1081 = vsel %vm1073, %v944, 0
        %v1084 = vsel %vm1073, %v945, 0
        %v1087 = vsel %vm1073, %v946, 0
        %v1090 = vsel %vm1073, %v947, 0
        %v1093 = vsel %vm1073, %v948, 0
        %v1096 = vsel %vm1073, %v949, 0
        %v1099 = vsel %vm1073, %v950, 0
        %v1102 = vsel %vm1073, %v951, 0
        %v1105 = vsel %vm1073, %v952, 0
        %v1108 = vsel %vm1073, %v953, 0
        %v1111 = vsel %vm1073, %v954, 0
        %v1114 = vsel %vm1073, %v955, 0
        %v1117 = vsel %vm1073, %v956, 0
        %v1120 = vsel %vm1073, %v957, 0
        %1122 = vmatprep.subr.mxu0 0.0
        %1123 = vmatpush1.msra.mxu0 %v1054
        %1124 = vmatprep.subr.mxu0 0.0
        %1125 = vmatpush1.msra.mxu0 %v1055
        %1126 = vmatprep.subr.mxu0 0.0
        %1127 = vmatpush1.msra.mxu0 %v1056
        %1128 = vmatprep.subr.mxu0 0.0
        %1129 = vmatpush1.msra.mxu0 0.0
        %1130 = vmatprep.subr.mxu0 0.0
        %1131 = vmatpush1.msra.mxu0 0.0
        %1132 = vmatprep.subr.mxu0 0.0
        %1133 = vmatpush1.msra.mxu0 0.0
        %1134 = vmatprep.subr.mxu0 0.0
        %1135 = vmatpush1.msra.mxu0 0.0
        %1136 = vmatprep.subr.mxu0 0.0
        %1137 = vmatpush1.msra.mxu0 0.0
        %1138 = vmatprep.subr.mxu0 0.0
        %1139 = vmatpush1.msra.mxu0 0.0
        %1140 = vmatprep.subr.mxu0 0.0
        %1141 = vmatpush1.msra.mxu0 0.0
        %1142 = vmatprep.subr.mxu0 0.0
        %1143 = vmatpush1.msra.mxu0 0.0
        %1144 = vmatprep.subr.mxu0 0.0
        %1145 = vmatpush1.msra.mxu0 0.0
        %1146 = vmatprep.subr.mxu0 0.0
        %1147 = vmatpush1.msra.mxu0 0.0
        %1148 = vmatprep.subr.mxu0 0.0
        %1149 = vmatpush1.msra.mxu0 0.0
        %1150 = vmatprep.subr.mxu0 0.0
        %1151 = vmatpush1.msra.mxu0 0.0
        %1152 = vmatprep.subr.mxu0 0.0
        %1153 = vmatpush1.msra.mxu0 0.0
        %1154 = vmatprep.subr.mxu0 0.0
        %1155 = vmatpush1.msra.mxu0 0.0
        %1156 = vmatprep.subr.mxu0 0.0
        %1157 = vmatpush1.msra.mxu0 0.0
        %1158 = vmatprep.subr.mxu0 0.0
        %1159 = vmatpush1.msra.mxu0 0.0
        %1160 = vmatprep.subr.mxu0 0.0
        %1161 = vmatpush1.msra.mxu0 0.0
        %1162 = vmatprep.subr.mxu0 0.0
        %1163 = vmatpush1.msra.mxu0 0.0
        %1164 = vmatprep.subr.mxu0 0.0
        %1165 = vmatpush1.msra.mxu0 0.0
        %1166 = vmatprep.subr.mxu0 0.0
        %1167 = vmatpush1.msra.mxu0 0.0
        %1168 = vmatprep.subr.mxu0 0.0
        %1169 = vmatpush1.msra.mxu0 0.0
        %1170 = vmatprep.subr.mxu0 0.0
        %1171 = vmatpush1.msra.mxu0 0.0
        %1172 = vmatprep.subr.mxu0 0.0
        %1173 = vmatpush1.msra.mxu0 0.0
        %1174 = vmatprep.subr.mxu0 0.0
        %1175 = vmatpush1.msra.mxu0 0.0
        %1176 = vmatprep.subr.mxu0 0.0
        %1177 = vmatpush1.msra.mxu0 0.0
        %1178 = vmatprep.subr.mxu0 0.0
        %1179 = vmatpush1.msra.mxu0 0.0
        %1180 = vmatprep.subr.mxu0 0.0
        %1181 = vmatpush1.msra.mxu0 0.0
        %1182 = vmatprep.subr.mxu0 0.0
        %1183 = vmatpush1.msra.mxu0 0.0
        %1184 = vmatprep.subr.mxu0 0.0
        %1185 = vmatpush1.msra.mxu0 0.0
        %1186 = vmatprep.mubr.f32.mxu0 0.0
        %1187 = vmatmul.mubr.f32.gmra.mrb[0].mxu0 %v1075
        %v1188 = vpop.f32.mrb[0].mxu0
        %v1189 = vadd.f32 0.0, %v1188
        %v1190 = vpop.f32.mrb[0].mxu0
        %1191 = vmatprep.mubr.f32.mxu0 0.0
        %1192 = vmatmul.mubr.f32.gmra.mrb[0].mxu0 %v1078
        %v1193 = vpop.f32.mrb[0].mxu0
        %v1194 = vadd.f32 0.0, %v1193
        %v1195 = vpop.f32.mrb[0].mxu0
        %1196 = vmatprep.mubr.f32.mxu0 0.0
        %1197 = vmatmul.mubr.f32.gmra.mrb[0].mxu0 %v1081
        %v1198 = vpop.f32.mrb[0].mxu0
        %v1199 = vadd.f32 0.0, %v1198
        %v1200 = vpop.f32.mrb[0].mxu0
        %1201 = vmatprep.mubr.f32.mxu0 0.0
        %1202 = vmatmul.mubr.f32.gmra.mrb[0].mxu0 %v1084
        %v1203 = vpop.f32.mrb[0].mxu0
        %v1204 = vadd.f32 0.0, %v1203
        %v1205 = vpop.f32.mrb[0].mxu0
        %1206 = vmatprep.mubr.f32.mxu0 0.0
        %1207 = vmatmul.mubr.f32.gmra.mrb[0].mxu0 %v1087
        %v1208 = vpop.f32.mrb[0].mxu0
        %v1209 = vadd.f32 0.0, %v1208
        %v1210 = vpop.f32.mrb[0].mxu0
        %1211 = vmatprep.mubr.f32.mxu0 0.0
        %1212 = vmatmul.mubr.f32.gmra.mrb[0].mxu0 %v1090
        %v1213 = vpop.f32.mrb[0].mxu0
        %v1214 = vadd.f32 0.0, %v1213
        %v1215 = vpop.f32.mrb[0].mxu0
        %1216 = vmatprep.mubr.f32.mxu0 0.0
        %1217 = vmatmul.mubr.f32.gmra.mrb[0].mxu0 %v1093
        %v1218 = vpop.f32.mrb[0].mxu0
        %v1219 = vadd.f32 0.0, %v1218
        %v1220 = vpop.f32.mrb[0].mxu0
        %1221 = vmatprep.mubr.f32.mxu0 0.0
        %1222 = vmatmul.mubr.f32.gmra.mrb[0].mxu0 %v1096
        %v1223 = vpop.f32.mrb[0].mxu0
        %v1224 = vadd.f32 0.0, %v1223
        %v1225 = vpop.f32.mrb[0].mxu0
        %1226 = vmatprep.mubr.f32.mxu0 0.0
        %1227 = vmatmul.mubr.f32.gmra.mrb[0].mxu0 %v1099
        %v1228 = vpop.f32.mrb[0].mxu0
        %v1229 = vadd.f32 0.0, %v1228
        %v1230 = vpop.f32.mrb[0].mxu0
        %1231 = vmatprep.mubr.f32.mxu0 0.0
        %1232 = vmatmul.mubr.f32.gmra.mrb[0].mxu0 %v1102
        %v1233 = vpop.f32.mrb[0].mxu0
        %v1234 = vadd.f32 0.0, %v1233
        %v1235 = vpop.f32.mrb[0].mxu0
        %1236 = vmatprep.mubr.f32.mxu0 0.0
        %1237 = vmatmul.mubr.f32.gmra.mrb[0].mxu0 %v1105
        %v1238 = vpop.f32.mrb[0].mxu0
        %v1239 = vadd.f32 0.0, %v1238
        %v1240 = vpop.f32.mrb[0].mxu0
        %1241 = vmatprep.mubr.f32.mxu0 0.0
        %1242 = vmatmul.mubr.f32.gmra.mrb[0].mxu0 %v1108
        %v1243 = vpop.f32.mrb[0].mxu0
        %v1244 = vadd.f32 0.0, %v1243
        %v1245 = vpop.f32.mrb[0].mxu0
        %1246 = vmatprep.mubr.f32.mxu0 0.0
        %1247 = vmatmul.mubr.f32.gmra.mrb[0].mxu0 %v1111
        %v1248 = vpop.f32.mrb[0].mxu0
        %v1249 = vadd.f32 0.0, %v1248
        %v1250 = vpop.f32.mrb[0].mxu0
        %1251 = vmatprep.mubr.f32.mxu0 0.0
        %1252 = vmatmul.mubr.f32.gmra.mrb[0].mxu0 %v1114
        %v1253 = vpop.f32.mrb[0].mxu0
        %v1254 = vadd.f32 0.0, %v1253
        %v1255 = vpop.f32.mrb[0].mxu0
        %1256 = vmatprep.mubr.f32.mxu0 0.0
        %1257 = vmatmul.mubr.f32.gmra.mrb[0].mxu0 %v1117
        %v1258 = vpop.f32.mrb[0].mxu0
        %v1259 = vadd.f32 0.0, %v1258
        %v1260 = vpop.f32.mrb[0].mxu0
        %1261 = vmatprep.mubr.f32.mxu0 0.0
        %1262 = vmatmul.mubr.f32.gmra.mrb[0].mxu0 %v1120
        %v1263 = vpop.f32.mrb[0].mxu0
        %v1264 = vadd.f32 0.0, %v1263
        %v1265 = vpop.f32.mrb[0].mxu0
        %1266 = vdwg.mxu0
        %v1268 = vsel %vm1073, %v1038, 0
        %v1271 = vsel %vm1073, %v1039, 0
        %v1274 = vsel %vm1073, %v1040, 0
        %v1277 = vsel %vm1073, %v1041, 0
        %v1280 = vsel %vm1073, %v1042, 0
        %v1283 = vsel %vm1073, %v1043, 0
        %v1286 = vsel %vm1073, %v1044, 0
        %v1289 = vsel %vm1073, %v1045, 0
        %v1292 = vsel %vm1073, %v1046, 0
        %v1295 = vsel %vm1073, %v1047, 0
        %v1298 = vsel %vm1073, %v1048, 0
        %v1301 = vsel %vm1073, %v1049, 0
        %v1304 = vsel %vm1073, %v1050, 0
        %v1307 = vsel %vm1073, %v1051, 0
        %v1310 = vsel %vm1073, %v1052, 0
        %v1313 = vsel %vm1073, %v1053, 0
        %1315 = vmatprep.subr.mxu0 0.0
        %1316 = vmatpush1.msra.mxu0 %v1054
        %1317 = vmatprep.subr.mxu0 0.0
        %1318 = vmatpush1.msra.mxu0 %v1055
        %1319 = vmatprep.subr.mxu0 0.0
        %1320 = vmatpush1.msra.mxu0 %v1056
        %1321 = vmatprep.subr.mxu0 0.0
        %1322 = vmatpush1.msra.mxu0 0.0
        %1323 = vmatprep.subr.mxu0 0.0
        %1324 = vmatpush1.msra.mxu0 0.0
        %1325 = vmatprep.subr.mxu0 0.0
        %1326 = vmatpush1.msra.mxu0 0.0
        %1327 = vmatprep.subr.mxu0 0.0
        %1328 = vmatpush1.msra.mxu0 0.0
        %1329 = vmatprep.subr.mxu0 0.0
        %1330 = vmatpush1.msra.mxu0 0.0
        %1331 = vmatprep.subr.mxu0 0.0
        %1332 = vmatpush1.msra.mxu0 0.0
        %1333 = vmatprep.subr.mxu0 0.0
        %1334 = vmatpush1.msra.mxu0 0.0
        %1335 = vmatprep.subr.mxu0 0.0
        %1336 = vmatpush1.msra.mxu0 0.0
        %1337 = vmatprep.subr.mxu0 0.0
        %1338 = vmatpush1.msra.mxu0 0.0
        %1339 = vmatprep.subr.mxu0 0.0
        %1340 = vmatpush1.msra.mxu0 0.0
        %1341 = vmatprep.subr.mxu0 0.0
        %1342 = vmatpush1.msra.mxu0 0.0
        %1343 = vmatprep.subr.mxu0 0.0
        %1344 = vmatpush1.msra.mxu0 0.0
        %1345 = vmatprep.subr.mxu0 0.0
        %1346 = vmatpush1.msra.mxu0 0.0
        %1347 = vmatprep.subr.mxu0 0.0
        %1348 = vmatpush1.msra.mxu0 0.0
        %1349 = vmatprep.subr.mxu0 0.0
        %1350 = vmatpush1.msra.mxu0 0.0
        %1351 = vmatprep.subr.mxu0 0.0
        %1352 = vmatpush1.msra.mxu0 0.0
        %1353 = vmatprep.subr.mxu0 0.0
        %1354 = vmatpush1.msra.mxu0 0.0
        %1355 = vmatprep.subr.mxu0 0.0
        %1356 = vmatpush1.msra.mxu0 0.0
        %1357 = vmatprep.subr.mxu0 0.0
        %1358 = vmatpush1.msra.mxu0 0.0
        %1359 = vmatprep.subr.mxu0 0.0
        %1360 = vmatpush1.msra.mxu0 0.0
        %1361 = vmatprep.subr.mxu0 0.0
        %1362 = vmatpush1.msra.mxu0 0.0
        %1363 = vmatprep.subr.mxu0 0.0
        %1364 = vmatpush1.msra.mxu0 0.0
        %1365 = vmatprep.subr.mxu0 0.0
        %1366 = vmatpush1.msra.mxu0 0.0
        %1367 = vmatprep.subr.mxu0 0.0
        %1368 = vmatpush1.msra.mxu0 0.0
        %1369 = vmatprep.subr.mxu0 0.0
        %1370 = vmatpush1.msra.mxu0 0.0
        %1371 = vmatprep.subr.mxu0 0.0
        %1372 = vmatpush1.msra.mxu0 0.0
        %1373 = vmatprep.subr.mxu0 0.0
        %1374 = vmatpush1.msra.mxu0 0.0
        %1375 = vmatprep.subr.mxu0 0.0
        %1376 = vmatpush1.msra.mxu0 0.0
        %1377 = vmatprep.subr.mxu0 0.0
        %1378 = vmatpush1.msra.mxu0 0.0
        %1379 = vmatprep.mubr.f32.mxu0 0.0
        %1380 = vmatmul.mubr.f32.gmra.mrb[0].mxu0 %v1268
        %v1381 = vpop.f32.mrb[0].mxu0
        %v1382 = vadd.f32 0.0, %v1381
        %v1383 = vpop.f32.mrb[0].mxu0
        %1384 = vmatprep.mubr.f32.mxu0 0.0
        %1385 = vmatmul.mubr.f32.gmra.mrb[0].mxu0 %v1271
        %v1386 = vpop.f32.mrb[0].mxu0
        %v1387 = vadd.f32 0.0, %v1386
        %v1388 = vpop.f32.mrb[0].mxu0
        %1389 = vmatprep.mubr.f32.mxu0 0.0
        %1390 = vmatmul.mubr.f32.gmra.mrb[0].mxu0 %v1274
        %v1391 = vpop.f32.mrb[0].mxu0
        %v1392 = vadd.f32 0.0, %v1391
        %v1393 = vpop.f32.mrb[0].mxu0
        %1394 = vmatprep.mubr.f32.mxu0 0.0
        %1395 = vmatmul.mubr.f32.gmra.mrb[0].mxu0 %v1277
        %v1396 = vpop.f32.mrb[0].mxu0
        %v1397 = vadd.f32 0.0, %v1396
        %v1398 = vpop.f32.mrb[0].mxu0
        %1399 = vmatprep.mubr.f32.mxu0 0.0
        %1400 = vmatmul.mubr.f32.gmra.mrb[0].mxu0 %v1280
        %v1401 = vpop.f32.mrb[0].mxu0
        %v1402 = vadd.f32 0.0, %v1401
        %v1403 = vpop.f32.mrb[0].mxu0
        %1404 = vmatprep.mubr.f32.mxu0 0.0
        %1405 = vmatmul.mubr.f32.gmra.mrb[0].mxu0 %v1283
        %v1406 = vpop.f32.mrb[0].mxu0
        %v1407 = vadd.f32 0.0, %v1406
        %v1408 = vpop.f32.mrb[0].mxu0
        %1409 = vmatprep.mubr.f32.mxu0 0.0
        %1410 = vmatmul.mubr.f32.gmra.mrb[0].mxu0 %v1286
        %v1411 = vpop.f32.mrb[0].mxu0
        %v1412 = vadd.f32 0.0, %v1411
        %v1413 = vpop.f32.mrb[0].mxu0
        %1414 = vmatprep.mubr.f32.mxu0 0.0
        %1415 = vmatmul.mubr.f32.gmra.mrb[0].mxu0 %v1289
        %v1416 = vpop.f32.mrb[0].mxu0
        %v1417 = vadd.f32 0.0, %v1416
        %v1418 = vpop.f32.mrb[0].mxu0
        %1419 = vmatprep.mubr.f32.mxu0 0.0
        %1420 = vmatmul.mubr.f32.gmra.mrb[0].mxu0 %v1292
        %v1421 = vpop.f32.mrb[0].mxu0
        %v1422 = vadd.f32 0.0, %v1421
        %v1423 = vpop.f32.mrb[0].mxu0
        %1424 = vmatprep.mubr.f32.mxu0 0.0
        %1425 = vmatmul.mubr.f32.gmra.mrb[0].mxu0 %v1295
        %v1426 = vpop.f32.mrb[0].mxu0
        %v1427 = vadd.f32 0.0, %v1426
        %v1428 = vpop.f32.mrb[0].mxu0
        %1429 = vmatprep.mubr.f32.mxu0 0.0
        %1430 = vmatmul.mubr.f32.gmra.mrb[0].mxu0 %v1298
        %v1431 = vpop.f32.mrb[0].mxu0
        %v1432 = vadd.f32 0.0, %v1431
        %v1433 = vpop.f32.mrb[0].mxu0
        %1434 = vmatprep.mubr.f32.mxu0 0.0
        %1435 = vmatmul.mubr.f32.gmra.mrb[0].mxu0 %v1301
        %v1436 = vpop.f32.mrb[0].mxu0
        %v1437 = vadd.f32 0.0, %v1436
        %v1438 = vpop.f32.mrb[0].mxu0
        %1439 = vmatprep.mubr.f32.mxu0 0.0
        %1440 = vmatmul.mubr.f32.gmra.mrb[0].mxu0 %v1304
        %v1441 = vpop.f32.mrb[0].mxu0
        %v1442 = vadd.f32 0.0, %v1441
        %v1443 = vpop.f32.mrb[0].mxu0
        %1444 = vmatprep.mubr.f32.mxu0 0.0
        %1445 = vmatmul.mubr.f32.gmra.mrb[0].mxu0 %v1307
        %v1446 = vpop.f32.mrb[0].mxu0
        %v1447 = vadd.f32 0.0, %v1446
        %v1448 = vpop.f32.mrb[0].mxu0
        %1449 = vmatprep.mubr.f32.mxu0 0.0
        %1450 = vmatmul.mubr.f32.gmra.mrb[0].mxu0 %v1310
        %v1451 = vpop.f32.mrb[0].mxu0
        %v1452 = vadd.f32 0.0, %v1451
        %v1453 = vpop.f32.mrb[0].mxu0
        %1454 = vmatprep.mubr.f32.mxu0 0.0
        %1455 = vmatmul.mubr.f32.gmra.mrb[0].mxu0 %v1313
        %v1456 = vpop.f32.mrb[0].mxu0
        %v1457 = vadd.f32 0.0, %v1456
        %v1458 = vpop.f32.mrb[0].mxu0
        %1459 = vdwg.mxu0
        %v1460 = vld [vmem:[%s6] sm:$0xff]
        %v1461 = vld [vmem:[%s6 + $0x8] sm:$0xff]
        %v1462 = vld [vmem:[%s6 + $0x10] sm:$0xff]
        %v1463 = vld [vmem:[%s6 + $0x18] sm:$0xff]
        %v1464 = vld [vmem:[%s6 + $0x20] sm:$0xff]
        %v1465 = vld [vmem:[%s6 + $0x28] sm:$0xff]
        %v1466 = vld [vmem:[%s6 + $0x30] sm:$0xff]
        %v1467 = vld [vmem:[%s6 + $0x38] sm:$0xff]
        %v1468 = vld [vmem:[%s6 + $0x40] sm:$0xff]
        %v1469 = vld [vmem:[%s6 + $0x48] sm:$0xff]
        %v1470 = vld [vmem:[%s6 + $0x50] sm:$0xff]
        %v1471 = vld [vmem:[%s6 + $0x58] sm:$0xff]
        %v1472 = vld [vmem:[%s6 + $0x60] sm:$0xff]
        %v1473 = vld [vmem:[%s6 + $0x68] sm:$0xff]
        %v1474 = vld [vmem:[%s6 + $0x70] sm:$0xff]
        %v1475 = vld [vmem:[%s6 + $0x78] sm:$0xff]
        %v1476 = vld [vmem:[%s7] sm:$0xff]
        %v1477 = vld [vmem:[%s7 + $0x8] sm:$0xff]
        %v1478 = vld [vmem:[%s7 + $0x10] sm:$0xff]
        %v1479 = vld [vmem:[%s7 + $0x18] sm:$0xff]
        %v1480 = vld [vmem:[%s7 + $0x20] sm:$0xff]
        %v1481 = vld [vmem:[%s7 + $0x28] sm:$0xff]
        %v1482 = vld [vmem:[%s7 + $0x30] sm:$0xff]
        %v1483 = vld [vmem:[%s7 + $0x38] sm:$0xff]
        %v1484 = vld [vmem:[%s7 + $0x40] sm:$0xff]
        %v1485 = vld [vmem:[%s7 + $0x48] sm:$0xff]
        %v1486 = vld [vmem:[%s7 + $0x50] sm:$0xff]
        %v1487 = vld [vmem:[%s7 + $0x58] sm:$0xff]
        %v1488 = vld [vmem:[%s7 + $0x60] sm:$0xff]
        %v1489 = vld [vmem:[%s7 + $0x68] sm:$0xff]
        %v1490 = vld [vmem:[%s7 + $0x70] sm:$0xff]
        %v1491 = vld [vmem:[%s7 + $0x78] sm:$0xff]
        %1492 = vmatprep.subr.mxu0 0.0
        %1493 = vmatpush1.msra.mxu0 %v1476
        %1494 = vmatprep.subr.mxu0 0.0
        %1495 = vmatpush1.msra.mxu0 %v1477
        %1496 = vmatprep.subr.mxu0 0.0
        %1497 = vmatpush1.msra.mxu0 %v1478
        %1498 = vmatprep.subr.mxu0 0.0
        %1499 = vmatpush1.msra.mxu0 %v1479
        %1500 = vmatprep.subr.mxu0 0.0
        %1501 = vmatpush1.msra.mxu0 %v1480
        %1502 = vmatprep.subr.mxu0 0.0
        %1503 = vmatpush1.msra.mxu0 %v1481
        %1504 = vmatprep.subr.mxu0 0.0
        %1505 = vmatpush1.msra.mxu0 %v1482
        %1506 = vmatprep.subr.mxu0 0.0
        %1507 = vmatpush1.msra.mxu0 %v1483
        %1508 = vmatprep.subr.mxu0 0.0
        %1509 = vmatpush1.msra.mxu0 %v1484
        %1510 = vmatprep.subr.mxu0 0.0
        %1511 = vmatpush1.msra.mxu0 %v1485
        %1512 = vmatprep.subr.mxu0 0.0
        %1513 = vmatpush1.msra.mxu0 %v1486
        %1514 = vmatprep.subr.mxu0 0.0
        %1515 = vmatpush1.msra.mxu0 %v1487
        %1516 = vmatprep.subr.mxu0 0.0
        %1517 = vmatpush1.msra.mxu0 %v1488
        %1518 = vmatprep.subr.mxu0 0.0
        %1519 = vmatpush1.msra.mxu0 %v1489
        %1520 = vmatprep.subr.mxu0 0.0
        %1521 = vmatpush1.msra.mxu0 %v1490
        %1522 = vmatprep.subr.mxu0 0.0
        %1523 = vmatpush1.msra.mxu0 %v1491
        %1524 = vmatprep.subr.mxu0 0.0
        %1525 = vmatpush1.msra.mxu0 0.0
        %1526 = vmatprep.subr.mxu0 0.0
        %1527 = vmatpush1.msra.mxu0 0.0
        %1528 = vmatprep.subr.mxu0 0.0
        %1529 = vmatpush1.msra.mxu0 0.0
        %1530 = vmatprep.subr.mxu0 0.0
        %1531 = vmatpush1.msra.mxu0 0.0
        %1532 = vmatprep.subr.mxu0 0.0
        %1533 = vmatpush1.msra.mxu0 0.0
        %1534 = vmatprep.subr.mxu0 0.0
        %1535 = vmatpush1.msra.mxu0 0.0
        %1536 = vmatprep.subr.mxu0 0.0
        %1537 = vmatpush1.msra.mxu0 0.0
        %1538 = vmatprep.subr.mxu0 0.0
        %1539 = vmatpush1.msra.mxu0 0.0
        %1540 = vmatprep.subr.mxu0 0.0
        %1541 = vmatpush1.msra.mxu0 0.0
        %1542 = vmatprep.subr.mxu0 0.0
        %1543 = vmatpush1.msra.mxu0 0.0
        %1544 = vmatprep.subr.mxu0 0.0
        %1545 = vmatpush1.msra.mxu0 0.0
        %1546 = vmatprep.subr.mxu0 0.0
        %1547 = vmatpush1.msra.mxu0 0.0
        %1548 = vmatprep.subr.mxu0 0.0
        %1549 = vmatpush1.msra.mxu0 0.0
        %1550 = vmatprep.subr.mxu0 0.0
        %1551 = vmatpush1.msra.mxu0 0.0
        %1552 = vmatprep.subr.mxu0 0.0
        %1553 = vmatpush1.msra.mxu0 0.0
        %1554 = vmatprep.subr.mxu0 0.0
        %1555 = vmatpush1.msra.mxu0 0.0
        %1556 = vmatprep.mubr.f32.mxu0 0.0
        %1557 = vmatmul.mubr.f32.gmra.mrb[0].mxu0 %v1057
        %v1558 = vpop.f32.mrb[0].mxu0
        %v1559 = vadd.f32 0.0, %v1558
        %v1560 = vpop.f32.mrb[0].mxu0
        %1561 = vmatprep.mubr.f32.mxu0 0.0
        %1562 = vmatmul.mubr.f32.gmra.mrb[0].mxu0 %v1058
        %v1563 = vpop.f32.mrb[0].mxu0
        %v1564 = vadd.f32 0.0, %v1563
        %v1565 = vpop.f32.mrb[0].mxu0
        %1566 = vmatprep.mubr.f32.mxu0 0.0
        %1567 = vmatmul.mubr.f32.gmra.mrb[0].mxu0 %v1059
        %v1568 = vpop.f32.mrb[0].mxu0
        %v1569 = vadd.f32 0.0, %v1568
        %v1570 = vpop.f32.mrb[0].mxu0
        %1571 = vmatprep.mubr.f32.mxu0 0.0
        %1572 = vmatmul.mubr.f32.gmra.mrb[0].mxu0 %v1060
        %v1573 = vpop.f32.mrb[0].mxu0
        %v1574 = vadd.f32 0.0, %v1573
        %v1575 = vpop.f32.mrb[0].mxu0
        %1576 = vmatprep.mubr.f32.mxu0 0.0
        %1577 = vmatmul.mubr.f32.gmra.mrb[0].mxu0 %v1061
        %v1578 = vpop.f32.mrb[0].mxu0
        %v1579 = vadd.f32 0.0, %v1578
        %v1580 = vpop.f32.mrb[0].mxu0
        %1581 = vmatprep.mubr.f32.mxu0 0.0
        %1582 = vmatmul.mubr.f32.gmra.mrb[0].mxu0 %v1062
        %v1583 = vpop.f32.mrb[0].mxu0
        %v1584 = vadd.f32 0.0, %v1583
        %v1585 = vpop.f32.mrb[0].mxu0
        %1586 = vmatprep.mubr.f32.mxu0 0.0
        %1587 = vmatmul.mubr.f32.gmra.mrb[0].mxu0 %v1063
        %v1588 = vpop.f32.mrb[0].mxu0
        %v1589 = vadd.f32 0.0, %v1588
        %v1590 = vpop.f32.mrb[0].mxu0
        %1591 = vmatprep.mubr.f32.mxu0 0.0
        %1592 = vmatmul.mubr.f32.gmra.mrb[0].mxu0 %v1064
        %v1593 = vpop.f32.mrb[0].mxu0
        %v1594 = vadd.f32 0.0, %v1593
        %v1595 = vpop.f32.mrb[0].mxu0
        %1596 = vmatprep.mubr.f32.mxu0 0.0
        %1597 = vmatmul.mubr.f32.gmra.mrb[0].mxu0 %v1065
        %v1598 = vpop.f32.mrb[0].mxu0
        %v1599 = vadd.f32 0.0, %v1598
        %v1600 = vpop.f32.mrb[0].mxu0
        %1601 = vmatprep.mubr.f32.mxu0 0.0
        %1602 = vmatmul.mubr.f32.gmra.mrb[0].mxu0 %v1066
        %v1603 = vpop.f32.mrb[0].mxu0
        %v1604 = vadd.f32 0.0, %v1603
        %v1605 = vpop.f32.mrb[0].mxu0
        %1606 = vmatprep.mubr.f32.mxu0 0.0
        %1607 = vmatmul.mubr.f32.gmra.mrb[0].mxu0 %v1067
        %v1608 = vpop.f32.mrb[0].mxu0
        %v1609 = vadd.f32 0.0, %v1608
        %v1610 = vpop.f32.mrb[0].mxu0
        %1611 = vmatprep.mubr.f32.mxu0 0.0
        %1612 = vmatmul.mubr.f32.gmra.mrb[0].mxu0 %v1068
        %v1613 = vpop.f32.mrb[0].mxu0
        %v1614 = vadd.f32 0.0, %v1613
        %v1615 = vpop.f32.mrb[0].mxu0
        %1616 = vmatprep.mubr.f32.mxu0 0.0
        %1617 = vmatmul.mubr.f32.gmra.mrb[0].mxu0 %v1069
        %v1618 = vpop.f32.mrb[0].mxu0
        %v1619 = vadd.f32 0.0, %v1618
        %v1620 = vpop.f32.mrb[0].mxu0
        %1621 = vmatprep.mubr.f32.mxu0 0.0
        %1622 = vmatmul.mubr.f32.gmra.mrb[0].mxu0 %v1070
        %v1623 = vpop.f32.mrb[0].mxu0
        %v1624 = vadd.f32 0.0, %v1623
        %v1625 = vpop.f32.mrb[0].mxu0
        %1626 = vmatprep.mubr.f32.mxu0 0.0
        %1627 = vmatmul.mubr.f32.gmra.mrb[0].mxu0 %v1071
        %v1628 = vpop.f32.mrb[0].mxu0
        %v1629 = vadd.f32 0.0, %v1628
        %v1630 = vpop.f32.mrb[0].mxu0
        %1631 = vmatprep.mubr.f32.mxu0 0.0
        %1632 = vmatmul.mubr.f32.gmra.mrb[0].mxu0 %v1072
        %v1633 = vpop.f32.mrb[0].mxu0
        %v1634 = vadd.f32 0.0, %v1633
        %v1635 = vpop.f32.mrb[0].mxu0
        %1636 = vdwg.mxu0
        %1637 = vmatprep.subr.mxu0 0.0
        %1638 = vmatpush1.msra.mxu0 %v1460
        %1639 = vmatprep.subr.mxu0 0.0
        %1640 = vmatpush1.msra.mxu0 %v1461
        %1641 = vmatprep.subr.mxu0 0.0
        %1642 = vmatpush1.msra.mxu0 %v1462
        %1643 = vmatprep.subr.mxu0 0.0
        %1644 = vmatpush1.msra.mxu0 %v1463
        %1645 = vmatprep.subr.mxu0 0.0
        %1646 = vmatpush1.msra.mxu0 %v1464
        %1647 = vmatprep.subr.mxu0 0.0
        %1648 = vmatpush1.msra.mxu0 %v1465
        %1649 = vmatprep.subr.mxu0 0.0
        %1650 = vmatpush1.msra.mxu0 %v1466
        %1651 = vmatprep.subr.mxu0 0.0
        %1652 = vmatpush1.msra.mxu0 %v1467
        %1653 = vmatprep.subr.mxu0 0.0
        %1654 = vmatpush1.msra.mxu0 %v1468
        %1655 = vmatprep.subr.mxu0 0.0
        %1656 = vmatpush1.msra.mxu0 %v1469
        %1657 = vmatprep.subr.mxu0 0.0
        %1658 = vmatpush1.msra.mxu0 %v1470
        %1659 = vmatprep.subr.mxu0 0.0
        %1660 = vmatpush1.msra.mxu0 %v1471
        %1661 = vmatprep.subr.mxu0 0.0
        %1662 = vmatpush1.msra.mxu0 %v1472
        %1663 = vmatprep.subr.mxu0 0.0
        %1664 = vmatpush1.msra.mxu0 %v1473
        %1665 = vmatprep.subr.mxu0 0.0
        %1666 = vmatpush1.msra.mxu0 %v1474
        %1667 = vmatprep.subr.mxu0 0.0
        %1668 = vmatpush1.msra.mxu0 %v1475
        %1669 = vmatprep.subr.mxu0 0.0
        %1670 = vmatpush1.msra.mxu0 0.0
        %1671 = vmatprep.subr.mxu0 0.0
        %1672 = vmatpush1.msra.mxu0 0.0
        %1673 = vmatprep.subr.mxu0 0.0
        %1674 = vmatpush1.msra.mxu0 0.0
        %1675 = vmatprep.subr.mxu0 0.0
        %1676 = vmatpush1.msra.mxu0 0.0
        %1677 = vmatprep.subr.mxu0 0.0
        %1678 = vmatpush1.msra.mxu0 0.0
        %1679 = vmatprep.subr.mxu0 0.0
        %1680 = vmatpush1.msra.mxu0 0.0
        %1681 = vmatprep.subr.mxu0 0.0
        %1682 = vmatpush1.msra.mxu0 0.0
        %1683 = vmatprep.subr.mxu0 0.0
        %1684 = vmatpush1.msra.mxu0 0.0
        %1685 = vmatprep.subr.mxu0 0.0
        %1686 = vmatpush1.msra.mxu0 0.0
        %1687 = vmatprep.subr.mxu0 0.0
        %1688 = vmatpush1.msra.mxu0 0.0
        %1689 = vmatprep.subr.mxu0 0.0
        %1690 = vmatpush1.msra.mxu0 0.0
        %1691 = vmatprep.subr.mxu0 0.0
        %1692 = vmatpush1.msra.mxu0 0.0
        %1693 = vmatprep.subr.mxu0 0.0
        %1694 = vmatpush1.msra.mxu0 0.0
        %1695 = vmatprep.subr.mxu0 0.0
        %1696 = vmatpush1.msra.mxu0 0.0
        %1697 = vmatprep.subr.mxu0 0.0
        %1698 = vmatpush1.msra.mxu0 0.0
        %1699 = vmatprep.subr.mxu0 0.0
        %1700 = vmatpush1.msra.mxu0 0.0
        %1701 = vmatprep.mubr.f32.mxu0 0.0
        %1702 = vmatmul.mubr.f32.gmra.mrb[0].mxu0 %v1189
        %v1703 = vpop.f32.mrb[0].mxu0
        %v1704 = vadd.f32 %v1559, %v1703
        %v1705 = vpop.f32.mrb[0].mxu0
        %1706 = vmatprep.mubr.f32.mxu0 0.0
        %1707 = vmatmul.mubr.f32.gmra.mrb[0].mxu0 %v1194
        %v1708 = vpop.f32.mrb[0].mxu0
        %v1709 = vadd.f32 %v1564, %v1708
        %v1710 = vpop.f32.mrb[0].mxu0
        %1711 = vmatprep.mubr.f32.mxu0 0.0
        %1712 = vmatmul.mubr.f32.gmra.mrb[0].mxu0 %v1199
        %v1713 = vpop.f32.mrb[0].mxu0
        %v1714 = vadd.f32 %v1569, %v1713
        %v1715 = vpop.f32.mrb[0].mxu0
        %1716 = vmatprep.mubr.f32.mxu0 0.0
        %1717 = vmatmul.mubr.f32.gmra.mrb[0].mxu0 %v1204
        %v1718 = vpop.f32.mrb[0].mxu0
        %v1719 = vadd.f32 %v1574, %v1718
        %v1720 = vpop.f32.mrb[0].mxu0
        %1721 = vmatprep.mubr.f32.mxu0 0.0
        %1722 = vmatmul.mubr.f32.gmra.mrb[0].mxu0 %v1209
        %v1723 = vpop.f32.mrb[0].mxu0
        %v1724 = vadd.f32 %v1579, %v1723
        %v1725 = vpop.f32.mrb[0].mxu0
        %1726 = vmatprep.mubr.f32.mxu0 0.0
        %1727 = vmatmul.mubr.f32.gmra.mrb[0].mxu0 %v1214
        %v1728 = vpop.f32.mrb[0].mxu0
        %v1729 = vadd.f32 %v1584, %v1728
        %v1730 = vpop.f32.mrb[0].mxu0
        %1731 = vmatprep.mubr.f32.mxu0 0.0
        %1732 = vmatmul.mubr.f32.gmra.mrb[0].mxu0 %v1219
        %v1733 = vpop.f32.mrb[0].mxu0
        %v1734 = vadd.f32 %v1589, %v1733
        %v1735 = vpop.f32.mrb[0].mxu0
        %1736 = vmatprep.mubr.f32.mxu0 0.0
        %1737 = vmatmul.mubr.f32.gmra.mrb[0].mxu0 %v1224
        %v1738 = vpop.f32.mrb[0].mxu0
        %v1739 = vadd.f32 %v1594, %v1738
        %v1740 = vpop.f32.mrb[0].mxu0
        %1741 = vmatprep.mubr.f32.mxu0 0.0
        %1742 = vmatmul.mubr.f32.gmra.mrb[0].mxu0 %v1229
        %v1743 = vpop.f32.mrb[0].mxu0
        %v1744 = vadd.f32 %v1599, %v1743
        %v1745 = vpop.f32.mrb[0].mxu0
        %1746 = vmatprep.mubr.f32.mxu0 0.0
        %1747 = vmatmul.mubr.f32.gmra.mrb[0].mxu0 %v1234
        %v1748 = vpop.f32.mrb[0].mxu0
        %v1749 = vadd.f32 %v1604, %v1748
        %v1750 = vpop.f32.mrb[0].mxu0
        %1751 = vmatprep.mubr.f32.mxu0 0.0
        %1752 = vmatmul.mubr.f32.gmra.mrb[0].mxu0 %v1239
        %v1753 = vpop.f32.mrb[0].mxu0
        %v1754 = vadd.f32 %v1609, %v1753
        %v1755 = vpop.f32.mrb[0].mxu0
        %1756 = vmatprep.mubr.f32.mxu0 0.0
        %1757 = vmatmul.mubr.f32.gmra.mrb[0].mxu0 %v1244
        %v1758 = vpop.f32.mrb[0].mxu0
        %v1759 = vadd.f32 %v1614, %v1758
        %v1760 = vpop.f32.mrb[0].mxu0
        %1761 = vmatprep.mubr.f32.mxu0 0.0
        %1762 = vmatmul.mubr.f32.gmra.mrb[0].mxu0 %v1249
        %v1763 = vpop.f32.mrb[0].mxu0
        %v1764 = vadd.f32 %v1619, %v1763
        %v1765 = vpop.f32.mrb[0].mxu0
        %1766 = vmatprep.mubr.f32.mxu0 0.0
        %1767 = vmatmul.mubr.f32.gmra.mrb[0].mxu0 %v1254
        %v1768 = vpop.f32.mrb[0].mxu0
        %v1769 = vadd.f32 %v1624, %v1768
        %v1770 = vpop.f32.mrb[0].mxu0
        %1771 = vmatprep.mubr.f32.mxu0 0.0
        %1772 = vmatmul.mubr.f32.gmra.mrb[0].mxu0 %v1259
        %v1773 = vpop.f32.mrb[0].mxu0
        %v1774 = vadd.f32 %v1629, %v1773
        %v1775 = vpop.f32.mrb[0].mxu0
        %1776 = vmatprep.mubr.f32.mxu0 0.0
        %1777 = vmatmul.mubr.f32.gmra.mrb[0].mxu0 %v1264
        %v1778 = vpop.f32.mrb[0].mxu0
        %v1779 = vadd.f32 %v1634, %v1778
        %v1780 = vpop.f32.mrb[0].mxu0
        %1781 = vdwg.mxu0
        %v1782 = vld [vmem:[%s8] sm:$0xff]
        %v1783 = vld [vmem:[%s8 + $0x8] sm:$0xff]
        %v1784 = vld [vmem:[%s8 + $0x10] sm:$0xff]
        %v1785 = vld [vmem:[%s8 + $0x18] sm:$0xff]
        %v1786 = vld [vmem:[%s8 + $0x20] sm:$0xff]
        %v1787 = vld [vmem:[%s8 + $0x28] sm:$0xff]
        %v1788 = vld [vmem:[%s8 + $0x30] sm:$0xff]
        %v1789 = vld [vmem:[%s8 + $0x38] sm:$0xff]
        %v1790 = vld [vmem:[%s8 + $0x40] sm:$0xff]
        %v1791 = vld [vmem:[%s8 + $0x48] sm:$0xff]
        %v1792 = vld [vmem:[%s8 + $0x50] sm:$0xff]
        %v1793 = vld [vmem:[%s8 + $0x58] sm:$0xff]
        %v1794 = vld [vmem:[%s8 + $0x60] sm:$0xff]
        %v1795 = vld [vmem:[%s8 + $0x68] sm:$0xff]
        %v1796 = vld [vmem:[%s8 + $0x70] sm:$0xff]
        %v1797 = vld [vmem:[%s8 + $0x78] sm:$0xff]
        %1798 = vmatprep.subr.mxu0 0.0
        %1799 = vmatpush1.msra.mxu0 %v1782
        %1800 = vmatprep.subr.mxu0 0.0
        %1801 = vmatpush1.msra.mxu0 %v1783
        %1802 = vmatprep.subr.mxu0 0.0
        %1803 = vmatpush1.msra.mxu0 %v1784
        %1804 = vmatprep.subr.mxu0 0.0
        %1805 = vmatpush1.msra.mxu0 %v1785
        %1806 = vmatprep.subr.mxu0 0.0
        %1807 = vmatpush1.msra.mxu0 %v1786
        %1808 = vmatprep.subr.mxu0 0.0
        %1809 = vmatpush1.msra.mxu0 %v1787
        %1810 = vmatprep.subr.mxu0 0.0
        %1811 = vmatpush1.msra.mxu0 %v1788
        %1812 = vmatprep.subr.mxu0 0.0
        %1813 = vmatpush1.msra.mxu0 %v1789
        %1814 = vmatprep.subr.mxu0 0.0
        %1815 = vmatpush1.msra.mxu0 %v1790
        %1816 = vmatprep.subr.mxu0 0.0
        %1817 = vmatpush1.msra.mxu0 %v1791
        %1818 = vmatprep.subr.mxu0 0.0
        %1819 = vmatpush1.msra.mxu0 %v1792
        %1820 = vmatprep.subr.mxu0 0.0
        %1821 = vmatpush1.msra.mxu0 %v1793
        %1822 = vmatprep.subr.mxu0 0.0
        %1823 = vmatpush1.msra.mxu0 %v1794
        %1824 = vmatprep.subr.mxu0 0.0
        %1825 = vmatpush1.msra.mxu0 %v1795
        %1826 = vmatprep.subr.mxu0 0.0
        %1827 = vmatpush1.msra.mxu0 %v1796
        %1828 = vmatprep.subr.mxu0 0.0
        %1829 = vmatpush1.msra.mxu0 %v1797
        %1830 = vmatprep.subr.mxu0 0.0
        %1831 = vmatpush1.msra.mxu0 0.0
        %1832 = vmatprep.subr.mxu0 0.0
        %1833 = vmatpush1.msra.mxu0 0.0
        %1834 = vmatprep.subr.mxu0 0.0
        %1835 = vmatpush1.msra.mxu0 0.0
        %1836 = vmatprep.subr.mxu0 0.0
        %1837 = vmatpush1.msra.mxu0 0.0
        %1838 = vmatprep.subr.mxu0 0.0
        %1839 = vmatpush1.msra.mxu0 0.0
        %1840 = vmatprep.subr.mxu0 0.0
        %1841 = vmatpush1.msra.mxu0 0.0
        %1842 = vmatprep.subr.mxu0 0.0
        %1843 = vmatpush1.msra.mxu0 0.0
        %1844 = vmatprep.subr.mxu0 0.0
        %1845 = vmatpush1.msra.mxu0 0.0
        %1846 = vmatprep.subr.mxu0 0.0
        %1847 = vmatpush1.msra.mxu0 0.0
        %1848 = vmatprep.subr.mxu0 0.0
        %1849 = vmatpush1.msra.mxu0 0.0
        %1850 = vmatprep.subr.mxu0 0.0
        %1851 = vmatpush1.msra.mxu0 0.0
        %1852 = vmatprep.subr.mxu0 0.0
        %1853 = vmatpush1.msra.mxu0 0.0
        %1854 = vmatprep.subr.mxu0 0.0
        %1855 = vmatpush1.msra.mxu0 0.0
        %1856 = vmatprep.subr.mxu0 0.0
        %1857 = vmatpush1.msra.mxu0 0.0
        %1858 = vmatprep.subr.mxu0 0.0
        %1859 = vmatpush1.msra.mxu0 0.0
        %1860 = vmatprep.subr.mxu0 0.0
        %1861 = vmatpush1.msra.mxu0 0.0
        %1862 = vmatprep.mubr.f32.mxu0 0.0
        %1863 = vmatmul.mubr.f32.gmra.mrb[0].mxu0 %v1382
        %v1864 = vpop.f32.mrb[0].mxu0
        %v1865 = vadd.f32 0.0, %v1864
        %v1866 = vpop.f32.mrb[0].mxu0
        %1867 = vmatprep.mubr.f32.mxu0 0.0
        %1868 = vmatmul.mubr.f32.gmra.mrb[0].mxu0 %v1387
        %v1869 = vpop.f32.mrb[0].mxu0
        %v1870 = vadd.f32 0.0, %v1869
        %v1871 = vpop.f32.mrb[0].mxu0
        %1872 = vmatprep.mubr.f32.mxu0 0.0
        %1873 = vmatmul.mubr.f32.gmra.mrb[0].mxu0 %v1392
        %v1874 = vpop.f32.mrb[0].mxu0
        %v1875 = vadd.f32 0.0, %v1874
        %v1876 = vpop.f32.mrb[0].mxu0
        %1877 = vmatprep.mubr.f32.mxu0 0.0
        %1878 = vmatmul.mubr.f32.gmra.mrb[0].mxu0 %v1397
        %v1879 = vpop.f32.mrb[0].mxu0
        %v1880 = vadd.f32 0.0, %v1879
        %v1881 = vpop.f32.mrb[0].mxu0
        %1882 = vmatprep.mubr.f32.mxu0 0.0
        %1883 = vmatmul.mubr.f32.gmra.mrb[0].mxu0 %v1402
        %v1884 = vpop.f32.mrb[0].mxu0
        %v1885 = vadd.f32 0.0, %v1884
        %v1886 = vpop.f32.mrb[0].mxu0
        %1887 = vmatprep.mubr.f32.mxu0 0.0
        %1888 = vmatmul.mubr.f32.gmra.mrb[0].mxu0 %v1407
        %v1889 = vpop.f32.mrb[0].mxu0
        %v1890 = vadd.f32 0.0, %v1889
        %v1891 = vpop.f32.mrb[0].mxu0
        %1892 = vmatprep.mubr.f32.mxu0 0.0
        %1893 = vmatmul.mubr.f32.gmra.mrb[0].mxu0 %v1412
        %v1894 = vpop.f32.mrb[0].mxu0
        %v1895 = vadd.f32 0.0, %v1894
        %v1896 = vpop.f32.mrb[0].mxu0
        %1897 = vmatprep.mubr.f32.mxu0 0.0
        %1898 = vmatmul.mubr.f32.gmra.mrb[0].mxu0 %v1417
        %v1899 = vpop.f32.mrb[0].mxu0
        %v1900 = vadd.f32 0.0, %v1899
        %v1901 = vpop.f32.mrb[0].mxu0
        %1902 = vmatprep.mubr.f32.mxu0 0.0
        %1903 = vmatmul.mubr.f32.gmra.mrb[0].mxu0 %v1422
        %v1904 = vpop.f32.mrb[0].mxu0
        %v1905 = vadd.f32 0.0, %v1904
        %v1906 = vpop.f32.mrb[0].mxu0
        %1907 = vmatprep.mubr.f32.mxu0 0.0
        %1908 = vmatmul.mubr.f32.gmra.mrb[0].mxu0 %v1427
        %v1909 = vpop.f32.mrb[0].mxu0
        %v1910 = vadd.f32 0.0, %v1909
        %v1911 = vpop.f32.mrb[0].mxu0
        %1912 = vmatprep.mubr.f32.mxu0 0.0
        %1913 = vmatmul.mubr.f32.gmra.mrb[0].mxu0 %v1432
        %v1914 = vpop.f32.mrb[0].mxu0
        %v1915 = vadd.f32 0.0, %v1914
        %v1916 = vpop.f32.mrb[0].mxu0
        %1917 = vmatprep.mubr.f32.mxu0 0.0
        %1918 = vmatmul.mubr.f32.gmra.mrb[0].mxu0 %v1437
        %v1919 = vpop.f32.mrb[0].mxu0
        %v1920 = vadd.f32 0.0, %v1919
        %v1921 = vpop.f32.mrb[0].mxu0
        %1922 = vmatprep.mubr.f32.mxu0 0.0
        %1923 = vmatmul.mubr.f32.gmra.mrb[0].mxu0 %v1442
        %v1924 = vpop.f32.mrb[0].mxu0
        %v1925 = vadd.f32 0.0, %v1924
        %v1926 = vpop.f32.mrb[0].mxu0
        %1927 = vmatprep.mubr.f32.mxu0 0.0
        %1928 = vmatmul.mubr.f32.gmra.mrb[0].mxu0 %v1447
        %v1929 = vpop.f32.mrb[0].mxu0
        %v1930 = vadd.f32 0.0, %v1929
        %v1931 = vpop.f32.mrb[0].mxu0
        %1932 = vmatprep.mubr.f32.mxu0 0.0
        %1933 = vmatmul.mubr.f32.gmra.mrb[0].mxu0 %v1452
        %v1934 = vpop.f32.mrb[0].mxu0
        %v1935 = vadd.f32 0.0, %v1934
        %v1936 = vpop.f32.mrb[0].mxu0
        %1937 = vmatprep.mubr.f32.mxu0 0.0
        %1938 = vmatmul.mubr.f32.gmra.mrb[0].mxu0 %v1457
        %v1939 = vpop.f32.mrb[0].mxu0
        %v1940 = vadd.f32 0.0, %v1939
        %v1941 = vpop.f32.mrb[0].mxu0
        %1942 = vdwg.mxu0
        %v1943 = vadd.f32 %v1704, %v1865
        %v1944 = vadd.f32 %v1709, %v1870
        %v1945 = vadd.f32 %v1714, %v1875
        %v1946 = vadd.f32 %v1719, %v1880
        %v1947 = vadd.f32 %v1724, %v1885
        %v1948 = vadd.f32 %v1729, %v1890
        %v1949 = vadd.f32 %v1734, %v1895
        %v1950 = vadd.f32 %v1739, %v1900
        %v1951 = vadd.f32 %v1744, %v1905
        %v1952 = vadd.f32 %v1749, %v1910
        %v1953 = vadd.f32 %v1754, %v1915
        %v1954 = vadd.f32 %v1759, %v1920
        %v1955 = vadd.f32 %v1764, %v1925
        %v1956 = vadd.f32 %v1769, %v1930
        %v1957 = vadd.f32 %v1774, %v1935
        %v1958 = vadd.f32 %v1779, %v1940
        %v1959 = vld [vmem:[%s9] sm:$0x1]
        %v1961 = vlaneseq
        %v1962 = vshrl.u32 %v1961, 7
        %v1963 = vsub.s32 0, %v1962
        %v1964 = vrot.slane %v1959, %v1963
        %v1966 = vadd.f32 %v1943, %v1964
        %v1967 = vadd.f32 %v1944, %v1964
        %v1968 = vadd.f32 %v1945, %v1964
        %v1969 = vadd.f32 %v1946, %v1964
        %v1970 = vadd.f32 %v1947, %v1964
        %v1971 = vadd.f32 %v1948, %v1964
        %v1972 = vadd.f32 %v1949, %v1964
        %v1973 = vadd.f32 %v1950, %v1964
        %v1974 = vadd.f32 %v1951, %v1964
        %v1975 = vadd.f32 %v1952, %v1964
        %v1976 = vadd.f32 %v1953, %v1964
        %v1977 = vadd.f32 %v1954, %v1964
        %v1978 = vadd.f32 %v1955, %v1964
        %v1979 = vadd.f32 %v1956, %v1964
        %v1980 = vadd.f32 %v1957, %v1964
        %v1981 = vadd.f32 %v1958, %v1964
        %v1982 = vmax.f32 %v1966, 0.0
        %v1983 = vmax.f32 %v1967, 0.0
        %v1984 = vmax.f32 %v1968, 0.0
        %v1985 = vmax.f32 %v1969, 0.0
        %v1986 = vmax.f32 %v1970, 0.0
        %v1987 = vmax.f32 %v1971, 0.0
        %v1988 = vmax.f32 %v1972, 0.0
        %v1989 = vmax.f32 %v1973, 0.0
        %v1990 = vmax.f32 %v1974, 0.0
        %v1991 = vmax.f32 %v1975, 0.0
        %v1992 = vmax.f32 %v1976, 0.0
        %v1993 = vmax.f32 %v1977, 0.0
        %v1994 = vmax.f32 %v1978, 0.0
        %v1995 = vmax.f32 %v1979, 0.0
        %v1996 = vmax.f32 %v1980, 0.0
        %v1997 = vmax.f32 %v1981, 0.0
        %v1998 = vld [vmem:[#allocation7] sm:$0xff]
        %v1999 = vld [vmem:[#allocation7 + $0x8] sm:$0xff]
        %v2000 = vld [vmem:[#allocation7 + $0x10] sm:$0xff]
        %v2001 = vld [vmem:[#allocation7 + $0x18] sm:$0xff]
        %v2002 = vld [vmem:[#allocation7 + $0x20] sm:$0xff]
        %v2003 = vld [vmem:[#allocation7 + $0x28] sm:$0xff]
        %v2004 = vld [vmem:[#allocation7 + $0x30] sm:$0xff]
        %v2005 = vld [vmem:[#allocation7 + $0x38] sm:$0xff]
        %v2006 = vld [vmem:[#allocation7 + $0x40] sm:$0xff]
        %v2007 = vld [vmem:[#allocation7 + $0x48] sm:$0xff]
        %v2008 = vld [vmem:[#allocation7 + $0x50] sm:$0xff]
        %v2009 = vld [vmem:[#allocation7 + $0x58] sm:$0xff]
        %v2010 = vld [vmem:[#allocation7 + $0x60] sm:$0xff]
        %v2011 = vld [vmem:[#allocation7 + $0x68] sm:$0xff]
        %v2012 = vld [vmem:[#allocation7 + $0x70] sm:$0xff]
        %v2013 = vld [vmem:[#allocation7 + $0x78] sm:$0xff]
        %v2014 = vld [vmem:[%s13] sm:$0x1]
        %v2016 = vlaneseq
        %v2017 = vshrl.u32 %v2016, 7
        %v2018 = vsub.s32 0, %v2017
        %v2019 = vrot.slane %v2014, %v2018
        %2021 = vmatprep.subr.mxu0 0.0
        %2022 = vmatpush1.msra.mxu0 %v1998
        %2023 = vmatprep.subr.mxu0 0.0
        %2024 = vmatpush1.msra.mxu0 %v1999
        %2025 = vmatprep.subr.mxu0 0.0
        %2026 = vmatpush1.msra.mxu0 %v2000
        %2027 = vmatprep.subr.mxu0 0.0
        %2028 = vmatpush1.msra.mxu0 %v2001
        %2029 = vmatprep.subr.mxu0 0.0
        %2030 = vmatpush1.msra.mxu0 %v2002
        %2031 = vmatprep.subr.mxu0 0.0
        %2032 = vmatpush1.msra.mxu0 %v2003
        %2033 = vmatprep.subr.mxu0 0.0
        %2034 = vmatpush1.msra.mxu0 %v2004
        %2035 = vmatprep.subr.mxu0 0.0
        %2036 = vmatpush1.msra.mxu0 %v2005
        %2037 = vmatprep.subr.mxu0 0.0
        %2038 = vmatpush1.msra.mxu0 %v2006
        %2039 = vmatprep.subr.mxu0 0.0
        %2040 = vmatpush1.msra.mxu0 %v2007
        %2041 = vmatprep.subr.mxu0 0.0
        %2042 = vmatpush1.msra.mxu0 %v2008
        %2043 = vmatprep.subr.mxu0 0.0
        %2044 = vmatpush1.msra.mxu0 %v2009
        %2045 = vmatprep.subr.mxu0 0.0
        %2046 = vmatpush1.msra.mxu0 %v2010
        %2047 = vmatprep.subr.mxu0 0.0
        %2048 = vmatpush1.msra.mxu0 %v2011
        %2049 = vmatprep.subr.mxu0 0.0
        %2050 = vmatpush1.msra.mxu0 %v2012
        %2051 = vmatprep.subr.mxu0 0.0
        %2052 = vmatpush1.msra.mxu0 %v2013
        %2053 = vmatprep.subr.mxu0 0.0
        %2054 = vmatpush1.msra.mxu0 0.0
        %2055 = vmatprep.subr.mxu0 0.0
        %2056 = vmatpush1.msra.mxu0 0.0
        %2057 = vmatprep.subr.mxu0 0.0
        %2058 = vmatpush1.msra.mxu0 0.0
        %2059 = vmatprep.subr.mxu0 0.0
        %2060 = vmatpush1.msra.mxu0 0.0
        %2061 = vmatprep.subr.mxu0 0.0
        %2062 = vmatpush1.msra.mxu0 0.0
        %2063 = vmatprep.subr.mxu0 0.0
        %2064 = vmatpush1.msra.mxu0 0.0
        %2065 = vmatprep.subr.mxu0 0.0
        %2066 = vmatpush1.msra.mxu0 0.0
        %2067 = vmatprep.subr.mxu0 0.0
        %2068 = vmatpush1.msra.mxu0 0.0
        %2069 = vmatprep.subr.mxu0 0.0
        %2070 = vmatpush1.msra.mxu0 0.0
        %2071 = vmatprep.subr.mxu0 0.0
        %2072 = vmatpush1.msra.mxu0 0.0
        %2073 = vmatprep.subr.mxu0 0.0
        %2074 = vmatpush1.msra.mxu0 0.0
        %2075 = vmatprep.subr.mxu0 0.0
        %2076 = vmatpush1.msra.mxu0 0.0
        %2077 = vmatprep.subr.mxu0 0.0
        %2078 = vmatpush1.msra.mxu0 0.0
        %2079 = vmatprep.subr.mxu0 0.0
        %2080 = vmatpush1.msra.mxu0 0.0
        %2081 = vmatprep.subr.mxu0 0.0
        %2082 = vmatpush1.msra.mxu0 0.0
        %2083 = vmatprep.subr.mxu0 0.0
        %2084 = vmatpush1.msra.mxu0 0.0
        %2085 = vmatprep.mubr.f32.mxu0 0.0
        %2086 = vmatmul.mubr.f32.gmra.mrb[0].mxu0 %v1982
        %v2087 = vpop.f32.mrb[0].mxu0
        %v2088 = vadd.f32 %v2019, %v2087
        %v2089 = vpop.f32.mrb[0].mxu0
        %2090 = vmatprep.mubr.f32.mxu0 0.0
        %2091 = vmatmul.mubr.f32.gmra.mrb[0].mxu0 %v1983
        %v2092 = vpop.f32.mrb[0].mxu0
        %v2093 = vadd.f32 %v2019, %v2092
        %v2094 = vpop.f32.mrb[0].mxu0
        %2095 = vmatprep.mubr.f32.mxu0 0.0
        %2096 = vmatmul.mubr.f32.gmra.mrb[0].mxu0 %v1984
        %v2097 = vpop.f32.mrb[0].mxu0
        %v2098 = vadd.f32 %v2019, %v2097
        %v2099 = vpop.f32.mrb[0].mxu0
        %2100 = vmatprep.mubr.f32.mxu0 0.0
        %2101 = vmatmul.mubr.f32.gmra.mrb[0].mxu0 %v1985
        %v2102 = vpop.f32.mrb[0].mxu0
        %v2103 = vadd.f32 %v2019, %v2102
        %v2104 = vpop.f32.mrb[0].mxu0
        %2105 = vmatprep.mubr.f32.mxu0 0.0
        %2106 = vmatmul.mubr.f32.gmra.mrb[0].mxu0 %v1986
        %v2107 = vpop.f32.mrb[0].mxu0
        %v2108 = vadd.f32 %v2019, %v2107
        %v2109 = vpop.f32.mrb[0].mxu0
        %2110 = vmatprep.mubr.f32.mxu0 0.0
        %2111 = vmatmul.mubr.f32.gmra.mrb[0].mxu0 %v1987
        %v2112 = vpop.f32.mrb[0].mxu0
        %v2113 = vadd.f32 %v2019, %v2112
        %v2114 = vpop.f32.mrb[0].mxu0
        %2115 = vmatprep.mubr.f32.mxu0 0.0
        %2116 = vmatmul.mubr.f32.gmra.mrb[0].mxu0 %v1988
        %v2117 = vpop.f32.mrb[0].mxu0
        %v2118 = vadd.f32 %v2019, %v2117
        %v2119 = vpop.f32.mrb[0].mxu0
        %2120 = vmatprep.mubr.f32.mxu0 0.0
        %2121 = vmatmul.mubr.f32.gmra.mrb[0].mxu0 %v1989
        %v2122 = vpop.f32.mrb[0].mxu0
        %v2123 = vadd.f32 %v2019, %v2122
        %v2124 = vpop.f32.mrb[0].mxu0
        %2125 = vmatprep.mubr.f32.mxu0 0.0
        %2126 = vmatmul.mubr.f32.gmra.mrb[0].mxu0 %v1990
        %v2127 = vpop.f32.mrb[0].mxu0
        %v2128 = vadd.f32 %v2019, %v2127
        %v2129 = vpop.f32.mrb[0].mxu0
        %2130 = vmatprep.mubr.f32.mxu0 0.0
        %2131 = vmatmul.mubr.f32.gmra.mrb[0].mxu0 %v1991
        %v2132 = vpop.f32.mrb[0].mxu0
        %v2133 = vadd.f32 %v2019, %v2132
        %v2134 = vpop.f32.mrb[0].mxu0
        %2135 = vmatprep.mubr.f32.mxu0 0.0
        %2136 = vmatmul.mubr.f32.gmra.mrb[0].mxu0 %v1992
        %v2137 = vpop.f32.mrb[0].mxu0
        %v2138 = vadd.f32 %v2019, %v2137
        %v2139 = vpop.f32.mrb[0].mxu0
        %2140 = vmatprep.mubr.f32.mxu0 0.0
        %2141 = vmatmul.mubr.f32.gmra.mrb[0].mxu0 %v1993
        %v2142 = vpop.f32.mrb[0].mxu0
        %v2143 = vadd.f32 %v2019, %v2142
        %v2144 = vpop.f32.mrb[0].mxu0
        %2145 = vmatprep.mubr.f32.mxu0 0.0
        %2146 = vmatmul.mubr.f32.gmra.mrb[0].mxu0 %v1994
        %v2147 = vpop.f32.mrb[0].mxu0
        %v2148 = vadd.f32 %v2019, %v2147
        %v2149 = vpop.f32.mrb[0].mxu0
        %2150 = vmatprep.mubr.f32.mxu0 0.0
        %2151 = vmatmul.mubr.f32.gmra.mrb[0].mxu0 %v1995
        %v2152 = vpop.f32.mrb[0].mxu0
        %v2153 = vadd.f32 %v2019, %v2152
        %v2154 = vpop.f32.mrb[0].mxu0
        %2155 = vmatprep.mubr.f32.mxu0 0.0
        %2156 = vmatmul.mubr.f32.gmra.mrb[0].mxu0 %v1996
        %v2157 = vpop.f32.mrb[0].mxu0
        %v2158 = vadd.f32 %v2019, %v2157
        %v2159 = vpop.f32.mrb[0].mxu0
        %2160 = vmatprep.mubr.f32.mxu0 0.0
        %2161 = vmatmul.mubr.f32.gmra.mrb[0].mxu0 %v1997
        %v2162 = vpop.f32.mrb[0].mxu0
        %v2163 = vadd.f32 %v2019, %v2162
        %v2164 = vpop.f32.mrb[0].mxu0
        %2165 = vdwg.mxu0
        %v2166 = vmax.f32 %v2088, 0.0
        %v2167 = vmax.f32 %v2093, 0.0
        %v2168 = vmax.f32 %v2098, 0.0
        %v2169 = vmax.f32 %v2103, 0.0
        %v2170 = vmax.f32 %v2108, 0.0
        %v2171 = vmax.f32 %v2113, 0.0
        %v2172 = vmax.f32 %v2118, 0.0
        %v2173 = vmax.f32 %v2123, 0.0
        %v2174 = vmax.f32 %v2128, 0.0
        %v2175 = vmax.f32 %v2133, 0.0
        %v2176 = vmax.f32 %v2138, 0.0
        %v2177 = vmax.f32 %v2143, 0.0
        %v2178 = vmax.f32 %v2148, 0.0
        %v2179 = vmax.f32 %v2153, 0.0
        %v2180 = vmax.f32 %v2158, 0.0
        %v2181 = vmax.f32 %v2163, 0.0
        %v2182 = vld [vmem:[#allocation9] sm:$0xff]
        %v2183 = vld [vmem:[#allocation9 + $0x8] sm:$0xff]
        %v2184 = vld [vmem:[#allocation9 + $0x10] sm:$0xff]
        %v2185 = vld [vmem:[#allocation9 + $0x18] sm:$0xff]
        %v2186 = vld [vmem:[#allocation9 + $0x20] sm:$0xff]
        %v2187 = vld [vmem:[#allocation9 + $0x28] sm:$0xff]
        %v2188 = vld [vmem:[#allocation9 + $0x30] sm:$0xff]
        %v2189 = vld [vmem:[#allocation9 + $0x38] sm:$0xff]
        %v2190 = vld [vmem:[#allocation9 + $0x40] sm:$0xff]
        %v2191 = vld [vmem:[#allocation9 + $0x48] sm:$0xff]
        %v2192 = vld [vmem:[#allocation9 + $0x50] sm:$0xff]
        %v2193 = vld [vmem:[#allocation9 + $0x58] sm:$0xff]
        %v2194 = vld [vmem:[#allocation9 + $0x60] sm:$0xff]
        %v2195 = vld [vmem:[#allocation9 + $0x68] sm:$0xff]
        %v2196 = vld [vmem:[#allocation9 + $0x70] sm:$0xff]
        %v2197 = vld [vmem:[#allocation9 + $0x78] sm:$0xff]
        %v2198 = vld [vmem:[%s14] sm:$0x1]
        %v2200 = vlaneseq
        %v2201 = vshrl.u32 %v2200, 7
        %v2202 = vsub.s32 0, %v2201
        %v2203 = vrot.slane %v2198, %v2202
        %2205 = vmatprep.subr.mxu0 0.0
        %2206 = vmatpush1.msra.mxu0 %v2182
        %2207 = vmatprep.subr.mxu0 0.0
        %2208 = vmatpush1.msra.mxu0 %v2183
        %2209 = vmatprep.subr.mxu0 0.0
        %2210 = vmatpush1.msra.mxu0 %v2184
        %2211 = vmatprep.subr.mxu0 0.0
        %2212 = vmatpush1.msra.mxu0 %v2185
        %2213 = vmatprep.subr.mxu0 0.0
        %2214 = vmatpush1.msra.mxu0 %v2186
        %2215 = vmatprep.subr.mxu0 0.0
        %2216 = vmatpush1.msra.mxu0 %v2187
        %2217 = vmatprep.subr.mxu0 0.0
        %2218 = vmatpush1.msra.mxu0 %v2188
        %2219 = vmatprep.subr.mxu0 0.0
        %2220 = vmatpush1.msra.mxu0 %v2189
        %2221 = vmatprep.subr.mxu0 0.0
        %2222 = vmatpush1.msra.mxu0 %v2190
        %2223 = vmatprep.subr.mxu0 0.0
        %2224 = vmatpush1.msra.mxu0 %v2191
        %2225 = vmatprep.subr.mxu0 0.0
        %2226 = vmatpush1.msra.mxu0 %v2192
        %2227 = vmatprep.subr.mxu0 0.0
        %2228 = vmatpush1.msra.mxu0 %v2193
        %2229 = vmatprep.subr.mxu0 0.0
        %2230 = vmatpush1.msra.mxu0 %v2194
        %2231 = vmatprep.subr.mxu0 0.0
        %2232 = vmatpush1.msra.mxu0 %v2195
        %2233 = vmatprep.subr.mxu0 0.0
        %2234 = vmatpush1.msra.mxu0 %v2196
        %2235 = vmatprep.subr.mxu0 0.0
        %2236 = vmatpush1.msra.mxu0 %v2197
        %2237 = vmatprep.subr.mxu0 0.0
        %2238 = vmatpush1.msra.mxu0 0.0
        %2239 = vmatprep.subr.mxu0 0.0
        %2240 = vmatpush1.msra.mxu0 0.0
        %2241 = vmatprep.subr.mxu0 0.0
        %2242 = vmatpush1.msra.mxu0 0.0
        %2243 = vmatprep.subr.mxu0 0.0
        %2244 = vmatpush1.msra.mxu0 0.0
        %2245 = vmatprep.subr.mxu0 0.0
        %2246 = vmatpush1.msra.mxu0 0.0
        %2247 = vmatprep.subr.mxu0 0.0
        %2248 = vmatpush1.msra.mxu0 0.0
        %2249 = vmatprep.subr.mxu0 0.0
        %2250 = vmatpush1.msra.mxu0 0.0
        %2251 = vmatprep.subr.mxu0 0.0
        %2252 = vmatpush1.msra.mxu0 0.0
        %2253 = vmatprep.subr.mxu0 0.0
        %2254 = vmatpush1.msra.mxu0 0.0
        %2255 = vmatprep.subr.mxu0 0.0
        %2256 = vmatpush1.msra.mxu0 0.0
        %2257 = vmatprep.subr.mxu0 0.0
        %2258 = vmatpush1.msra.mxu0 0.0
        %2259 = vmatprep.subr.mxu0 0.0
        %2260 = vmatpush1.msra.mxu0 0.0
        %2261 = vmatprep.subr.mxu0 0.0
        %2262 = vmatpush1.msra.mxu0 0.0
        %2263 = vmatprep.subr.mxu0 0.0
        %2264 = vmatpush1.msra.mxu0 0.0
        %2265 = vmatprep.subr.mxu0 0.0
        %2266 = vmatpush1.msra.mxu0 0.0
        %2267 = vmatprep.subr.mxu0 0.0
        %2268 = vmatpush1.msra.mxu0 0.0
        %2269 = vmatprep.mubr.f32.mxu0 0.0
        %2270 = vmatmul.mubr.f32.gmra.mrb[0].mxu0 %v1982
        %v2271 = vpop.f32.mrb[0].mxu0
        %v2272 = vadd.f32 %v2203, %v2271
        %v2273 = vpop.f32.mrb[0].mxu0
        %2274 = vmatprep.mubr.f32.mxu0 0.0
        %2275 = vmatmul.mubr.f32.gmra.mrb[0].mxu0 %v1983
        %v2276 = vpop.f32.mrb[0].mxu0
        %v2277 = vadd.f32 %v2203, %v2276
        %v2278 = vpop.f32.mrb[0].mxu0
        %2279 = vmatprep.mubr.f32.mxu0 0.0
        %2280 = vmatmul.mubr.f32.gmra.mrb[0].mxu0 %v1984
        %v2281 = vpop.f32.mrb[0].mxu0
        %v2282 = vadd.f32 %v2203, %v2281
        %v2283 = vpop.f32.mrb[0].mxu0
        %2284 = vmatprep.mubr.f32.mxu0 0.0
        %2285 = vmatmul.mubr.f32.gmra.mrb[0].mxu0 %v1985
        %v2286 = vpop.f32.mrb[0].mxu0
        %v2287 = vadd.f32 %v2203, %v2286
        %v2288 = vpop.f32.mrb[0].mxu0
        %2289 = vmatprep.mubr.f32.mxu0 0.0
        %2290 = vmatmul.mubr.f32.gmra.mrb[0].mxu0 %v1986
        %v2291 = vpop.f32.mrb[0].mxu0
        %v2292 = vadd.f32 %v2203, %v2291
        %v2293 = vpop.f32.mrb[0].mxu0
        %2294 = vmatprep.mubr.f32.mxu0 0.0
        %2295 = vmatmul.mubr.f32.gmra.mrb[0].mxu0 %v1987
        %v2296 = vpop.f32.mrb[0].mxu0
        %v2297 = vadd.f32 %v2203, %v2296
        %v2298 = vpop.f32.mrb[0].mxu0
        %2299 = vmatprep.mubr.f32.mxu0 0.0
        %2300 = vmatmul.mubr.f32.gmra.mrb[0].mxu0 %v1988
        %v2301 = vpop.f32.mrb[0].mxu0
        %v2302 = vadd.f32 %v2203, %v2301
        %v2303 = vpop.f32.mrb[0].mxu0
        %2304 = vmatprep.mubr.f32.mxu0 0.0
        %2305 = vmatmul.mubr.f32.gmra.mrb[0].mxu0 %v1989
        %v2306 = vpop.f32.mrb[0].mxu0
        %v2307 = vadd.f32 %v2203, %v2306
        %v2308 = vpop.f32.mrb[0].mxu0
        %2309 = vmatprep.mubr.f32.mxu0 0.0
        %2310 = vmatmul.mubr.f32.gmra.mrb[0].mxu0 %v1990
        %v2311 = vpop.f32.mrb[0].mxu0
        %v2312 = vadd.f32 %v2203, %v2311
        %v2313 = vpop.f32.mrb[0].mxu0
        %2314 = vmatprep.mubr.f32.mxu0 0.0
        %2315 = vmatmul.mubr.f32.gmra.mrb[0].mxu0 %v1991
        %v2316 = vpop.f32.mrb[0].mxu0
        %v2317 = vadd.f32 %v2203, %v2316
        %v2318 = vpop.f32.mrb[0].mxu0
        %2319 = vmatprep.mubr.f32.mxu0 0.0
        %2320 = vmatmul.mubr.f32.gmra.mrb[0].mxu0 %v1992
        %v2321 = vpop.f32.mrb[0].mxu0
        %v2322 = vadd.f32 %v2203, %v2321
        %v2323 = vpop.f32.mrb[0].mxu0
        %2324 = vmatprep.mubr.f32.mxu0 0.0
        %2325 = vmatmul.mubr.f32.gmra.mrb[0].mxu0 %v1993
        %v2326 = vpop.f32.mrb[0].mxu0
        %v2327 = vadd.f32 %v2203, %v2326
        %v2328 = vpop.f32.mrb[0].mxu0
        %2329 = vmatprep.mubr.f32.mxu0 0.0
        %2330 = vmatmul.mubr.f32.gmra.mrb[0].mxu0 %v1994
        %v2331 = vpop.f32.mrb[0].mxu0
        %v2332 = vadd.f32 %v2203, %v2331
        %v2333 = vpop.f32.mrb[0].mxu0
        %2334 = vmatprep.mubr.f32.mxu0 0.0
        %2335 = vmatmul.mubr.f32.gmra.mrb[0].mxu0 %v1995
        %v2336 = vpop.f32.mrb[0].mxu0
        %v2337 = vadd.f32 %v2203, %v2336
        %v2338 = vpop.f32.mrb[0].mxu0
        %2339 = vmatprep.mubr.f32.mxu0 0.0
        %2340 = vmatmul.mubr.f32.gmra.mrb[0].mxu0 %v1996
        %v2341 = vpop.f32.mrb[0].mxu0
        %v2342 = vadd.f32 %v2203, %v2341
        %v2343 = vpop.f32.mrb[0].mxu0
        %2344 = vmatprep.mubr.f32.mxu0 0.0
        %2345 = vmatmul.mubr.f32.gmra.mrb[0].mxu0 %v1997
        %v2346 = vpop.f32.mrb[0].mxu0
        %v2347 = vadd.f32 %v2203, %v2346
        %v2348 = vpop.f32.mrb[0].mxu0
        %2349 = vdwg.mxu0
        %v2350 = vmax.f32 %v2272, 0.0
        %v2351 = vmax.f32 %v2277, 0.0
        %v2352 = vmax.f32 %v2282, 0.0
        %v2353 = vmax.f32 %v2287, 0.0
        %v2354 = vmax.f32 %v2292, 0.0
        %v2355 = vmax.f32 %v2297, 0.0
        %v2356 = vmax.f32 %v2302, 0.0
        %v2357 = vmax.f32 %v2307, 0.0
        %v2358 = vmax.f32 %v2312, 0.0
        %v2359 = vmax.f32 %v2317, 0.0
        %v2360 = vmax.f32 %v2322, 0.0
        %v2361 = vmax.f32 %v2327, 0.0
        %v2362 = vmax.f32 %v2332, 0.0
        %v2363 = vmax.f32 %v2337, 0.0
        %v2364 = vmax.f32 %v2342, 0.0
        %v2365 = vmax.f32 %v2347, 0.0
        %v2366 = vld [vmem:[#allocation10] sm:$0xff]
        %v2367 = vld [vmem:[#allocation10 + $0x8] sm:$0xff]
        %v2368 = vld [vmem:[#allocation10 + $0x10] sm:$0xff]
        %v2369 = vld [vmem:[#allocation10 + $0x18] sm:$0xff]
        %v2370 = vld [vmem:[#allocation10 + $0x20] sm:$0xff]
        %v2371 = vld [vmem:[#allocation10 + $0x28] sm:$0xff]
        %v2372 = vld [vmem:[#allocation10 + $0x30] sm:$0xff]
        %v2373 = vld [vmem:[#allocation10 + $0x38] sm:$0xff]
        %v2374 = vld [vmem:[#allocation10 + $0x40] sm:$0xff]
        %v2375 = vld [vmem:[#allocation10 + $0x48] sm:$0xff]
        %v2376 = vld [vmem:[#allocation10 + $0x50] sm:$0xff]
        %v2377 = vld [vmem:[#allocation10 + $0x58] sm:$0xff]
        %v2378 = vld [vmem:[#allocation10 + $0x60] sm:$0xff]
        %v2379 = vld [vmem:[#allocation10 + $0x68] sm:$0xff]
        %v2380 = vld [vmem:[#allocation10 + $0x70] sm:$0xff]
        %v2381 = vld [vmem:[#allocation10 + $0x78] sm:$0xff]
        %v2382 = vld [vmem:[%s15] sm:$0x1]
        %v2384 = vlaneseq
        %v2385 = vshrl.u32 %v2384, 7
        %v2386 = vsub.s32 0, %v2385
        %v2387 = vrot.slane %v2382, %v2386
        %2389 = vmatprep.subr.mxu0 0.0
        %2390 = vmatpush1.msra.mxu0 %v2366
        %2391 = vmatprep.subr.mxu0 0.0
        %2392 = vmatpush1.msra.mxu0 %v2367
        %2393 = vmatprep.subr.mxu0 0.0
        %2394 = vmatpush1.msra.mxu0 %v2368
        %2395 = vmatprep.subr.mxu0 0.0
        %2396 = vmatpush1.msra.mxu0 %v2369
        %2397 = vmatprep.subr.mxu0 0.0
        %2398 = vmatpush1.msra.mxu0 %v2370
        %2399 = vmatprep.subr.mxu0 0.0
        %2400 = vmatpush1.msra.mxu0 %v2371
        %2401 = vmatprep.subr.mxu0 0.0
        %2402 = vmatpush1.msra.mxu0 %v2372
        %2403 = vmatprep.subr.mxu0 0.0
        %2404 = vmatpush1.msra.mxu0 %v2373
        %2405 = vmatprep.subr.mxu0 0.0
        %2406 = vmatpush1.msra.mxu0 %v2374
        %2407 = vmatprep.subr.mxu0 0.0
        %2408 = vmatpush1.msra.mxu0 %v2375
        %2409 = vmatprep.subr.mxu0 0.0
        %2410 = vmatpush1.msra.mxu0 %v2376
        %2411 = vmatprep.subr.mxu0 0.0
        %2412 = vmatpush1.msra.mxu0 %v2377
        %2413 = vmatprep.subr.mxu0 0.0
        %2414 = vmatpush1.msra.mxu0 %v2378
        %2415 = vmatprep.subr.mxu0 0.0
        %2416 = vmatpush1.msra.mxu0 %v2379
        %2417 = vmatprep.subr.mxu0 0.0
        %2418 = vmatpush1.msra.mxu0 %v2380
        %2419 = vmatprep.subr.mxu0 0.0
        %2420 = vmatpush1.msra.mxu0 %v2381
        %2421 = vmatprep.subr.mxu0 0.0
        %2422 = vmatpush1.msra.mxu0 0.0
        %2423 = vmatprep.subr.mxu0 0.0
        %2424 = vmatpush1.msra.mxu0 0.0
        %2425 = vmatprep.subr.mxu0 0.0
        %2426 = vmatpush1.msra.mxu0 0.0
        %2427 = vmatprep.subr.mxu0 0.0
        %2428 = vmatpush1.msra.mxu0 0.0
        %2429 = vmatprep.subr.mxu0 0.0
        %2430 = vmatpush1.msra.mxu0 0.0
        %2431 = vmatprep.subr.mxu0 0.0
        %2432 = vmatpush1.msra.mxu0 0.0
        %2433 = vmatprep.subr.mxu0 0.0
        %2434 = vmatpush1.msra.mxu0 0.0
        %2435 = vmatprep.subr.mxu0 0.0
        %2436 = vmatpush1.msra.mxu0 0.0
        %2437 = vmatprep.subr.mxu0 0.0
        %2438 = vmatpush1.msra.mxu0 0.0
        %2439 = vmatprep.subr.mxu0 0.0
        %2440 = vmatpush1.msra.mxu0 0.0
        %2441 = vmatprep.subr.mxu0 0.0
        %2442 = vmatpush1.msra.mxu0 0.0
        %2443 = vmatprep.subr.mxu0 0.0
        %2444 = vmatpush1.msra.mxu0 0.0
        %2445 = vmatprep.subr.mxu0 0.0
        %2446 = vmatpush1.msra.mxu0 0.0
        %2447 = vmatprep.subr.mxu0 0.0
        %2448 = vmatpush1.msra.mxu0 0.0
        %2449 = vmatprep.subr.mxu0 0.0
        %2450 = vmatpush1.msra.mxu0 0.0
        %2451 = vmatprep.subr.mxu0 0.0
        %2452 = vmatpush1.msra.mxu0 0.0
        %2453 = vmatprep.mubr.f32.mxu0 0.0
        %2454 = vmatmul.mubr.f32.gmra.mrb[0].mxu0 %v1982
        %v2455 = vpop.f32.mrb[0].mxu0
        %v2456 = vadd.f32 %v2387, %v2455
        %v2457 = vpop.f32.mrb[0].mxu0
        %2458 = vmatprep.mubr.f32.mxu0 0.0
        %2459 = vmatmul.mubr.f32.gmra.mrb[0].mxu0 %v1983
        %v2460 = vpop.f32.mrb[0].mxu0
        %v2461 = vadd.f32 %v2387, %v2460
        %v2462 = vpop.f32.mrb[0].mxu0
        %2463 = vmatprep.mubr.f32.mxu0 0.0
        %2464 = vmatmul.mubr.f32.gmra.mrb[0].mxu0 %v1984
        %v2465 = vpop.f32.mrb[0].mxu0
        %v2466 = vadd.f32 %v2387, %v2465
        %v2467 = vpop.f32.mrb[0].mxu0
        %2468 = vmatprep.mubr.f32.mxu0 0.0
        %2469 = vmatmul.mubr.f32.gmra.mrb[0].mxu0 %v1985
        %v2470 = vpop.f32.mrb[0].mxu0
        %v2471 = vadd.f32 %v2387, %v2470
        %v2472 = vpop.f32.mrb[0].mxu0
        %2473 = vmatprep.mubr.f32.mxu0 0.0
        %2474 = vmatmul.mubr.f32.gmra.mrb[0].mxu0 %v1986
        %v2475 = vpop.f32.mrb[0].mxu0
        %v2476 = vadd.f32 %v2387, %v2475
        %v2477 = vpop.f32.mrb[0].mxu0
        %2478 = vmatprep.mubr.f32.mxu0 0.0
        %2479 = vmatmul.mubr.f32.gmra.mrb[0].mxu0 %v1987
        %v2480 = vpop.f32.mrb[0].mxu0
        %v2481 = vadd.f32 %v2387, %v2480
        %v2482 = vpop.f32.mrb[0].mxu0
        %2483 = vmatprep.mubr.f32.mxu0 0.0
        %2484 = vmatmul.mubr.f32.gmra.mrb[0].mxu0 %v1988
        %v2485 = vpop.f32.mrb[0].mxu0
        %v2486 = vadd.f32 %v2387, %v2485
        %v2487 = vpop.f32.mrb[0].mxu0
        %2488 = vmatprep.mubr.f32.mxu0 0.0
        %2489 = vmatmul.mubr.f32.gmra.mrb[0].mxu0 %v1989
        %v2490 = vpop.f32.mrb[0].mxu0
        %v2491 = vadd.f32 %v2387, %v2490
        %v2492 = vpop.f32.mrb[0].mxu0
        %2493 = vmatprep.mubr.f32.mxu0 0.0
        %2494 = vmatmul.mubr.f32.gmra.mrb[0].mxu0 %v1990
        %v2495 = vpop.f32.mrb[0].mxu0
        %v2496 = vadd.f32 %v2387, %v2495
        %v2497 = vpop.f32.mrb[0].mxu0
        %2498 = vmatprep.mubr.f32.mxu0 0.0
        %2499 = vmatmul.mubr.f32.gmra.mrb[0].mxu0 %v1991
        %v2500 = vpop.f32.mrb[0].mxu0
        %v2501 = vadd.f32 %v2387, %v2500
        %v2502 = vpop.f32.mrb[0].mxu0
        %2503 = vmatprep.mubr.f32.mxu0 0.0
        %2504 = vmatmul.mubr.f32.gmra.mrb[0].mxu0 %v1992
        %v2505 = vpop.f32.mrb[0].mxu0
        %v2506 = vadd.f32 %v2387, %v2505
        %v2507 = vpop.f32.mrb[0].mxu0
        %2508 = vmatprep.mubr.f32.mxu0 0.0
        %2509 = vmatmul.mubr.f32.gmra.mrb[0].mxu0 %v1993
        %v2510 = vpop.f32.mrb[0].mxu0
        %v2511 = vadd.f32 %v2387, %v2510
        %v2512 = vpop.f32.mrb[0].mxu0
        %2513 = vmatprep.mubr.f32.mxu0 0.0
        %2514 = vmatmul.mubr.f32.gmra.mrb[0].mxu0 %v1994
        %v2515 = vpop.f32.mrb[0].mxu0
        %v2516 = vadd.f32 %v2387, %v2515
        %v2517 = vpop.f32.mrb[0].mxu0
        %2518 = vmatprep.mubr.f32.mxu0 0.0
        %2519 = vmatmul.mubr.f32.gmra.mrb[0].mxu0 %v1995
        %v2520 = vpop.f32.mrb[0].mxu0
        %v2521 = vadd.f32 %v2387, %v2520
        %v2522 = vpop.f32.mrb[0].mxu0
        %2523 = vmatprep.mubr.f32.mxu0 0.0
        %2524 = vmatmul.mubr.f32.gmra.mrb[0].mxu0 %v1996
        %v2525 = vpop.f32.mrb[0].mxu0
        %v2526 = vadd.f32 %v2387, %v2525
        %v2527 = vpop.f32.mrb[0].mxu0
        %2528 = vmatprep.mubr.f32.mxu0 0.0
        %2529 = vmatmul.mubr.f32.gmra.mrb[0].mxu0 %v1997
        %v2530 = vpop.f32.mrb[0].mxu0
        %v2531 = vadd.f32 %v2387, %v2530
        %v2532 = vpop.f32.mrb[0].mxu0
        %2533 = vdwg.mxu0
        %v2534 = vmax.f32 %v2456, 0.0
        %v2535 = vmax.f32 %v2461, 0.0
        %v2536 = vmax.f32 %v2466, 0.0
        %v2537 = vmax.f32 %v2471, 0.0
        %v2538 = vmax.f32 %v2476, 0.0
        %v2539 = vmax.f32 %v2481, 0.0
        %v2540 = vmax.f32 %v2486, 0.0
        %v2541 = vmax.f32 %v2491, 0.0
        %v2542 = vmax.f32 %v2496, 0.0
        %v2543 = vmax.f32 %v2501, 0.0
        %v2544 = vmax.f32 %v2506, 0.0
        %v2545 = vmax.f32 %v2511, 0.0
        %v2546 = vmax.f32 %v2516, 0.0
        %v2547 = vmax.f32 %v2521, 0.0
        %v2548 = vmax.f32 %v2526, 0.0
        %v2549 = vmax.f32 %v2531, 0.0
        %2550 = vst [vmem:[%s791] sm:$0xff] %v2350
        %2551 = vst [vmem:[%s791 + $0x8] sm:$0xff] %v2351
        %2552 = vst [vmem:[%s791 + $0x10] sm:$0xff] %v2352
        %2553 = vst [vmem:[%s791 + $0x18] sm:$0xff] %v2353
        %2554 = vst [vmem:[%s791 + $0x20] sm:$0xff] %v2354
        %2555 = vst [vmem:[%s791 + $0x28] sm:$0xff] %v2355
        %2556 = vst [vmem:[%s791 + $0x30] sm:$0xff] %v2356
        %2557 = vst [vmem:[%s791 + $0x38] sm:$0xff] %v2357
        %2558 = vst [vmem:[%s791 + $0x40] sm:$0xff] %v2358
        %2559 = vst [vmem:[%s791 + $0x48] sm:$0xff] %v2359
        %2560 = vst [vmem:[%s791 + $0x50] sm:$0xff] %v2360
        %2561 = vst [vmem:[%s791 + $0x58] sm:$0xff] %v2361
        %2562 = vst [vmem:[%s791 + $0x60] sm:$0xff] %v2362
        %2563 = vst [vmem:[%s791 + $0x68] sm:$0xff] %v2363
        %2564 = vst [vmem:[%s791 + $0x70] sm:$0xff] %v2364
        %2565 = vst [vmem:[%s791 + $0x78] sm:$0xff] %v2365
        %v2566 = vld [vmem:[#allocation2] sm:$0xff]
        %v2567 = vld [vmem:[#allocation2 + $0x8] sm:$0xff]
        %v2568 = vld [vmem:[#allocation2 + $0x10] sm:$0xff]
        %2569 = vxpose.xlu0.b32.start [1/16] %v1038, 128
        %2570 = vxpose.xlu0.b32.cont [2/16] %v1039, 128
        %2571 = vxpose.xlu0.b32.cont [3/16] %v1040, 128
        %2572 = vxpose.xlu0.b32.cont [4/16] %v1041, 128
        %2573 = vxpose.xlu0.b32.cont [5/16] %v1042, 128
        %2574 = vxpose.xlu0.b32.cont [6/16] %v1043, 128
        %2575 = vxpose.xlu0.b32.cont [7/16] %v1044, 128
        %2576 = vxpose.xlu0.b32.cont [8/16] %v1045, 128
        %2577 = vxpose.xlu0.b32.cont [9/16] %v1046, 128
        %2578 = vxpose.xlu0.b32.cont [10/16] %v1047, 128
        %2579 = vxpose.xlu0.b32.cont [11/16] %v1048, 128
        %2580 = vxpose.xlu0.b32.cont [12/16] %v1049, 128
        %2581 = vxpose.xlu0.b32.cont [13/16] %v1050, 128
        %2582 = vxpose.xlu0.b32.cont [14/16] %v1051, 128
        %2583 = vxpose.xlu0.b32.cont [15/16] %v1052, 128
        %2584 = vxpose.xlu0.b32.end [16/16] %v1053, 128
        %v2585 = vpop.trf.xlu0
        %v2586 = vpop.trf.xlu0
        %v2587 = vpop.trf.xlu0
        %v2588 = vpop.trf.xlu0
        %v2589 = vpop.trf.xlu0
        %v2590 = vpop.trf.xlu0
        %v2591 = vpop.trf.xlu0
        %v2592 = vpop.trf.xlu0
        %v2593 = vpop.trf.xlu0
        %v2594 = vpop.trf.xlu0
        %v2595 = vpop.trf.xlu0
        %v2596 = vpop.trf.xlu0
        %v2597 = vpop.trf.xlu0
        %v2598 = vpop.trf.xlu0
        %v2599 = vpop.trf.xlu0
        %v2600 = vpop.trf.xlu0
        %2601 = vmatprep.subr.mxu0 0.0
        %2602 = vmatpush1.msra.mxu0 %v2534
        %2603 = vmatprep.subr.mxu0 0.0
        %2604 = vmatpush1.msra.mxu0 %v2535
        %2605 = vmatprep.subr.mxu0 0.0
        %2606 = vmatpush1.msra.mxu0 %v2536
        %2607 = vmatprep.subr.mxu0 0.0
        %2608 = vmatpush1.msra.mxu0 %v2537
        %2609 = vmatprep.subr.mxu0 0.0
        %2610 = vmatpush1.msra.mxu0 %v2538
        %2611 = vmatprep.subr.mxu0 0.0
        %2612 = vmatpush1.msra.mxu0 %v2539
        %2613 = vmatprep.subr.mxu0 0.0
        %2614 = vmatpush1.msra.mxu0 %v2540
        %2615 = vmatprep.subr.mxu0 0.0
        %2616 = vmatpush1.msra.mxu0 %v2541
        %2617 = vmatprep.subr.mxu0 0.0
        %2618 = vmatpush1.msra.mxu0 %v2542
        %2619 = vmatprep.subr.mxu0 0.0
        %2620 = vmatpush1.msra.mxu0 %v2543
        %2621 = vmatprep.subr.mxu0 0.0
        %2622 = vmatpush1.msra.mxu0 %v2544
        %2623 = vmatprep.subr.mxu0 0.0
        %2624 = vmatpush1.msra.mxu0 %v2545
        %2625 = vmatprep.subr.mxu0 0.0
        %2626 = vmatpush1.msra.mxu0 %v2546
        %2627 = vmatprep.subr.mxu0 0.0
        %2628 = vmatpush1.msra.mxu0 %v2547
        %2629 = vmatprep.subr.mxu0 0.0
        %2630 = vmatpush1.msra.mxu0 %v2548
        %2631 = vmatprep.subr.mxu0 0.0
        %2632 = vmatpush1.msra.mxu0 %v2549
        %2633 = vmatprep.subr.mxu0 0.0
        %2634 = vmatpush1.msra.mxu0 0.0
        %2635 = vmatprep.subr.mxu0 0.0
        %2636 = vmatpush1.msra.mxu0 0.0
        %2637 = vmatprep.subr.mxu0 0.0
        %2638 = vmatpush1.msra.mxu0 0.0
        %2639 = vmatprep.subr.mxu0 0.0
        %2640 = vmatpush1.msra.mxu0 0.0
        %2641 = vmatprep.subr.mxu0 0.0
        %2642 = vmatpush1.msra.mxu0 0.0
        %2643 = vmatprep.subr.mxu0 0.0
        %2644 = vmatpush1.msra.mxu0 0.0
        %2645 = vmatprep.subr.mxu0 0.0
        %2646 = vmatpush1.msra.mxu0 0.0
        %2647 = vmatprep.subr.mxu0 0.0
        %2648 = vmatpush1.msra.mxu0 0.0
        %2649 = vmatprep.subr.mxu0 0.0
        %2650 = vmatpush1.msra.mxu0 0.0
        %2651 = vmatprep.subr.mxu0 0.0
        %2652 = vmatpush1.msra.mxu0 0.0
        %2653 = vmatprep.subr.mxu0 0.0
        %2654 = vmatpush1.msra.mxu0 0.0
        %2655 = vmatprep.subr.mxu0 0.0
        %2656 = vmatpush1.msra.mxu0 0.0
        %2657 = vmatprep.subr.mxu0 0.0
        %2658 = vmatpush1.msra.mxu0 0.0
        %2659 = vmatprep.subr.mxu0 0.0
        %2660 = vmatpush1.msra.mxu0 0.0
        %2661 = vmatprep.subr.mxu0 0.0
        %2662 = vmatpush1.msra.mxu0 0.0
        %2663 = vmatprep.subr.mxu0 0.0
        %2664 = vmatpush1.msra.mxu0 0.0
        %2665 = vmatprep.mubr.f32.mxu0 0.0
        %2666 = vmatmul.mubr.f32.gmra.mrb[0].mxu0 %v2585
        %v2667 = vpop.f32.mrb[0].mxu0
        %v2668 = vadd.f32 0.0, %v2667
        %v2669 = vpop.f32.mrb[0].mxu0
        %2670 = vmatprep.mubr.f32.mxu0 0.0
        %2671 = vmatmul.mubr.f32.gmra.mrb[0].mxu0 %v2586
        %v2672 = vpop.f32.mrb[0].mxu0
        %v2673 = vadd.f32 0.0, %v2672
        %v2674 = vpop.f32.mrb[0].mxu0
        %2675 = vmatprep.mubr.f32.mxu0 0.0
        %2676 = vmatmul.mubr.f32.gmra.mrb[0].mxu0 %v2587
        %v2677 = vpop.f32.mrb[0].mxu0
        %v2678 = vadd.f32 0.0, %v2677
        %v2679 = vpop.f32.mrb[0].mxu0
        %2680 = vdwg.mxu0
        %2681 = vxpose.xlu0.b32.start [1/16] %v942, 128
        %2682 = vxpose.xlu0.b32.cont [2/16] %v943, 128
        %2683 = vxpose.xlu0.b32.cont [3/16] %v944, 128
        %2684 = vxpose.xlu0.b32.cont [4/16] %v945, 128
        %2685 = vxpose.xlu0.b32.cont [5/16] %v946, 128
        %2686 = vxpose.xlu0.b32.cont [6/16] %v947, 128
        %2687 = vxpose.xlu0.b32.cont [7/16] %v948, 128
        %2688 = vxpose.xlu0.b32.cont [8/16] %v949, 128
        %2689 = vxpose.xlu0.b32.cont [9/16] %v950, 128
        %2690 = vxpose.xlu0.b32.cont [10/16] %v951, 128
        %2691 = vxpose.xlu0.b32.cont [11/16] %v952, 128
        %2692 = vxpose.xlu0.b32.cont [12/16] %v953, 128
        %2693 = vxpose.xlu0.b32.cont [13/16] %v954, 128
        %2694 = vxpose.xlu0.b32.cont [14/16] %v955, 128
        %2695 = vxpose.xlu0.b32.cont [15/16] %v956, 128
        %2696 = vxpose.xlu0.b32.end [16/16] %v957, 128
        %v2697 = vpop.trf.xlu0
        %v2698 = vpop.trf.xlu0
        %v2699 = vpop.trf.xlu0
        %v2700 = vpop.trf.xlu0
        %v2701 = vpop.trf.xlu0
        %v2702 = vpop.trf.xlu0
        %v2703 = vpop.trf.xlu0
        %v2704 = vpop.trf.xlu0
        %v2705 = vpop.trf.xlu0
        %v2706 = vpop.trf.xlu0
        %v2707 = vpop.trf.xlu0
        %v2708 = vpop.trf.xlu0
        %v2709 = vpop.trf.xlu0
        %v2710 = vpop.trf.xlu0
        %v2711 = vpop.trf.xlu0
        %v2712 = vpop.trf.xlu0
        %2713 = vmatprep.subr.mxu0 0.0
        %2714 = vmatpush1.msra.mxu0 %v2166
        %2715 = vmatprep.subr.mxu0 0.0
        %2716 = vmatpush1.msra.mxu0 %v2167
        %2717 = vmatprep.subr.mxu0 0.0
        %2718 = vmatpush1.msra.mxu0 %v2168
        %2719 = vmatprep.subr.mxu0 0.0
        %2720 = vmatpush1.msra.mxu0 %v2169
        %2721 = vmatprep.subr.mxu0 0.0
        %2722 = vmatpush1.msra.mxu0 %v2170
        %2723 = vmatprep.subr.mxu0 0.0
        %2724 = vmatpush1.msra.mxu0 %v2171
        %2725 = vmatprep.subr.mxu0 0.0
        %2726 = vmatpush1.msra.mxu0 %v2172
        %2727 = vmatprep.subr.mxu0 0.0
        %2728 = vmatpush1.msra.mxu0 %v2173
        %2729 = vmatprep.subr.mxu0 0.0
        %2730 = vmatpush1.msra.mxu0 %v2174
        %2731 = vmatprep.subr.mxu0 0.0
        %2732 = vmatpush1.msra.mxu0 %v2175
        %2733 = vmatprep.subr.mxu0 0.0
        %2734 = vmatpush1.msra.mxu0 %v2176
        %2735 = vmatprep.subr.mxu0 0.0
        %2736 = vmatpush1.msra.mxu0 %v2177
        %2737 = vmatprep.subr.mxu0 0.0
        %2738 = vmatpush1.msra.mxu0 %v2178
        %2739 = vmatprep.subr.mxu0 0.0
        %2740 = vmatpush1.msra.mxu0 %v2179
        %2741 = vmatprep.subr.mxu0 0.0
        %2742 = vmatpush1.msra.mxu0 %v2180
        %2743 = vmatprep.subr.mxu0 0.0
        %2744 = vmatpush1.msra.mxu0 %v2181
        %2745 = vmatprep.subr.mxu0 0.0
        %2746 = vmatpush1.msra.mxu0 0.0
        %2747 = vmatprep.subr.mxu0 0.0
        %2748 = vmatpush1.msra.mxu0 0.0
        %2749 = vmatprep.subr.mxu0 0.0
        %2750 = vmatpush1.msra.mxu0 0.0
        %2751 = vmatprep.subr.mxu0 0.0
        %2752 = vmatpush1.msra.mxu0 0.0
        %2753 = vmatprep.subr.mxu0 0.0
        %2754 = vmatpush1.msra.mxu0 0.0
        %2755 = vmatprep.subr.mxu0 0.0
        %2756 = vmatpush1.msra.mxu0 0.0
        %2757 = vmatprep.subr.mxu0 0.0
        %2758 = vmatpush1.msra.mxu0 0.0
        %2759 = vmatprep.subr.mxu0 0.0
        %2760 = vmatpush1.msra.mxu0 0.0
        %2761 = vmatprep.subr.mxu0 0.0
        %2762 = vmatpush1.msra.mxu0 0.0
        %2763 = vmatprep.subr.mxu0 0.0
        %2764 = vmatpush1.msra.mxu0 0.0
        %2765 = vmatprep.subr.mxu0 0.0
        %2766 = vmatpush1.msra.mxu0 0.0
        %2767 = vmatprep.subr.mxu0 0.0
        %2768 = vmatpush1.msra.mxu0 0.0
        %2769 = vmatprep.subr.mxu0 0.0
        %2770 = vmatpush1.msra.mxu0 0.0
        %2771 = vmatprep.subr.mxu0 0.0
        %2772 = vmatpush1.msra.mxu0 0.0
        %2773 = vmatprep.subr.mxu0 0.0
        %2774 = vmatpush1.msra.mxu0 0.0
        %2775 = vmatprep.subr.mxu0 0.0
        %2776 = vmatpush1.msra.mxu0 0.0
        %2777 = vmatprep.mubr.f32.mxu0 0.0
        %2778 = vmatmul.mubr.f32.gmra.mrb[0].mxu0 %v2697
        %v2779 = vpop.f32.mrb[0].mxu0
        %v2780 = vadd.f32 %v2668, %v2779
        %v2781 = vpop.f32.mrb[0].mxu0
        %2782 = vmatprep.mubr.f32.mxu0 0.0
        %2783 = vmatmul.mubr.f32.gmra.mrb[0].mxu0 %v2698
        %v2784 = vpop.f32.mrb[0].mxu0
        %v2785 = vadd.f32 %v2673, %v2784
        %v2786 = vpop.f32.mrb[0].mxu0
        %2787 = vmatprep.mubr.f32.mxu0 0.0
        %2788 = vmatmul.mubr.f32.gmra.mrb[0].mxu0 %v2699
        %v2789 = vpop.f32.mrb[0].mxu0
        %v2790 = vadd.f32 %v2678, %v2789
        %v2791 = vpop.f32.mrb[0].mxu0
        %2792 = vdwg.mxu0
        %v2793 = vadd.f32 %v2566, %v2780
        %v2794 = vadd.f32 %v2567, %v2785
        %v2795 = vadd.f32 %v2568, %v2790
        %2796 = vst [vmem:[#allocation2] sm:$0xff] %v2793
        %2797 = vst [vmem:[#allocation2 + $0x8] sm:$0xff] %v2794
        %2798 = vst [vmem:[#allocation2 + $0x10] sm:$0xff] %v2795
        %v2799 = vld [vmem:[%s806] sm:$0x1]
        %v2800 = vld [vmem:[%s809] sm:$0x1]
        %v2801 = vlaneseq
        %v2802 = vshrl.u32 %v2801, 7
        %v2803 = vadd.s32 %v2802, 8
        %v2804 = vadd.s32 %v2802, 16
        %v2805 = vlaneseq
        %v2806 = vshrl.u32 %v2805, 7
        %v2807 = vsub.s32 0, %v2806
        %v2808 = vrot.slane %v2799, %v2807
        %vm2809 = vcmp.eq.s32.totalorder %v2802, %v2808
        %vm2810 = vcmp.eq.s32.totalorder %v2803, %v2808
        %vm2811 = vcmp.eq.s32.totalorder %v2804, %v2808
        %v2812 = vsel %vm2809, 1, 0
        %v2813 = vsel %vm2810, 1, 0
        %v2814 = vsel %vm2811, 1, 0
        %v2815 = vcvt.s32.f32 %v2812
        %v2816 = vcvt.s32.f32 %v2813
        %v2817 = vcvt.s32.f32 %v2814
        %v2818 = vlaneseq
        %v2819 = vshrl.u32 %v2818, 7
        %v2820 = vsub.s32 0, %v2819
        %v2821 = vrot.slane %v2800, %v2820
        %vm2822 = vcmp.eq.s32.totalorder %v2802, %v2821
        %vm2823 = vcmp.eq.s32.totalorder %v2803, %v2821
        %vm2824 = vcmp.eq.s32.totalorder %v2804, %v2821
        %v2825 = vsel %vm2822, 1, 0
        %v2826 = vsel %vm2823, 1, 0
        %v2827 = vsel %vm2824, 1, 0
        %v2828 = vcvt.s32.f32 %v2825
        %v2829 = vcvt.s32.f32 %v2826
        %v2830 = vcvt.s32.f32 %v2827
        %v2831 = vadd.f32 %v2815, %v2828
        %v2832 = vadd.f32 %v2816, %v2829
        %v2833 = vadd.f32 %v2817, %v2830
        %v2834 = vld [vmem:[#allocation3] sm:$0xff]
        %v2835 = vld [vmem:[#allocation3 + $0x8] sm:$0xff]
        %v2836 = vld [vmem:[#allocation3 + $0x10] sm:$0xff]
        %2837 = vadd.xlane.f32.xlu0 %v2831
        %v2838 = vpop.xlane.xlu0 %2837
        %2839 = vadd.xlane.f32.xlu0 %v2832
        %v2840 = vpop.xlane.xlu0 %2839
        %2841 = vadd.xlane.f32.xlu0 %v2833
        %v2842 = vpop.xlane.xlu0 %2841
        %v2843 = vadd.f32 %v2834, %v2838
        %v2844 = vadd.f32 %v2835, %v2840
        %v2845 = vadd.f32 %v2836, %v2842
        %vm2846 = vcmask 7168
        %2847 = vst.msk [vmem:[#allocation3] sm:$0xff] %vm2846, %v2843
        %2848 = vst.msk [vmem:[#allocation3 + $0x8] sm:$0xff] %vm2846, %v2844
        %2849 = vst.msk [vmem:[#allocation3 + $0x10] sm:$0xff] %vm2846, %v2845
        %p2850 = scmp.eq.s32.totalorder %s41, 2
        // Predicated region
        $region129: #{tpu_custom_call.1} parent=99 // pred_check
          %p2851 = pneg %p2850
        $region130: #{tpu_custom_call.1} parent=99 // pred_check_branch
          %2853 = sbr.rel (%p2851) target = $region132
        $region131: #{tpu_custom_call.1} parent=99 // pred_region
          %v2854 = vld [vmem:[#allocation3] sm:$0xff]
          %v2855 = vld [vmem:[#allocation3 + $0x8] sm:$0xff]
          %v2856 = vld [vmem:[#allocation3 + $0x10] sm:$0xff]
          %v2857 = vmax.f32 %v2854, 1.0
          %v2858 = vmax.f32 %v2855, 1.0
          %v2859 = vmax.f32 %v2856, 1.0
          %v2860 = vrcp.pop %v2857
          %v2861 = vrcp.pop %v2858
          %v2862 = vrcp.pop %v2859
          %v2863 = vld [vmem:[#allocation2] sm:$0xff]
          %v2864 = vld [vmem:[#allocation2 + $0x8] sm:$0xff]
          %v2865 = vld [vmem:[#allocation2 + $0x10] sm:$0xff]
          %2867 = vset.pattern.permute.xlu0 0
          %2868 = vperm.xlu0 %2867, %v2860
          %v2869 = vpop.permute.xlu0 %2868
          %2872 = vset.pattern.permute.xlu0 0
          %2873 = vperm.xlu0 %2872, %v2861
          %v2874 = vpop.permute.xlu0 %2873
          %2877 = vset.pattern.permute.xlu0 0
          %2878 = vperm.xlu0 %2877, %v2862
          %v2879 = vpop.permute.xlu0 %2878
          %v2881 = vmul.f32 %v2863, %v2869
          %v2882 = vmul.f32 %v2864, %v2874
          %v2883 = vmul.f32 %v2865, %v2879
          %v2884 = vld [vmem:[#allocation12] sm:$0xff]
          %v2885 = vld [vmem:[#allocation12 + $0x8] sm:$0xff]
          %v2886 = vld [vmem:[#allocation12 + $0x10] sm:$0xff]
          %v2887 = vld [vmem:[#allocation12 + $0x18] sm:$0xff]
          %v2888 = vld [vmem:[#allocation12 + $0x20] sm:$0xff]
          %v2889 = vld [vmem:[#allocation12 + $0x28] sm:$0xff]
          %v2890 = vld [vmem:[#allocation12 + $0x30] sm:$0xff]
          %v2891 = vld [vmem:[#allocation12 + $0x38] sm:$0xff]
          %v2892 = vld [vmem:[#allocation12 + $0x40] sm:$0xff]
          %v2893 = vld [vmem:[#allocation12 + $0x48] sm:$0xff]
          %v2894 = vld [vmem:[#allocation12 + $0x50] sm:$0xff]
          %v2895 = vld [vmem:[#allocation12 + $0x58] sm:$0xff]
          %v2896 = vld [vmem:[#allocation12 + $0x60] sm:$0xff]
          %v2897 = vld [vmem:[#allocation12 + $0x68] sm:$0xff]
          %v2898 = vld [vmem:[#allocation12 + $0x70] sm:$0xff]
          %v2899 = vld [vmem:[#allocation12 + $0x78] sm:$0xff]
          %v2900 = vld [vmem:[%s17] sm:$0x1]
          %v2902 = vlaneseq
          %v2903 = vshrl.u32 %v2902, 7
          %v2904 = vsub.s32 0, %v2903
          %v2905 = vrot.slane %v2900, %v2904
          %2907 = vmatprep.subr.mxu0 0.0
          %2908 = vmatpush1.msra.mxu0 %v2884
          %2909 = vmatprep.subr.mxu0 0.0
          %2910 = vmatpush1.msra.mxu0 %v2885
          %2911 = vmatprep.subr.mxu0 0.0
          %2912 = vmatpush1.msra.mxu0 %v2886
          %2913 = vmatprep.subr.mxu0 0.0
          %2914 = vmatpush1.msra.mxu0 %v2887
          %2915 = vmatprep.subr.mxu0 0.0
          %2916 = vmatpush1.msra.mxu0 %v2888
          %2917 = vmatprep.subr.mxu0 0.0
          %2918 = vmatpush1.msra.mxu0 %v2889
          %2919 = vmatprep.subr.mxu0 0.0
          %2920 = vmatpush1.msra.mxu0 %v2890
          %2921 = vmatprep.subr.mxu0 0.0
          %2922 = vmatpush1.msra.mxu0 %v2891
          %2923 = vmatprep.subr.mxu0 0.0
          %2924 = vmatpush1.msra.mxu0 %v2892
          %2925 = vmatprep.subr.mxu0 0.0
          %2926 = vmatpush1.msra.mxu0 %v2893
          %2927 = vmatprep.subr.mxu0 0.0
          %2928 = vmatpush1.msra.mxu0 %v2894
          %2929 = vmatprep.subr.mxu0 0.0
          %2930 = vmatpush1.msra.mxu0 %v2895
          %2931 = vmatprep.subr.mxu0 0.0
          %2932 = vmatpush1.msra.mxu0 %v2896
          %2933 = vmatprep.subr.mxu0 0.0
          %2934 = vmatpush1.msra.mxu0 %v2897
          %2935 = vmatprep.subr.mxu0 0.0
          %2936 = vmatpush1.msra.mxu0 %v2898
          %2937 = vmatprep.subr.mxu0 0.0
          %2938 = vmatpush1.msra.mxu0 %v2899
          %2939 = vmatprep.subr.mxu0 0.0
          %2940 = vmatpush1.msra.mxu0 0.0
          %2941 = vmatprep.subr.mxu0 0.0
          %2942 = vmatpush1.msra.mxu0 0.0
          %2943 = vmatprep.subr.mxu0 0.0
          %2944 = vmatpush1.msra.mxu0 0.0
          %2945 = vmatprep.subr.mxu0 0.0
          %2946 = vmatpush1.msra.mxu0 0.0
          %2947 = vmatprep.subr.mxu0 0.0
          %2948 = vmatpush1.msra.mxu0 0.0
          %2949 = vmatprep.subr.mxu0 0.0
          %2950 = vmatpush1.msra.mxu0 0.0
          %2951 = vmatprep.subr.mxu0 0.0
          %2952 = vmatpush1.msra.mxu0 0.0
          %2953 = vmatprep.subr.mxu0 0.0
          %2954 = vmatpush1.msra.mxu0 0.0
          %2955 = vmatprep.subr.mxu0 0.0
          %2956 = vmatpush1.msra.mxu0 0.0
          %2957 = vmatprep.subr.mxu0 0.0
          %2958 = vmatpush1.msra.mxu0 0.0
          %2959 = vmatprep.subr.mxu0 0.0
          %2960 = vmatpush1.msra.mxu0 0.0
          %2961 = vmatprep.subr.mxu0 0.0
          %2962 = vmatpush1.msra.mxu0 0.0
          %2963 = vmatprep.subr.mxu0 0.0
          %2964 = vmatpush1.msra.mxu0 0.0
          %2965 = vmatprep.subr.mxu0 0.0
          %2966 = vmatpush1.msra.mxu0 0.0
          %2967 = vmatprep.subr.mxu0 0.0
          %2968 = vmatpush1.msra.mxu0 0.0
          %2969 = vmatprep.subr.mxu0 0.0
          %2970 = vmatpush1.msra.mxu0 0.0
          %2971 = vmatprep.mubr.f32.mxu0 0.0
          %2972 = vmatmul.mubr.f32.gmra.mrb[0].mxu0 %v2881
          %v2973 = vpop.f32.mrb[0].mxu0
          %v2974 = vadd.f32 %v2905, %v2973
          %v2975 = vpop.f32.mrb[0].mxu0
          %2976 = vmatprep.mubr.f32.mxu0 0.0
          %2977 = vmatmul.mubr.f32.gmra.mrb[0].mxu0 %v2882
          %v2978 = vpop.f32.mrb[0].mxu0
          %v2979 = vadd.f32 %v2905, %v2978
          %v2980 = vpop.f32.mrb[0].mxu0
          %2981 = vmatprep.mubr.f32.mxu0 0.0
          %2982 = vmatmul.mubr.f32.gmra.mrb[0].mxu0 %v2883
          %v2983 = vpop.f32.mrb[0].mxu0
          %v2984 = vadd.f32 %v2905, %v2983
          %v2985 = vpop.f32.mrb[0].mxu0
          %2986 = vdwg.mxu0
          %v2987 = vmax.f32 %v2974, 0.0
          %v2988 = vmax.f32 %v2979, 0.0
          %v2989 = vmax.f32 %v2984, 0.0
          %v2990 = vld [vmem:[#allocation13] sm:$0xff]
          %v2991 = vld [vmem:[#allocation13 + $0x8] sm:$0xff]
          %v2992 = vld [vmem:[#allocation13 + $0x10] sm:$0xff]
          %v2993 = vld [vmem:[#allocation13 + $0x18] sm:$0xff]
          %v2994 = vld [vmem:[#allocation13 + $0x20] sm:$0xff]
          %v2995 = vld [vmem:[#allocation13 + $0x28] sm:$0xff]
          %v2996 = vld [vmem:[#allocation13 + $0x30] sm:$0xff]
          %v2997 = vld [vmem:[#allocation13 + $0x38] sm:$0xff]
          %v2998 = vld [vmem:[#allocation13 + $0x40] sm:$0xff]
          %v2999 = vld [vmem:[#allocation13 + $0x48] sm:$0xff]
          %v3000 = vld [vmem:[#allocation13 + $0x50] sm:$0xff]
          %v3001 = vld [vmem:[#allocation13 + $0x58] sm:$0xff]
          %v3002 = vld [vmem:[#allocation13 + $0x60] sm:$0xff]
          %v3003 = vld [vmem:[#allocation13 + $0x68] sm:$0xff]
          %v3004 = vld [vmem:[#allocation13 + $0x70] sm:$0xff]
          %v3005 = vld [vmem:[#allocation13 + $0x78] sm:$0xff]
          %v3006 = vld [vmem:[%s19] sm:$0x1]
          %v3008 = vlaneseq
          %v3009 = vshrl.u32 %v3008, 7
          %v3010 = vsub.s32 0, %v3009
          %v3011 = vrot.slane %v3006, %v3010
          %3013 = vmatprep.subr.mxu0 0.0
          %3014 = vmatpush1.msra.mxu0 %v2990
          %3015 = vmatprep.subr.mxu0 0.0
          %3016 = vmatpush1.msra.mxu0 %v2991
          %3017 = vmatprep.subr.mxu0 0.0
          %3018 = vmatpush1.msra.mxu0 %v2992
          %3019 = vmatprep.subr.mxu0 0.0
          %3020 = vmatpush1.msra.mxu0 %v2993
          %3021 = vmatprep.subr.mxu0 0.0
          %3022 = vmatpush1.msra.mxu0 %v2994
          %3023 = vmatprep.subr.mxu0 0.0
          %3024 = vmatpush1.msra.mxu0 %v2995
          %3025 = vmatprep.subr.mxu0 0.0
          %3026 = vmatpush1.msra.mxu0 %v2996
          %3027 = vmatprep.subr.mxu0 0.0
          %3028 = vmatpush1.msra.mxu0 %v2997
          %3029 = vmatprep.subr.mxu0 0.0
          %3030 = vmatpush1.msra.mxu0 %v2998
          %3031 = vmatprep.subr.mxu0 0.0
          %3032 = vmatpush1.msra.mxu0 %v2999
          %3033 = vmatprep.subr.mxu0 0.0
          %3034 = vmatpush1.msra.mxu0 %v3000
          %3035 = vmatprep.subr.mxu0 0.0
          %3036 = vmatpush1.msra.mxu0 %v3001
          %3037 = vmatprep.subr.mxu0 0.0
          %3038 = vmatpush1.msra.mxu0 %v3002
          %3039 = vmatprep.subr.mxu0 0.0
          %3040 = vmatpush1.msra.mxu0 %v3003
          %3041 = vmatprep.subr.mxu0 0.0
          %3042 = vmatpush1.msra.mxu0 %v3004
          %3043 = vmatprep.subr.mxu0 0.0
          %3044 = vmatpush1.msra.mxu0 %v3005
          %3045 = vmatprep.subr.mxu0 0.0
          %3046 = vmatpush1.msra.mxu0 0.0
          %3047 = vmatprep.subr.mxu0 0.0
          %3048 = vmatpush1.msra.mxu0 0.0
          %3049 = vmatprep.subr.mxu0 0.0
          %3050 = vmatpush1.msra.mxu0 0.0
          %3051 = vmatprep.subr.mxu0 0.0
          %3052 = vmatpush1.msra.mxu0 0.0
          %3053 = vmatprep.subr.mxu0 0.0
          %3054 = vmatpush1.msra.mxu0 0.0
          %3055 = vmatprep.subr.mxu0 0.0
          %3056 = vmatpush1.msra.mxu0 0.0
          %3057 = vmatprep.subr.mxu0 0.0
          %3058 = vmatpush1.msra.mxu0 0.0
          %3059 = vmatprep.subr.mxu0 0.0
          %3060 = vmatpush1.msra.mxu0 0.0
          %3061 = vmatprep.subr.mxu0 0.0
          %3062 = vmatpush1.msra.mxu0 0.0
          %3063 = vmatprep.subr.mxu0 0.0
          %3064 = vmatpush1.msra.mxu0 0.0
          %3065 = vmatprep.subr.mxu0 0.0
          %3066 = vmatpush1.msra.mxu0 0.0
          %3067 = vmatprep.subr.mxu0 0.0
          %3068 = vmatpush1.msra.mxu0 0.0
          %3069 = vmatprep.subr.mxu0 0.0
          %3070 = vmatpush1.msra.mxu0 0.0
          %3071 = vmatprep.subr.mxu0 0.0
          %3072 = vmatpush1.msra.mxu0 0.0
          %3073 = vmatprep.subr.mxu0 0.0
          %3074 = vmatpush1.msra.mxu0 0.0
          %3075 = vmatprep.subr.mxu0 0.0
          %3076 = vmatpush1.msra.mxu0 0.0
          %3077 = vmatprep.mubr.f32.mxu0 0.0
          %3078 = vmatmul.mubr.f32.gmra.mrb[0].mxu0 %v2987
          %v3079 = vpop.f32.mrb[0].mxu0
          %v3080 = vadd.f32 %v3011, %v3079
          %v3081 = vpop.f32.mrb[0].mxu0
          %3082 = vmatprep.mubr.f32.mxu0 0.0
          %3083 = vmatmul.mubr.f32.gmra.mrb[0].mxu0 %v2988
          %v3084 = vpop.f32.mrb[0].mxu0
          %v3085 = vadd.f32 %v3011, %v3084
          %v3086 = vpop.f32.mrb[0].mxu0
          %3087 = vmatprep.mubr.f32.mxu0 0.0
          %3088 = vmatmul.mubr.f32.gmra.mrb[0].mxu0 %v2989
          %v3089 = vpop.f32.mrb[0].mxu0
          %v3090 = vadd.f32 %v3011, %v3089
          %v3091 = vpop.f32.mrb[0].mxu0
          %3092 = vdwg.mxu0
          %v3093 = vmax.f32 %v3080, 0.0
          %v3094 = vmax.f32 %v3085, 0.0
          %v3095 = vmax.f32 %v3090, 0.0
          %3096 = vst [vmem:[#allocation15] sm:$0xff] %v3093
          %3097 = vst [vmem:[#allocation15 + $0x8] sm:$0xff] %v3094
          %3098 = vst [vmem:[#allocation15 + $0x10] sm:$0xff] %v3095
        $region132: #{tpu_custom_call.1} parent=99 // pred_fallthru
          _
        %s3099 = sand.u32 %s515, 1
        %s3100 = scalar_lea.sflag [#allocation17], %s3099
        %s3101 = sand.u32 %s515, 1
        %s3102 = smul.addr %s3101, 128
        %s3103 = scalar_lea.vmem [#allocation16], %s3102
        // Predicated region
        $region133: #{tpu_custom_call.1} parent=99 // pred_check
          %p3104 = pneg %p499
        $region134: #{tpu_custom_call.1} parent=99 // pred_check_branch
          %3106 = sbr.rel (%p3104) target = $region136
        $region135: #{tpu_custom_call.1} parent=99 // pred_region
          %s3108 = ssub.s32 384, 384
          %3109 = vsyncadd [#allocation6], %s3108
          %s3110 = sshll.u32 [#allocation15], 4
          %s3111 = int_to_ptr.vmem [resolvable:$true] %s3110
          %3116 = dma.vmem_to_hbm [thread:$0]  %s3111, 384, %s20, [#allocation6], 128, 128, 8
        $region136: #{tpu_custom_call.1} parent=99 // pred_fallthru
          _
        // Predicated region
        $region137: #{tpu_custom_call.1} parent=99 // pred_check
          %p3117 = pneg %p525
        $region138: #{tpu_custom_call.1} parent=99 // pred_check_branch
          %3119 = sbr.rel (%p3117) target = $region140
        $region139: #{tpu_custom_call.1} parent=99 // pred_region
          %s3120 = smul.u32 16, %s41
          %s3122 = ssub.s32 2048, 2048
          %3123 = vsyncadd %s3100, %s3122
          %s3124 = smul.addr %s3120, 128
          %s3125 = scalar_lea.hbm %s21, %s3124
          %s3126 = sshll.u32 %s3103, 4
          %s3127 = int_to_ptr.vmem [resolvable:$true] %s3126
          %3132 = dma.vmem_to_hbm [thread:$0]  %s3127, 2048, %s3125, %s3100, 128, 128, 8
        $region140: #{tpu_custom_call.1} parent=99 // pred_fallthru
          _
        // Predicated region
        $region141: #{tpu_custom_call.1} parent=99 // pred_check
          %p3133 = pneg %p499
        $region142: #{tpu_custom_call.1} parent=99 // pred_check_branch
          %3135 = sbr.rel (%p3133) target = $region144
        $region143: #{tpu_custom_call.1} parent=99 // pred_region
          %3136 = dma.done [#allocation6], 384
        $region144: #{tpu_custom_call.1} parent=99 // pred_fallthru
          _
      $region100: #{tpu_custom_call.1} parent=5 // pred_fallthru
        _
      %p3137 = scmp.le.s32.totalorder 2, %s36
      // Predicated region
      $region145: #{tpu_custom_call.1} parent=5 // pred_check
        %p3138 = pneg %p3137
      $region146: #{tpu_custom_call.1} parent=5 // pred_check_branch
        %3140 = sbr.rel (%p3138) target = $region148
      $region147: #{tpu_custom_call.1} parent=5 // pred_region
        %s3141 = ssub.s32 %s36, 2
        // Predicated region
        $region149: #{tpu_custom_call.1} parent=147 // pred_check
          %p3142 = pneg %p531
        $region150: #{tpu_custom_call.1} parent=147 // pred_check_branch
          %3144 = sbr.rel (%p3142) target = $region152
        $region151: #{tpu_custom_call.1} parent=147 // pred_region
          %s3145 = sand.u32 %s516, 1
          %s3146 = scalar_lea.sflag [#allocation17], %s3145
          %s3147 = sand.u32 %s516, 1
          %s3148 = smul.addr %s3147, 128
          %s3149 = scalar_lea.vmem [#allocation16], %s3148
          %3150 = dma.done %s3146, 2048
        $region152: #{tpu_custom_call.1} parent=147 // pred_fallthru
          _
      $region148: #{tpu_custom_call.1} parent=5 // pred_fallthru
        _
    $region6: #{tpu_custom_call.1} parent=1 // loop_footer
      %s40 = sadd.s32 1, %s36
    $region7: #{tpu_custom_call.1} parent=1 // loop_footer_branch
      %35 = sbr.rel target = $region3
    $region8: #{tpu_custom_call.1} parent=1 // loop_exit
      _
    %3151 = vsyncpa [#allocation5], 1
    %s3152 = scalar_lea.sflag [#allocation5], 1
    %3153 = vsyncpa %s3152, 1
    %3154 = vsyncpa [#allocation8], 1
    %3155 = vsyncpa [#allocation11], 1
    %3156 = vsyncpa [#allocation14], 1
    %3157 = vsyncpa [#allocation6], 1
    %s3158 = scalar_lea.sflag [#allocation6], 1
    %3159 = vsyncpa %s3158, 1
    %3160 = vsyncpa [#allocation17], 1
    %s3161 = scalar_lea.sflag [#allocation17], 1
    %3162 = vsyncpa %s3161, 1

</llo_original>
